<compile_context>
chip_gen: v7x
topology: tpu7x:2x2x1
jax: 0.10.0
libtpu: 0.0.40
codegen_flags: <defaults>
</compile_context>

<pallas_src>
import jax
import jax.numpy as jnp
from jax.experimental import pallas as pl
from jax.experimental.pallas import tpu as pltpu


def _round_up(x, m):
    return ((x + m - 1) // m) * m


def _lfm_kernel(users_ref, items_ref, utab_ref, itab_t_ref, o_ref):
    # users_ref : [TB, 1]       int32  user id per example
    # items_ref : [TB, NP, 1]   int32  candidate ids, padded with -1 (NP % 128 == 0)
    # utab_ref  : [UP, E]       f32    user table, rows zero-padded (UP % 128 == 0)
    # itab_t_ref: [E,  IP]      f32    item table transposed, cols zero-padded (IP % 128 == 0)
    # o_ref     : [TB, NP]      f32    scores (padded columns come out as 0)
    tb, n_pad = o_ref.shape
    up = utab_ref.shape[0]
    ip = itab_t_ref.shape[1]
    f32 = jnp.float32

    users = users_ref[...]                     # [TB, 1]
    items = items_ref[...]                     # [TB, NP, 1]

    # 1) Fused user-embedding gather as a one-hot matmul on the MXU.
    #    Exact in f32: exactly one 1.0 per row, zero-padded table rows unused.
    uoh = (jax.lax.broadcasted_iota(jnp.int32, (tb, up), 1) == users).astype(f32)
    u_emb = jnp.dot(uoh, utab_ref[...], preferred_element_type=f32)          # [TB, E]

    # 2) Score every (zero-padded) catalog item against each user on the MXU.
    s_all = jnp.dot(u_emb, itab_t_ref[...], preferred_element_type=f32)      # [TB, IP]

    # 3) Fused candidate selection: lane-dense one-hot over the 128-padded
    #    item axis, multiply + lane reduce.  Padded candidate slots carry id
    #    -1 and therefore produce exact zeros.
    sel = (jax.lax.broadcasted_iota(jnp.int32, (tb, n_pad, ip), 2)
           == items).astype(f32)                                             # [TB, NP, IP]
    scores = jnp.sum(sel * s_all[:, None, :], axis=-1)                       # [TB, NP]

    # 4) Lane-dense (unmasked) store of the full padded tile.
    o_ref[...] = scores.astype(o_ref.dtype)


def latent_factor_forward(users, items, user_table, item_table, *, tb=None):
    """users: [B] int, items: [B, N] int -> [B, N] f32 scores."""
    b = users.shape[0]
    n = items.shape[1]
    num_users, e = user_table.shape
    num_items, e2 = item_table.shape
    assert e == e2

    up = _round_up(num_users, 128)     # contraction axis of the user one-hot
    ip = _round_up(num_items, 128)     # lane axis of the item scores / one-hot
    n_pad = _round_up(n, 128)          # lane-dense candidate / output width

    # Zero-padded, VMEM-resident embedding tables.  The item table is
    # pre-transposed so the all-items scoring matmul has IP on the lane axis.
    utab = jnp.zeros((up, e), jnp.float32).at[:num_users, :].set(
        user_table.astype(jnp.float32))
    itab_t = jnp.zeros((e, ip), jnp.float32).at[:, :num_items].set(
        item_table.astype(jnp.float32).T)

    users2 = users.astype(jnp.int32).reshape(b, 1)
    items_p = jnp.full((b, n_pad), -1, jnp.int32).at[:, :n].set(items.astype(jnp.int32))
    items3 = items_p.reshape(b, n_pad, 1)

    # Batch tile: one grid step for small problems; bigger batches get a
    # "parallel" grid axis so megacore parts can split it across TensorCores.
    if tb is None:
        tb = b if b <= 64 else next((d for d in (64, 32, 16, 8) if b % d == 0), b)
    assert b % tb == 0, "batch must be divisible by the batch tile"
    grid = (b // tb,)

    # Scoped-VMEM budget: resident tables + double-buffered index/output tiles
    # + the dominant in-kernel intermediates (one-hot / products over [TB,NP,IP]).
    tab_bytes = up * e * 4 + e * ip * 4
    io_bytes = 2 * (tb * 128 * 4 + tb * n_pad * 128 * 4 + tb * n_pad * 4)
    tmp_bytes = 3 * tb * n_pad * ip * 4
    need = tab_bytes + io_bytes + tmp_bytes
    cp = dict(dimension_semantics=("parallel",))
    if need > 24 * 2 ** 20:
        cp["vmem_limit_bytes"] = min(int(1.25 * need), 60 * 2 ** 20)

    out = pl.pallas_call(
        _lfm_kernel,
        out_shape=jax.ShapeDtypeStruct((b, n_pad), jnp.float32),
        grid_spec=pltpu.PrefetchScalarGridSpec(
            num_scalar_prefetch=0,
            grid=grid,
            in_specs=[
                pl.BlockSpec((tb, 1), lambda i: (i, 0)),
                pl.BlockSpec((tb, n_pad, 1), lambda i: (i, 0, 0)),
                pl.BlockSpec((up, e), lambda i: (0, 0)),     # resident user table
                pl.BlockSpec((e, ip), lambda i: (0, 0)),     # resident item table
            ],
            out_specs=pl.BlockSpec((tb, n_pad), lambda i: (i, 0)),
        ),
        compiler_params=pltpu.CompilerParams(**cp),
    )(users2, items3, utab, itab_t)

    return out[:, :n]


def reference_forward(users, items, user_table, item_table):
    u = jnp.take(user_table, users, axis=0)                              # [B, E]
    it = jnp.take(item_table, items.reshape(-1), axis=0).reshape(
        items.shape[0], items.shape[1], -1)                              # [B, N, E]
    return jnp.sum(u[:, None, :] * it, axis=-1)                          # [B, N]


if __name__ == "__main__":
    key = jax.random.PRNGKey(0)
    k_u, k_i, k_uid, k_iid = jax.random.split(key, 4)

    edim = 32
    num_users = 20        # max(user_indexes) + 1
    num_items = 40        # max(node_indexes) + 1
    B = 16                # batch
    N = 16                # candidate items per example

    # nn.Embedding default init: N(0, 1)
    user_table = jax.random.normal(k_u, (num_users, edim), dtype=jnp.float32)
    item_table = jax.random.normal(k_i, (num_items, edim), dtype=jnp.float32)

    users = jax.random.randint(k_uid, (B,), 0, num_users, dtype=jnp.int32)
    items = jax.random.randint(k_iid, (B, N), 0, num_items, dtype=jnp.int32)

    out = latent_factor_forward(users, items, user_table, item_table)
    out = jax.block_until_ready(out)

    ref = reference_forward(users, items, user_table, item_table)
    assert out.shape == (B, N)
    assert jnp.allclose(out, ref, atol=1e-4, rtol=1e-4), "mismatch vs reference"

    print("KERNEL_OK")
</pallas_src>

<mosaic_0001>
module attributes {stable_mosaic.version = 11 : i64} {
  func.func @_lfm_kernel(%arg0: i32, %arg1: memref<16x1xi32, #tpu.memory_space<vmem>>, %arg2: memref<16x128x1xi32, #tpu.memory_space<vmem>>, %arg3: memref<128x32xf32, #tpu.memory_space<vmem>>, %arg4: memref<32x128xf32, #tpu.memory_space<vmem>>, %arg5: memref<16x128xf32, #tpu.memory_space<vmem>>) attributes {dimension_semantics = [#tpu.dimension_semantics<parallel>], iteration_bounds = array<i64: 1>, scalar_prefetch = 0 : i64, scratch_operands = 0 : i64, tpu.core_type = #tpu.core_type<tc>, window_params = [{transform_indices = @transform_0, window_bounds = array<i64: 16, 1>}, {transform_indices = @transform_1, window_bounds = array<i64: 16, 128, 1>}, {pipeline_mode = #tpu.pipeline_mode<synchronous>, transform_indices = @transform_2, window_bounds = array<i64: 128, 32>}, {pipeline_mode = #tpu.pipeline_mode<synchronous>, transform_indices = @transform_3, window_bounds = array<i64: 32, 128>}, {transform_indices = @transform_4, window_bounds = array<i64: 16, 128>}]} {
    %c0 = arith.constant 0 : index
    %c0_0 = arith.constant 0 : index
    %0 = vector.load %arg1[%c0, %c0_0] : memref<16x1xi32, #tpu.memory_space<vmem>>, vector<16x1xi32>
    %c0_1 = arith.constant 0 : index
    %c0_2 = arith.constant 0 : index
    %c0_3 = arith.constant 0 : index
    %1 = vector.load %arg2[%c0_1, %c0_2, %c0_3] : memref<16x128x1xi32, #tpu.memory_space<vmem>>, vector<16x128x1xi32>
    %2 = tpu.iota {dimensions = array<i32: 1>} : vector<16x128xi32>
    %3 = vector.broadcast %0 : vector<16x1xi32> to vector<16x128xi32>
    %4 = arith.cmpi eq, %2, %3 : vector<16x128xi32>
    %5 = arith.extui %4 : vector<16x128xi1> to vector<16x128xi32>
    %6 = arith.sitofp %5 : vector<16x128xi32> to vector<16x128xf32>
    %c0_4 = arith.constant 0 : index
    %c0_5 = arith.constant 0 : index
    %7 = vector.load %arg3[%c0_4, %c0_5] : memref<128x32xf32, #tpu.memory_space<vmem>>, vector<128x32xf32>
    %cst = arith.constant dense<0.000000e+00> : vector<16x32xf32>
    %8 = tpu.matmul %6, %7, %cst {dimension_numbers = #tpu.dot_dimension_numbers<[1], [0], [0], [1], [0, 0, 1, 1], [], []>} : vector<16x128xf32>, vector<128x32xf32>, vector<16x32xf32> -> vector<16x32xf32>
    %c0_6 = arith.constant 0 : index
    %c0_7 = arith.constant 0 : index
    %9 = vector.load %arg4[%c0_6, %c0_7] : memref<32x128xf32, #tpu.memory_space<vmem>>, vector<32x128xf32>
    %cst_8 = arith.constant dense<0.000000e+00> : vector<16x128xf32>
    %10 = tpu.matmul %8, %9, %cst_8 {dimension_numbers = #tpu.dot_dimension_numbers<[1], [0], [0], [1], [0, 0, 1, 1], [], []>} : vector<16x32xf32>, vector<32x128xf32>, vector<16x128xf32> -> vector<16x128xf32>
    %11 = tpu.iota {dimensions = array<i32: 2>} : vector<16x128x128xi32>
    %12 = vector.broadcast %1 : vector<16x128x1xi32> to vector<16x128x128xi32>
    %13 = arith.cmpi eq, %11, %12 : vector<16x128x128xi32>
    %14 = arith.extui %13 : vector<16x128x128xi1> to vector<16x128x128xi32>
    %15 = arith.sitofp %14 : vector<16x128x128xi32> to vector<16x128x128xf32>
    %16 = vector.shape_cast %10 : vector<16x128xf32> to vector<16x1x128xf32>
    %17 = vector.broadcast %16 : vector<16x1x128xf32> to vector<16x128x128xf32>
    %18 = arith.mulf %15, %17 : vector<16x128x128xf32>
    %cst_9 = arith.constant dense<0.000000e+00> : vector<16x128xf32>
    %19 = vector.multi_reduction <add>, %18, %cst_9 [2] : vector<16x128x128xf32> to vector<16x128xf32>
    %c0_10 = arith.constant 0 : index
    %c0_11 = arith.constant 0 : index
    %20 = vector.load %arg5[%c0_10, %c0_11] : memref<16x128xf32, #tpu.memory_space<vmem>>, vector<16x128xf32>
    tpu.vector_store %arg5[%c0_10, %c0_11], %19 {strides = array<i32>} : memref<16x128xf32, #tpu.memory_space<vmem>>, vector<16x128xf32>,
    return
  }
  func.func @transform_0(%arg0: i32) -> (i32, i32) {
    %c0_i32 = arith.constant 0 : i32
    %c0_i32_0 = arith.constant 0 : i32
    return %arg0, %c0_i32 : i32, i32
  }
  func.func @transform_1(%arg0: i32) -> (i32, i32, i32) {
    %c0_i32 = arith.constant 0 : i32
    %c0_i32_0 = arith.constant 0 : i32
    %c0_i32_1 = arith.constant 0 : i32
    return %arg0, %c0_i32, %c0_i32_0 : i32, i32, i32
  }
  func.func @transform_2(%arg0: i32) -> (i32, i32) {
    %c0_i32 = arith.constant 0 : i32
    %c0_i32_0 = arith.constant 0 : i32
    %c0_i32_1 = arith.constant 0 : i32
    return %c0_i32, %c0_i32_0 : i32, i32
  }
  func.func @transform_3(%arg0: i32) -> (i32, i32) {
    %c0_i32 = arith.constant 0 : i32
    %c0_i32_0 = arith.constant 0 : i32
    %c0_i32_1 = arith.constant 0 : i32
    return %c0_i32, %c0_i32_0 : i32, i32
  }
  func.func @transform_4(%arg0: i32) -> (i32, i32) {
    %c0_i32 = arith.constant 0 : i32
    %c0_i32_0 = arith.constant 0 : i32
    return %arg0, %c0_i32 : i32, i32
  }
}

</mosaic_0001>

<llo_original>
// kernel: tpu_custom_call.1
$region0: #{tpu_custom_call.1}
  #allocation0 [shape = 'u32[]', space=smem, size = 0x4, offset = 0x4, fixed_abs, tag = 'smem constant byte address 0x4 - core index']
  #allocation1 [shape = 'u32[144,128]{1,0:T(1,128)}', space=vmem, size = 0x12000, scoped, tag = 'internal scratch']
  %s0 = inlined_call_operand.vmem [shape: s32[16,1], index: 0, kind: input, shape index: {}]
  %s1 = inlined_call_operand.vmem [shape: s32[16,128,1], index: 1, kind: input, shape index: {}]
  %s2 = inlined_call_operand.vmem [shape: f32[128,32], index: 2, kind: input, shape index: {}]
  %s3 = inlined_call_operand.vmem [shape: f32[32,128], index: 3, kind: input, shape index: {}]
  %s4 = inlined_call_operand.hbm [shape: f32[16,128], index: 4, kind: output, shape index: {}]
  %s5 = sld [smem:[#allocation0]]
  $region26: #{tpu_custom_call.1} parent=0
    _
  %s7 = ssub.s32 1, %s5
  %s8 = scalar_select 0, %s7, %s5
  $region1: #{tpu_custom_call.1} parent=0
    #allocation2 [shape = 'u8[8192]{0}', space=vmem, size = 0x2000, scoped, tag = 'output window, operand 0, single buffered']
    #allocation3 [shape = 's32[1]{0}', space=sflag, size = 0x4, scoped, tag = 'scoped memory for tpu_custom_call.1']
    %9 = vsyncpa [#allocation3], 0
    // Predicated region
    $region2: #{tpu_custom_call.1} parent=1 // pred_check
      _
    $region3: #{tpu_custom_call.1} parent=1 // pred_check_branch
      %11 = sbr.rel (0) target = $region5
    $region4: #{tpu_custom_call.1} parent=1 // pred_region
      _
    $region5: #{tpu_custom_call.1} parent=1 // pred_fallthru
      _
    // Predicated region
    $region6: #{tpu_custom_call.1} parent=1 // pred_check
      _
    $region7: #{tpu_custom_call.1} parent=1 // pred_check_branch
      %13 = sbr.rel (0) target = $region9
    $region8: #{tpu_custom_call.1} parent=1 // pred_region
      _
    $region9: #{tpu_custom_call.1} parent=1 // pred_fallthru
      _
    // Predicated region
    $region10: #{tpu_custom_call.1} parent=1 // pred_check
      _
    $region11: #{tpu_custom_call.1} parent=1 // pred_check_branch
      %15 = sbr.rel (0) target = $region13
    $region12: #{tpu_custom_call.1} parent=1 // pred_region
      _
    $region13: #{tpu_custom_call.1} parent=1 // pred_fallthru
      _
    // Predicated region
    $region14: #{tpu_custom_call.1} parent=1 // pred_check
      _
    $region15: #{tpu_custom_call.1} parent=1 // pred_check_branch
      %17 = sbr.rel (0) target = $region17
    $region16: #{tpu_custom_call.1} parent=1 // pred_region
      _
    $region17: #{tpu_custom_call.1} parent=1 // pred_fallthru
      _
    %v18 = vld [vmem:[%s0] sm:$0xff]
    %v19 = vld [vmem:[%s0 + $0x8] sm:$0xff]
    %v20 = vld [vmem:[%s1] sm:$0xff]
    %v21 = vld [vmem:[%s1 + $0x8] sm:$0xff]
    %v22 = vld [vmem:[%s1 + $0x10] sm:$0xff]
    %v23 = vld [vmem:[%s1 + $0x18] sm:$0xff]
    %v24 = vld [vmem:[%s1 + $0x20] sm:$0xff]
    %v25 = vld [vmem:[%s1 + $0x28] sm:$0xff]
    %v26 = vld [vmem:[%s1 + $0x30] sm:$0xff]
    %v27 = vld [vmem:[%s1 + $0x38] sm:$0xff]
    %v28 = vld [vmem:[%s1 + $0x40] sm:$0xff]
    %v29 = vld [vmem:[%s1 + $0x48] sm:$0xff]
    %v30 = vld [vmem:[%s1 + $0x50] sm:$0xff]
    %v31 = vld [vmem:[%s1 + $0x58] sm:$0xff]
    %v32 = vld [vmem:[%s1 + $0x60] sm:$0xff]
    %v33 = vld [vmem:[%s1 + $0x68] sm:$0xff]
    %v34 = vld [vmem:[%s1 + $0x70] sm:$0xff]
    %v35 = vld [vmem:[%s1 + $0x78] sm:$0xff]
    %v36 = vld [vmem:[%s1 + $0x80] sm:$0xff]
    %v37 = vld [vmem:[%s1 + $0x88] sm:$0xff]
    %v38 = vld [vmem:[%s1 + $0x90] sm:$0xff]
    %v39 = vld [vmem:[%s1 + $0x98] sm:$0xff]
    %v40 = vld [vmem:[%s1 + $0xa0] sm:$0xff]
    %v41 = vld [vmem:[%s1 + $0xa8] sm:$0xff]
    %v42 = vld [vmem:[%s1 + $0xb0] sm:$0xff]
    %v43 = vld [vmem:[%s1 + $0xb8] sm:$0xff]
    %v44 = vld [vmem:[%s1 + $0xc0] sm:$0xff]
    %v45 = vld [vmem:[%s1 + $0xc8] sm:$0xff]
    %v46 = vld [vmem:[%s1 + $0xd0] sm:$0xff]
    %v47 = vld [vmem:[%s1 + $0xd8] sm:$0xff]
    %v48 = vld [vmem:[%s1 + $0xe0] sm:$0xff]
    %v49 = vld [vmem:[%s1 + $0xe8] sm:$0xff]
    %v50 = vld [vmem:[%s1 + $0xf0] sm:$0xff]
    %v51 = vld [vmem:[%s1 + $0xf8] sm:$0xff]
    %v52 = vld [vmem:[%s1 + $0x100] sm:$0xff]
    %v53 = vld [vmem:[%s1 + $0x108] sm:$0xff]
    %v54 = vld [vmem:[%s1 + $0x110] sm:$0xff]
    %v55 = vld [vmem:[%s1 + $0x118] sm:$0xff]
    %v56 = vld [vmem:[%s1 + $0x120] sm:$0xff]
    %v57 = vld [vmem:[%s1 + $0x128] sm:$0xff]
    %v58 = vld [vmem:[%s1 + $0x130] sm:$0xff]
    %v59 = vld [vmem:[%s1 + $0x138] sm:$0xff]
    %v60 = vld [vmem:[%s1 + $0x140] sm:$0xff]
    %v61 = vld [vmem:[%s1 + $0x148] sm:$0xff]
    %v62 = vld [vmem:[%s1 + $0x150] sm:$0xff]
    %v63 = vld [vmem:[%s1 + $0x158] sm:$0xff]
    %v64 = vld [vmem:[%s1 + $0x160] sm:$0xff]
    %v65 = vld [vmem:[%s1 + $0x168] sm:$0xff]
    %v66 = vld [vmem:[%s1 + $0x170] sm:$0xff]
    %v67 = vld [vmem:[%s1 + $0x178] sm:$0xff]
    %v68 = vld [vmem:[%s1 + $0x180] sm:$0xff]
    %v69 = vld [vmem:[%s1 + $0x188] sm:$0xff]
    %v70 = vld [vmem:[%s1 + $0x190] sm:$0xff]
    %v71 = vld [vmem:[%s1 + $0x198] sm:$0xff]
    %v72 = vld [vmem:[%s1 + $0x1a0] sm:$0xff]
    %v73 = vld [vmem:[%s1 + $0x1a8] sm:$0xff]
    %v74 = vld [vmem:[%s1 + $0x1b0] sm:$0xff]
    %v75 = vld [vmem:[%s1 + $0x1b8] sm:$0xff]
    %v76 = vld [vmem:[%s1 + $0x1c0] sm:$0xff]
    %v77 = vld [vmem:[%s1 + $0x1c8] sm:$0xff]
    %v78 = vld [vmem:[%s1 + $0x1d0] sm:$0xff]
    %v79 = vld [vmem:[%s1 + $0x1d8] sm:$0xff]
    %v80 = vld [vmem:[%s1 + $0x1e0] sm:$0xff]
    %v81 = vld [vmem:[%s1 + $0x1e8] sm:$0xff]
    %v82 = vld [vmem:[%s1 + $0x1f0] sm:$0xff]
    %v83 = vld [vmem:[%s1 + $0x1f8] sm:$0xff]
    %v84 = vld [vmem:[%s1 + $0x200] sm:$0xff]
    %v85 = vld [vmem:[%s1 + $0x208] sm:$0xff]
    %v86 = vld [vmem:[%s1 + $0x210] sm:$0xff]
    %v87 = vld [vmem:[%s1 + $0x218] sm:$0xff]
    %v88 = vld [vmem:[%s1 + $0x220] sm:$0xff]
    %v89 = vld [vmem:[%s1 + $0x228] sm:$0xff]
    %v90 = vld [vmem:[%s1 + $0x230] sm:$0xff]
    %v91 = vld [vmem:[%s1 + $0x238] sm:$0xff]
    %v92 = vld [vmem:[%s1 + $0x240] sm:$0xff]
    %v93 = vld [vmem:[%s1 + $0x248] sm:$0xff]
    %v94 = vld [vmem:[%s1 + $0x250] sm:$0xff]
    %v95 = vld [vmem:[%s1 + $0x258] sm:$0xff]
    %v96 = vld [vmem:[%s1 + $0x260] sm:$0xff]
    %v97 = vld [vmem:[%s1 + $0x268] sm:$0xff]
    %v98 = vld [vmem:[%s1 + $0x270] sm:$0xff]
    %v99 = vld [vmem:[%s1 + $0x278] sm:$0xff]
    %v100 = vld [vmem:[%s1 + $0x280] sm:$0xff]
    %v101 = vld [vmem:[%s1 + $0x288] sm:$0xff]
    %v102 = vld [vmem:[%s1 + $0x290] sm:$0xff]
    %v103 = vld [vmem:[%s1 + $0x298] sm:$0xff]
    %v104 = vld [vmem:[%s1 + $0x2a0] sm:$0xff]
    %v105 = vld [vmem:[%s1 + $0x2a8] sm:$0xff]
    %v106 = vld [vmem:[%s1 + $0x2b0] sm:$0xff]
    %v107 = vld [vmem:[%s1 + $0x2b8] sm:$0xff]
    %v108 = vld [vmem:[%s1 + $0x2c0] sm:$0xff]
    %v109 = vld [vmem:[%s1 + $0x2c8] sm:$0xff]
    %v110 = vld [vmem:[%s1 + $0x2d0] sm:$0xff]
    %v111 = vld [vmem:[%s1 + $0x2d8] sm:$0xff]
    %v112 = vld [vmem:[%s1 + $0x2e0] sm:$0xff]
    %v113 = vld [vmem:[%s1 + $0x2e8] sm:$0xff]
    %v114 = vld [vmem:[%s1 + $0x2f0] sm:$0xff]
    %v115 = vld [vmem:[%s1 + $0x2f8] sm:$0xff]
    %v116 = vld [vmem:[%s1 + $0x300] sm:$0xff]
    %v117 = vld [vmem:[%s1 + $0x308] sm:$0xff]
    %v118 = vld [vmem:[%s1 + $0x310] sm:$0xff]
    %v119 = vld [vmem:[%s1 + $0x318] sm:$0xff]
    %v120 = vld [vmem:[%s1 + $0x320] sm:$0xff]
    %v121 = vld [vmem:[%s1 + $0x328] sm:$0xff]
    %v122 = vld [vmem:[%s1 + $0x330] sm:$0xff]
    %v123 = vld [vmem:[%s1 + $0x338] sm:$0xff]
    %v124 = vld [vmem:[%s1 + $0x340] sm:$0xff]
    %v125 = vld [vmem:[%s1 + $0x348] sm:$0xff]
    %v126 = vld [vmem:[%s1 + $0x350] sm:$0xff]
    %v127 = vld [vmem:[%s1 + $0x358] sm:$0xff]
    %v128 = vld [vmem:[%s1 + $0x360] sm:$0xff]
    %v129 = vld [vmem:[%s1 + $0x368] sm:$0xff]
    %v130 = vld [vmem:[%s1 + $0x370] sm:$0xff]
    %v131 = vld [vmem:[%s1 + $0x378] sm:$0xff]
    %v132 = vld [vmem:[%s1 + $0x380] sm:$0xff]
    %v133 = vld [vmem:[%s1 + $0x388] sm:$0xff]
    %v134 = vld [vmem:[%s1 + $0x390] sm:$0xff]
    %v135 = vld [vmem:[%s1 + $0x398] sm:$0xff]
    %v136 = vld [vmem:[%s1 + $0x3a0] sm:$0xff]
    %v137 = vld [vmem:[%s1 + $0x3a8] sm:$0xff]
    %v138 = vld [vmem:[%s1 + $0x3b0] sm:$0xff]
    %v139 = vld [vmem:[%s1 + $0x3b8] sm:$0xff]
    %v140 = vld [vmem:[%s1 + $0x3c0] sm:$0xff]
    %v141 = vld [vmem:[%s1 + $0x3c8] sm:$0xff]
    %v142 = vld [vmem:[%s1 + $0x3d0] sm:$0xff]
    %v143 = vld [vmem:[%s1 + $0x3d8] sm:$0xff]
    %v144 = vld [vmem:[%s1 + $0x3e0] sm:$0xff]
    %v145 = vld [vmem:[%s1 + $0x3e8] sm:$0xff]
    %v146 = vld [vmem:[%s1 + $0x3f0] sm:$0xff]
    %v147 = vld [vmem:[%s1 + $0x3f8] sm:$0xff]
    %v148 = vld [vmem:[%s1 + $0x400] sm:$0xff]
    %v149 = vld [vmem:[%s1 + $0x408] sm:$0xff]
    %v150 = vld [vmem:[%s1 + $0x410] sm:$0xff]
    %v151 = vld [vmem:[%s1 + $0x418] sm:$0xff]
    %v152 = vld [vmem:[%s1 + $0x420] sm:$0xff]
    %v153 = vld [vmem:[%s1 + $0x428] sm:$0xff]
    %v154 = vld [vmem:[%s1 + $0x430] sm:$0xff]
    %v155 = vld [vmem:[%s1 + $0x438] sm:$0xff]
    %v156 = vld [vmem:[%s1 + $0x440] sm:$0xff]
    %v157 = vld [vmem:[%s1 + $0x448] sm:$0xff]
    %v158 = vld [vmem:[%s1 + $0x450] sm:$0xff]
    %v159 = vld [vmem:[%s1 + $0x458] sm:$0xff]
    %v160 = vld [vmem:[%s1 + $0x460] sm:$0xff]
    %v161 = vld [vmem:[%s1 + $0x468] sm:$0xff]
    %v162 = vld [vmem:[%s1 + $0x470] sm:$0xff]
    %v163 = vld [vmem:[%s1 + $0x478] sm:$0xff]
    %v164 = vld [vmem:[%s1 + $0x480] sm:$0xff]
    %v165 = vld [vmem:[%s1 + $0x488] sm:$0xff]
    %v166 = vld [vmem:[%s1 + $0x490] sm:$0xff]
    %v167 = vld [vmem:[%s1 + $0x498] sm:$0xff]
    %v168 = vld [vmem:[%s1 + $0x4a0] sm:$0xff]
    %v169 = vld [vmem:[%s1 + $0x4a8] sm:$0xff]
    %v170 = vld [vmem:[%s1 + $0x4b0] sm:$0xff]
    %v171 = vld [vmem:[%s1 + $0x4b8] sm:$0xff]
    %v172 = vld [vmem:[%s1 + $0x4c0] sm:$0xff]
    %v173 = vld [vmem:[%s1 + $0x4c8] sm:$0xff]
    %v174 = vld [vmem:[%s1 + $0x4d0] sm:$0xff]
    %v175 = vld [vmem:[%s1 + $0x4d8] sm:$0xff]
    %v176 = vld [vmem:[%s1 + $0x4e0] sm:$0xff]
    %v177 = vld [vmem:[%s1 + $0x4e8] sm:$0xff]
    %v178 = vld [vmem:[%s1 + $0x4f0] sm:$0xff]
    %v179 = vld [vmem:[%s1 + $0x4f8] sm:$0xff]
    %v180 = vld [vmem:[%s1 + $0x500] sm:$0xff]
    %v181 = vld [vmem:[%s1 + $0x508] sm:$0xff]
    %v182 = vld [vmem:[%s1 + $0x510] sm:$0xff]
    %v183 = vld [vmem:[%s1 + $0x518] sm:$0xff]
    %v184 = vld [vmem:[%s1 + $0x520] sm:$0xff]
    %v185 = vld [vmem:[%s1 + $0x528] sm:$0xff]
    %v186 = vld [vmem:[%s1 + $0x530] sm:$0xff]
    %v187 = vld [vmem:[%s1 + $0x538] sm:$0xff]
    %v188 = vld [vmem:[%s1 + $0x540] sm:$0xff]
    %v189 = vld [vmem:[%s1 + $0x548] sm:$0xff]
    %v190 = vld [vmem:[%s1 + $0x550] sm:$0xff]
    %v191 = vld [vmem:[%s1 + $0x558] sm:$0xff]
    %v192 = vld [vmem:[%s1 + $0x560] sm:$0xff]
    %v193 = vld [vmem:[%s1 + $0x568] sm:$0xff]
    %v194 = vld [vmem:[%s1 + $0x570] sm:$0xff]
    %v195 = vld [vmem:[%s1 + $0x578] sm:$0xff]
    %v196 = vld [vmem:[%s1 + $0x580] sm:$0xff]
    %v197 = vld [vmem:[%s1 + $0x588] sm:$0xff]
    %v198 = vld [vmem:[%s1 + $0x590] sm:$0xff]
    %v199 = vld [vmem:[%s1 + $0x598] sm:$0xff]
    %v200 = vld [vmem:[%s1 + $0x5a0] sm:$0xff]
    %v201 = vld [vmem:[%s1 + $0x5a8] sm:$0xff]
    %v202 = vld [vmem:[%s1 + $0x5b0] sm:$0xff]
    %v203 = vld [vmem:[%s1 + $0x5b8] sm:$0xff]
    %v204 = vld [vmem:[%s1 + $0x5c0] sm:$0xff]
    %v205 = vld [vmem:[%s1 + $0x5c8] sm:$0xff]
    %v206 = vld [vmem:[%s1 + $0x5d0] sm:$0xff]
    %v207 = vld [vmem:[%s1 + $0x5d8] sm:$0xff]
    %v208 = vld [vmem:[%s1 + $0x5e0] sm:$0xff]
    %v209 = vld [vmem:[%s1 + $0x5e8] sm:$0xff]
    %v210 = vld [vmem:[%s1 + $0x5f0] sm:$0xff]
    %v211 = vld [vmem:[%s1 + $0x5f8] sm:$0xff]
    %v212 = vld [vmem:[%s1 + $0x600] sm:$0xff]
    %v213 = vld [vmem:[%s1 + $0x608] sm:$0xff]
    %v214 = vld [vmem:[%s1 + $0x610] sm:$0xff]
    %v215 = vld [vmem:[%s1 + $0x618] sm:$0xff]
    %v216 = vld [vmem:[%s1 + $0x620] sm:$0xff]
    %v217 = vld [vmem:[%s1 + $0x628] sm:$0xff]
    %v218 = vld [vmem:[%s1 + $0x630] sm:$0xff]
    %v219 = vld [vmem:[%s1 + $0x638] sm:$0xff]
    %v220 = vld [vmem:[%s1 + $0x640] sm:$0xff]
    %v221 = vld [vmem:[%s1 + $0x648] sm:$0xff]
    %v222 = vld [vmem:[%s1 + $0x650] sm:$0xff]
    %v223 = vld [vmem:[%s1 + $0x658] sm:$0xff]
    %v224 = vld [vmem:[%s1 + $0x660] sm:$0xff]
    %v225 = vld [vmem:[%s1 + $0x668] sm:$0xff]
    %v226 = vld [vmem:[%s1 + $0x670] sm:$0xff]
    %v227 = vld [vmem:[%s1 + $0x678] sm:$0xff]
    %v228 = vld [vmem:[%s1 + $0x680] sm:$0xff]
    %v229 = vld [vmem:[%s1 + $0x688] sm:$0xff]
    %v230 = vld [vmem:[%s1 + $0x690] sm:$0xff]
    %v231 = vld [vmem:[%s1 + $0x698] sm:$0xff]
    %v232 = vld [vmem:[%s1 + $0x6a0] sm:$0xff]
    %v233 = vld [vmem:[%s1 + $0x6a8] sm:$0xff]
    %v234 = vld [vmem:[%s1 + $0x6b0] sm:$0xff]
    %v235 = vld [vmem:[%s1 + $0x6b8] sm:$0xff]
    %v236 = vld [vmem:[%s1 + $0x6c0] sm:$0xff]
    %v237 = vld [vmem:[%s1 + $0x6c8] sm:$0xff]
    %v238 = vld [vmem:[%s1 + $0x6d0] sm:$0xff]
    %v239 = vld [vmem:[%s1 + $0x6d8] sm:$0xff]
    %v240 = vld [vmem:[%s1 + $0x6e0] sm:$0xff]
    %v241 = vld [vmem:[%s1 + $0x6e8] sm:$0xff]
    %v242 = vld [vmem:[%s1 + $0x6f0] sm:$0xff]
    %v243 = vld [vmem:[%s1 + $0x6f8] sm:$0xff]
    %v244 = vld [vmem:[%s1 + $0x700] sm:$0xff]
    %v245 = vld [vmem:[%s1 + $0x708] sm:$0xff]
    %v246 = vld [vmem:[%s1 + $0x710] sm:$0xff]
    %v247 = vld [vmem:[%s1 + $0x718] sm:$0xff]
    %v248 = vld [vmem:[%s1 + $0x720] sm:$0xff]
    %v249 = vld [vmem:[%s1 + $0x728] sm:$0xff]
    %v250 = vld [vmem:[%s1 + $0x730] sm:$0xff]
    %v251 = vld [vmem:[%s1 + $0x738] sm:$0xff]
    %v252 = vld [vmem:[%s1 + $0x740] sm:$0xff]
    %v253 = vld [vmem:[%s1 + $0x748] sm:$0xff]
    %v254 = vld [vmem:[%s1 + $0x750] sm:$0xff]
    %v255 = vld [vmem:[%s1 + $0x758] sm:$0xff]
    %v256 = vld [vmem:[%s1 + $0x760] sm:$0xff]
    %v257 = vld [vmem:[%s1 + $0x768] sm:$0xff]
    %v258 = vld [vmem:[%s1 + $0x770] sm:$0xff]
    %v259 = vld [vmem:[%s1 + $0x778] sm:$0xff]
    %v260 = vld [vmem:[%s1 + $0x780] sm:$0xff]
    %v261 = vld [vmem:[%s1 + $0x788] sm:$0xff]
    %v262 = vld [vmem:[%s1 + $0x790] sm:$0xff]
    %v263 = vld [vmem:[%s1 + $0x798] sm:$0xff]
    %v264 = vld [vmem:[%s1 + $0x7a0] sm:$0xff]
    %v265 = vld [vmem:[%s1 + $0x7a8] sm:$0xff]
    %v266 = vld [vmem:[%s1 + $0x7b0] sm:$0xff]
    %v267 = vld [vmem:[%s1 + $0x7b8] sm:$0xff]
    %v268 = vld [vmem:[%s1 + $0x7c0] sm:$0xff]
    %v269 = vld [vmem:[%s1 + $0x7c8] sm:$0xff]
    %v270 = vld [vmem:[%s1 + $0x7d0] sm:$0xff]
    %v271 = vld [vmem:[%s1 + $0x7d8] sm:$0xff]
    %v272 = vld [vmem:[%s1 + $0x7e0] sm:$0xff]
    %v273 = vld [vmem:[%s1 + $0x7e8] sm:$0xff]
    %v274 = vld [vmem:[%s1 + $0x7f0] sm:$0xff]
    %v275 = vld [vmem:[%s1 + $0x7f8] sm:$0xff]
    %v276 = vlaneseq
    %v277 = vand.u32 %v276, 127
    %278 = vset.pattern.permute.xlu0 0
    %279 = vperm.xlu0 %278, %v18
    %v280 = vpop.permute.xlu0 %279
    %281 = vset.pattern.permute.xlu0 0
    %282 = vperm.xlu0 %281, %v19
    %v283 = vpop.permute.xlu0 %282
    %vm284 = vcmp.eq.s32.totalorder %v277, %v280
    %vm285 = vcmp.eq.s32.totalorder %v277, %v283
    %v286 = vsel %vm284, 1, 0
    %v287 = vsel %vm285, 1, 0
    %v288 = vcvt.s32.f32 %v286
    %v289 = vcvt.s32.f32 %v287
    %v290 = vld [vmem:[%s2] sm:$0xff]
    %v291 = vld [vmem:[%s2 + $0x8] sm:$0xff]
    %v292 = vld [vmem:[%s2 + $0x10] sm:$0xff]
    %v293 = vld [vmem:[%s2 + $0x18] sm:$0xff]
    %v294 = vld [vmem:[%s2 + $0x20] sm:$0xff]
    %v295 = vld [vmem:[%s2 + $0x28] sm:$0xff]
    %v296 = vld [vmem:[%s2 + $0x30] sm:$0xff]
    %v297 = vld [vmem:[%s2 + $0x38] sm:$0xff]
    %v298 = vld [vmem:[%s2 + $0x40] sm:$0xff]
    %v299 = vld [vmem:[%s2 + $0x48] sm:$0xff]
    %v300 = vld [vmem:[%s2 + $0x50] sm:$0xff]
    %v301 = vld [vmem:[%s2 + $0x58] sm:$0xff]
    %v302 = vld [vmem:[%s2 + $0x60] sm:$0xff]
    %v303 = vld [vmem:[%s2 + $0x68] sm:$0xff]
    %v304 = vld [vmem:[%s2 + $0x70] sm:$0xff]
    %v305 = vld [vmem:[%s2 + $0x78] sm:$0xff]
    %306 = vmatprep.subr.mxu0 0.0
    %307 = vmatpush1.msra.mxu0 %v290
    %308 = vmatprep.subr.mxu0 0.0
    %309 = vmatpush1.msra.mxu0 %v291
    %310 = vmatprep.subr.mxu0 0.0
    %311 = vmatpush1.msra.mxu0 %v292
    %312 = vmatprep.subr.mxu0 0.0
    %313 = vmatpush1.msra.mxu0 %v293
    %314 = vmatprep.subr.mxu0 0.0
    %315 = vmatpush1.msra.mxu0 %v294
    %316 = vmatprep.subr.mxu0 0.0
    %317 = vmatpush1.msra.mxu0 %v295
    %318 = vmatprep.subr.mxu0 0.0
    %319 = vmatpush1.msra.mxu0 %v296
    %320 = vmatprep.subr.mxu0 0.0
    %321 = vmatpush1.msra.mxu0 %v297
    %322 = vmatprep.subr.mxu0 0.0
    %323 = vmatpush1.msra.mxu0 %v298
    %324 = vmatprep.subr.mxu0 0.0
    %325 = vmatpush1.msra.mxu0 %v299
    %326 = vmatprep.subr.mxu0 0.0
    %327 = vmatpush1.msra.mxu0 %v300
    %328 = vmatprep.subr.mxu0 0.0
    %329 = vmatpush1.msra.mxu0 %v301
    %330 = vmatprep.subr.mxu0 0.0
    %331 = vmatpush1.msra.mxu0 %v302
    %332 = vmatprep.subr.mxu0 0.0
    %333 = vmatpush1.msra.mxu0 %v303
    %334 = vmatprep.subr.mxu0 0.0
    %335 = vmatpush1.msra.mxu0 %v304
    %336 = vmatprep.subr.mxu0 0.0
    %337 = vmatpush1.msra.mxu0 %v305
    %338 = vmatprep.subr.mxu0 0.0
    %339 = vmatpush1.msra.mxu0 0.0
    %340 = vmatprep.subr.mxu0 0.0
    %341 = vmatpush1.msra.mxu0 0.0
    %342 = vmatprep.subr.mxu0 0.0
    %343 = vmatpush1.msra.mxu0 0.0
    %344 = vmatprep.subr.mxu0 0.0
    %345 = vmatpush1.msra.mxu0 0.0
    %346 = vmatprep.subr.mxu0 0.0
    %347 = vmatpush1.msra.mxu0 0.0
    %348 = vmatprep.subr.mxu0 0.0
    %349 = vmatpush1.msra.mxu0 0.0
    %350 = vmatprep.subr.mxu0 0.0
    %351 = vmatpush1.msra.mxu0 0.0
    %352 = vmatprep.subr.mxu0 0.0
    %353 = vmatpush1.msra.mxu0 0.0
    %354 = vmatprep.subr.mxu0 0.0
    %355 = vmatpush1.msra.mxu0 0.0
    %356 = vmatprep.subr.mxu0 0.0
    %357 = vmatpush1.msra.mxu0 0.0
    %358 = vmatprep.subr.mxu0 0.0
    %359 = vmatpush1.msra.mxu0 0.0
    %360 = vmatprep.subr.mxu0 0.0
    %361 = vmatpush1.msra.mxu0 0.0
    %362 = vmatprep.subr.mxu0 0.0
    %363 = vmatpush1.msra.mxu0 0.0
    %364 = vmatprep.subr.mxu0 0.0
    %365 = vmatpush1.msra.mxu0 0.0
    %366 = vmatprep.subr.mxu0 0.0
    %367 = vmatpush1.msra.mxu0 0.0
    %368 = vmatprep.subr.mxu0 0.0
    %369 = vmatpush1.msra.mxu0 0.0
    %370 = vmatprep.mubr.f32.mxu0 0.0
    %371 = vmatmul.mubr.f32.gmra.mrb[0].mxu0 %v288
    %v372 = vpop.f32.mrb[0].mxu0
    %v373 = vadd.f32 0.0, %v372
    %v374 = vpop.f32.mrb[0].mxu0
    %375 = vmatprep.mubr.f32.mxu0 0.0
    %376 = vmatmul.mubr.f32.gmra.mrb[0].mxu0 %v289
    %v377 = vpop.f32.mrb[0].mxu0
    %v378 = vadd.f32 0.0, %v377
    %v379 = vpop.f32.mrb[0].mxu0
    %380 = vdwg.mxu0
    %v381 = vld [vmem:[%s3] sm:$0xff]
    %v382 = vld [vmem:[%s3 + $0x8] sm:$0xff]
    %v383 = vld [vmem:[%s3 + $0x10] sm:$0xff]
    %v384 = vld [vmem:[%s3 + $0x18] sm:$0xff]
    %vm385 = vcmask 261120
    %v387 = vsel %vm385, %v373, 0
    %v390 = vsel %vm385, %v378, 0
    %392 = vmatprep.subr.mxu0 0.0
    %393 = vmatpush1.msra.mxu0 %v381
    %394 = vmatprep.subr.mxu0 0.0
    %395 = vmatpush1.msra.mxu0 %v382
    %396 = vmatprep.subr.mxu0 0.0
    %397 = vmatpush1.msra.mxu0 %v383
    %398 = vmatprep.subr.mxu0 0.0
    %399 = vmatpush1.msra.mxu0 %v384
    %400 = vmatprep.subr.mxu0 0.0
    %401 = vmatpush1.msra.mxu0 0.0
    %402 = vmatprep.subr.mxu0 0.0
    %403 = vmatpush1.msra.mxu0 0.0
    %404 = vmatprep.subr.mxu0 0.0
    %405 = vmatpush1.msra.mxu0 0.0
    %406 = vmatprep.subr.mxu0 0.0
    %407 = vmatpush1.msra.mxu0 0.0
    %408 = vmatprep.subr.mxu0 0.0
    %409 = vmatpush1.msra.mxu0 0.0
    %410 = vmatprep.subr.mxu0 0.0
    %411 = vmatpush1.msra.mxu0 0.0
    %412 = vmatprep.subr.mxu0 0.0
    %413 = vmatpush1.msra.mxu0 0.0
    %414 = vmatprep.subr.mxu0 0.0
    %415 = vmatpush1.msra.mxu0 0.0
    %416 = vmatprep.subr.mxu0 0.0
    %417 = vmatpush1.msra.mxu0 0.0
    %418 = vmatprep.subr.mxu0 0.0
    %419 = vmatpush1.msra.mxu0 0.0
    %420 = vmatprep.subr.mxu0 0.0
    %421 = vmatpush1.msra.mxu0 0.0
    %422 = vmatprep.subr.mxu0 0.0
    %423 = vmatpush1.msra.mxu0 0.0
    %424 = vmatprep.subr.mxu0 0.0
    %425 = vmatpush1.msra.mxu0 0.0
    %426 = vmatprep.subr.mxu0 0.0
    %427 = vmatpush1.msra.mxu0 0.0
    %428 = vmatprep.subr.mxu0 0.0
    %429 = vmatpush1.msra.mxu0 0.0
    %430 = vmatprep.subr.mxu0 0.0
    %431 = vmatpush1.msra.mxu0 0.0
    %432 = vmatprep.subr.mxu0 0.0
    %433 = vmatpush1.msra.mxu0 0.0
    %434 = vmatprep.subr.mxu0 0.0
    %435 = vmatpush1.msra.mxu0 0.0
    %436 = vmatprep.subr.mxu0 0.0
    %437 = vmatpush1.msra.mxu0 0.0
    %438 = vmatprep.subr.mxu0 0.0
    %439 = vmatpush1.msra.mxu0 0.0
    %440 = vmatprep.subr.mxu0 0.0
    %441 = vmatpush1.msra.mxu0 0.0
    %442 = vmatprep.subr.mxu0 0.0
    %443 = vmatpush1.msra.mxu0 0.0
    %444 = vmatprep.subr.mxu0 0.0
    %445 = vmatpush1.msra.mxu0 0.0
    %446 = vmatprep.subr.mxu0 0.0
    %447 = vmatpush1.msra.mxu0 0.0
    %448 = vmatprep.subr.mxu0 0.0
    %449 = vmatpush1.msra.mxu0 0.0
    %450 = vmatprep.subr.mxu0 0.0
    %451 = vmatpush1.msra.mxu0 0.0
    %452 = vmatprep.subr.mxu0 0.0
    %453 = vmatpush1.msra.mxu0 0.0
    %454 = vmatprep.subr.mxu0 0.0
    %455 = vmatpush1.msra.mxu0 0.0
    %456 = vmatprep.mubr.f32.mxu0 0.0
    %457 = vmatmul.mubr.f32.gmra.mrb[0].mxu0 %v387
    %v458 = vpop.f32.mrb[0].mxu0
    %v459 = vadd.f32 0.0, %v458
    %v460 = vpop.f32.mrb[0].mxu0
    %461 = vmatprep.mubr.f32.mxu0 0.0
    %462 = vmatmul.mubr.f32.gmra.mrb[0].mxu0 %v390
    %v463 = vpop.f32.mrb[0].mxu0
    %v464 = vadd.f32 0.0, %v463
    %v465 = vpop.f32.mrb[0].mxu0
    %466 = vdwg.mxu0
    %467 = vset.pattern.permute.xlu0 0
    %468 = vperm.xlu0 %467, %v20
    %v469 = vpop.permute.xlu0 %468
    %470 = vset.pattern.permute.xlu0 0
    %471 = vperm.xlu0 %470, %v21
    %v472 = vpop.permute.xlu0 %471
    %473 = vset.pattern.permute.xlu0 0
    %474 = vperm.xlu0 %473, %v22
    %v475 = vpop.permute.xlu0 %474
    %476 = vset.pattern.permute.xlu0 0
    %477 = vperm.xlu0 %476, %v23
    %v478 = vpop.permute.xlu0 %477
    %479 = vset.pattern.permute.xlu0 0
    %480 = vperm.xlu0 %479, %v24
    %v481 = vpop.permute.xlu0 %480
    %482 = vset.pattern.permute.xlu0 0
    %483 = vperm.xlu0 %482, %v25
    %v484 = vpop.permute.xlu0 %483
    %485 = vset.pattern.permute.xlu0 0
    %486 = vperm.xlu0 %485, %v26
    %v487 = vpop.permute.xlu0 %486
    %488 = vset.pattern.permute.xlu0 0
    %489 = vperm.xlu0 %488, %v27
    %v490 = vpop.permute.xlu0 %489
    %491 = vset.pattern.permute.xlu0 0
    %492 = vperm.xlu0 %491, %v28
    %v493 = vpop.permute.xlu0 %492
    %494 = vset.pattern.permute.xlu0 0
    %495 = vperm.xlu0 %494, %v29
    %v496 = vpop.permute.xlu0 %495
    %497 = vset.pattern.permute.xlu0 0
    %498 = vperm.xlu0 %497, %v30
    %v499 = vpop.permute.xlu0 %498
    %500 = vset.pattern.permute.xlu0 0
    %501 = vperm.xlu0 %500, %v31
    %v502 = vpop.permute.xlu0 %501
    %503 = vset.pattern.permute.xlu0 0
    %504 = vperm.xlu0 %503, %v32
    %v505 = vpop.permute.xlu0 %504
    %506 = vset.pattern.permute.xlu0 0
    %507 = vperm.xlu0 %506, %v33
    %v508 = vpop.permute.xlu0 %507
    %509 = vset.pattern.permute.xlu0 0
    %510 = vperm.xlu0 %509, %v34
    %v511 = vpop.permute.xlu0 %510
    %512 = vset.pattern.permute.xlu0 0
    %513 = vperm.xlu0 %512, %v35
    %v514 = vpop.permute.xlu0 %513
    %515 = vset.pattern.permute.xlu0 0
    %516 = vperm.xlu0 %515, %v36
    %v517 = vpop.permute.xlu0 %516
    %518 = vset.pattern.permute.xlu0 0
    %519 = vperm.xlu0 %518, %v37
    %v520 = vpop.permute.xlu0 %519
    %521 = vset.pattern.permute.xlu0 0
    %522 = vperm.xlu0 %521, %v38
    %v523 = vpop.permute.xlu0 %522
    %524 = vset.pattern.permute.xlu0 0
    %525 = vperm.xlu0 %524, %v39
    %v526 = vpop.permute.xlu0 %525
    %527 = vset.pattern.permute.xlu0 0
    %528 = vperm.xlu0 %527, %v40
    %v529 = vpop.permute.xlu0 %528
    %530 = vset.pattern.permute.xlu0 0
    %531 = vperm.xlu0 %530, %v41
    %v532 = vpop.permute.xlu0 %531
    %533 = vset.pattern.permute.xlu0 0
    %534 = vperm.xlu0 %533, %v42
    %v535 = vpop.permute.xlu0 %534
    %536 = vset.pattern.permute.xlu0 0
    %537 = vperm.xlu0 %536, %v43
    %v538 = vpop.permute.xlu0 %537
    %539 = vset.pattern.permute.xlu0 0
    %540 = vperm.xlu0 %539, %v44
    %v541 = vpop.permute.xlu0 %540
    %542 = vset.pattern.permute.xlu0 0
    %543 = vperm.xlu0 %542, %v45
    %v544 = vpop.permute.xlu0 %543
    %545 = vset.pattern.permute.xlu0 0
    %546 = vperm.xlu0 %545, %v46
    %v547 = vpop.permute.xlu0 %546
    %548 = vset.pattern.permute.xlu0 0
    %549 = vperm.xlu0 %548, %v47
    %v550 = vpop.permute.xlu0 %549
    %551 = vset.pattern.permute.xlu0 0
    %552 = vperm.xlu0 %551, %v48
    %v553 = vpop.permute.xlu0 %552
    %554 = vset.pattern.permute.xlu0 0
    %555 = vperm.xlu0 %554, %v49
    %v556 = vpop.permute.xlu0 %555
    %557 = vset.pattern.permute.xlu0 0
    %558 = vperm.xlu0 %557, %v50
    %v559 = vpop.permute.xlu0 %558
    %560 = vset.pattern.permute.xlu0 0
    %561 = vperm.xlu0 %560, %v51
    %v562 = vpop.permute.xlu0 %561
    %563 = vset.pattern.permute.xlu0 0
    %564 = vperm.xlu0 %563, %v52
    %v565 = vpop.permute.xlu0 %564
    %566 = vset.pattern.permute.xlu0 0
    %567 = vperm.xlu0 %566, %v53
    %v568 = vpop.permute.xlu0 %567
    %569 = vset.pattern.permute.xlu0 0
    %570 = vperm.xlu0 %569, %v54
    %v571 = vpop.permute.xlu0 %570
    %572 = vset.pattern.permute.xlu0 0
    %573 = vperm.xlu0 %572, %v55
    %v574 = vpop.permute.xlu0 %573
    %575 = vset.pattern.permute.xlu0 0
    %576 = vperm.xlu0 %575, %v56
    %v577 = vpop.permute.xlu0 %576
    %578 = vset.pattern.permute.xlu0 0
    %579 = vperm.xlu0 %578, %v57
    %v580 = vpop.permute.xlu0 %579
    %581 = vset.pattern.permute.xlu0 0
    %582 = vperm.xlu0 %581, %v58
    %v583 = vpop.permute.xlu0 %582
    %584 = vset.pattern.permute.xlu0 0
    %585 = vperm.xlu0 %584, %v59
    %v586 = vpop.permute.xlu0 %585
    %587 = vset.pattern.permute.xlu0 0
    %588 = vperm.xlu0 %587, %v60
    %v589 = vpop.permute.xlu0 %588
    %590 = vset.pattern.permute.xlu0 0
    %591 = vperm.xlu0 %590, %v61
    %v592 = vpop.permute.xlu0 %591
    %593 = vset.pattern.permute.xlu0 0
    %594 = vperm.xlu0 %593, %v62
    %v595 = vpop.permute.xlu0 %594
    %596 = vset.pattern.permute.xlu0 0
    %597 = vperm.xlu0 %596, %v63
    %v598 = vpop.permute.xlu0 %597
    %599 = vset.pattern.permute.xlu0 0
    %600 = vperm.xlu0 %599, %v64
    %v601 = vpop.permute.xlu0 %600
    %602 = vset.pattern.permute.xlu0 0
    %603 = vperm.xlu0 %602, %v65
    %v604 = vpop.permute.xlu0 %603
    %605 = vset.pattern.permute.xlu0 0
    %606 = vperm.xlu0 %605, %v66
    %v607 = vpop.permute.xlu0 %606
    %608 = vset.pattern.permute.xlu0 0
    %609 = vperm.xlu0 %608, %v67
    %v610 = vpop.permute.xlu0 %609
    %611 = vset.pattern.permute.xlu0 0
    %612 = vperm.xlu0 %611, %v68
    %v613 = vpop.permute.xlu0 %612
    %614 = vset.pattern.permute.xlu0 0
    %615 = vperm.xlu0 %614, %v69
    %v616 = vpop.permute.xlu0 %615
    %617 = vset.pattern.permute.xlu0 0
    %618 = vperm.xlu0 %617, %v70
    %v619 = vpop.permute.xlu0 %618
    %620 = vset.pattern.permute.xlu0 0
    %621 = vperm.xlu0 %620, %v71
    %v622 = vpop.permute.xlu0 %621
    %623 = vset.pattern.permute.xlu0 0
    %624 = vperm.xlu0 %623, %v72
    %v625 = vpop.permute.xlu0 %624
    %626 = vset.pattern.permute.xlu0 0
    %627 = vperm.xlu0 %626, %v73
    %v628 = vpop.permute.xlu0 %627
    %629 = vset.pattern.permute.xlu0 0
    %630 = vperm.xlu0 %629, %v74
    %v631 = vpop.permute.xlu0 %630
    %632 = vset.pattern.permute.xlu0 0
    %633 = vperm.xlu0 %632, %v75
    %v634 = vpop.permute.xlu0 %633
    %635 = vset.pattern.permute.xlu0 0
    %636 = vperm.xlu0 %635, %v76
    %v637 = vpop.permute.xlu0 %636
    %638 = vset.pattern.permute.xlu0 0
    %639 = vperm.xlu0 %638, %v77
    %v640 = vpop.permute.xlu0 %639
    %641 = vset.pattern.permute.xlu0 0
    %642 = vperm.xlu0 %641, %v78
    %v643 = vpop.permute.xlu0 %642
    %644 = vset.pattern.permute.xlu0 0
    %645 = vperm.xlu0 %644, %v79
    %v646 = vpop.permute.xlu0 %645
    %647 = vset.pattern.permute.xlu0 0
    %648 = vperm.xlu0 %647, %v80
    %v649 = vpop.permute.xlu0 %648
    %650 = vset.pattern.permute.xlu0 0
    %651 = vperm.xlu0 %650, %v81
    %v652 = vpop.permute.xlu0 %651
    %653 = vset.pattern.permute.xlu0 0
    %654 = vperm.xlu0 %653, %v82
    %v655 = vpop.permute.xlu0 %654
    %656 = vset.pattern.permute.xlu0 0
    %657 = vperm.xlu0 %656, %v83
    %v658 = vpop.permute.xlu0 %657
    %659 = vset.pattern.permute.xlu0 0
    %660 = vperm.xlu0 %659, %v84
    %v661 = vpop.permute.xlu0 %660
    %662 = vset.pattern.permute.xlu0 0
    %663 = vperm.xlu0 %662, %v85
    %v664 = vpop.permute.xlu0 %663
    %665 = vset.pattern.permute.xlu0 0
    %666 = vperm.xlu0 %665, %v86
    %v667 = vpop.permute.xlu0 %666
    %668 = vset.pattern.permute.xlu0 0
    %669 = vperm.xlu0 %668, %v87
    %v670 = vpop.permute.xlu0 %669
    %671 = vset.pattern.permute.xlu0 0
    %672 = vperm.xlu0 %671, %v88
    %v673 = vpop.permute.xlu0 %672
    %674 = vset.pattern.permute.xlu0 0
    %675 = vperm.xlu0 %674, %v89
    %v676 = vpop.permute.xlu0 %675
    %677 = vset.pattern.permute.xlu0 0
    %678 = vperm.xlu0 %677, %v90
    %v679 = vpop.permute.xlu0 %678
    %680 = vset.pattern.permute.xlu0 0
    %681 = vperm.xlu0 %680, %v91
    %v682 = vpop.permute.xlu0 %681
    %683 = vset.pattern.permute.xlu0 0
    %684 = vperm.xlu0 %683, %v92
    %v685 = vpop.permute.xlu0 %684
    %686 = vset.pattern.permute.xlu0 0
    %687 = vperm.xlu0 %686, %v93
    %v688 = vpop.permute.xlu0 %687
    %689 = vset.pattern.permute.xlu0 0
    %690 = vperm.xlu0 %689, %v94
    %v691 = vpop.permute.xlu0 %690
    %692 = vset.pattern.permute.xlu0 0
    %693 = vperm.xlu0 %692, %v95
    %v694 = vpop.permute.xlu0 %693
    %695 = vset.pattern.permute.xlu0 0
    %696 = vperm.xlu0 %695, %v96
    %v697 = vpop.permute.xlu0 %696
    %698 = vset.pattern.permute.xlu0 0
    %699 = vperm.xlu0 %698, %v97
    %v700 = vpop.permute.xlu0 %699
    %701 = vset.pattern.permute.xlu0 0
    %702 = vperm.xlu0 %701, %v98
    %v703 = vpop.permute.xlu0 %702
    %704 = vset.pattern.permute.xlu0 0
    %705 = vperm.xlu0 %704, %v99
    %v706 = vpop.permute.xlu0 %705
    %707 = vset.pattern.permute.xlu0 0
    %708 = vperm.xlu0 %707, %v100
    %v709 = vpop.permute.xlu0 %708
    %710 = vset.pattern.permute.xlu0 0
    %711 = vperm.xlu0 %710, %v101
    %v712 = vpop.permute.xlu0 %711
    %713 = vset.pattern.permute.xlu0 0
    %714 = vperm.xlu0 %713, %v102
    %v715 = vpop.permute.xlu0 %714
    %716 = vset.pattern.permute.xlu0 0
    %717 = vperm.xlu0 %716, %v103
    %v718 = vpop.permute.xlu0 %717
    %719 = vset.pattern.permute.xlu0 0
    %720 = vperm.xlu0 %719, %v104
    %v721 = vpop.permute.xlu0 %720
    %722 = vset.pattern.permute.xlu0 0
    %723 = vperm.xlu0 %722, %v105
    %v724 = vpop.permute.xlu0 %723
    %725 = vset.pattern.permute.xlu0 0
    %726 = vperm.xlu0 %725, %v106
    %v727 = vpop.permute.xlu0 %726
    %728 = vset.pattern.permute.xlu0 0
    %729 = vperm.xlu0 %728, %v107
    %v730 = vpop.permute.xlu0 %729
    %731 = vset.pattern.permute.xlu0 0
    %732 = vperm.xlu0 %731, %v108
    %v733 = vpop.permute.xlu0 %732
    %734 = vset.pattern.permute.xlu0 0
    %735 = vperm.xlu0 %734, %v109
    %v736 = vpop.permute.xlu0 %735
    %737 = vset.pattern.permute.xlu0 0
    %738 = vperm.xlu0 %737, %v110
    %v739 = vpop.permute.xlu0 %738
    %740 = vset.pattern.permute.xlu0 0
    %741 = vperm.xlu0 %740, %v111
    %v742 = vpop.permute.xlu0 %741
    %743 = vset.pattern.permute.xlu0 0
    %744 = vperm.xlu0 %743, %v112
    %v745 = vpop.permute.xlu0 %744
    %746 = vset.pattern.permute.xlu0 0
    %747 = vperm.xlu0 %746, %v113
    %v748 = vpop.permute.xlu0 %747
    %749 = vset.pattern.permute.xlu0 0
    %750 = vperm.xlu0 %749, %v114
    %v751 = vpop.permute.xlu0 %750
    %752 = vset.pattern.permute.xlu0 0
    %753 = vperm.xlu0 %752, %v115
    %v754 = vpop.permute.xlu0 %753
    %755 = vset.pattern.permute.xlu0 0
    %756 = vperm.xlu0 %755, %v116
    %v757 = vpop.permute.xlu0 %756
    %758 = vset.pattern.permute.xlu0 0
    %759 = vperm.xlu0 %758, %v117
    %v760 = vpop.permute.xlu0 %759
    %761 = vset.pattern.permute.xlu0 0
    %762 = vperm.xlu0 %761, %v118
    %v763 = vpop.permute.xlu0 %762
    %764 = vset.pattern.permute.xlu0 0
    %765 = vperm.xlu0 %764, %v119
    %v766 = vpop.permute.xlu0 %765
    %767 = vset.pattern.permute.xlu0 0
    %768 = vperm.xlu0 %767, %v120
    %v769 = vpop.permute.xlu0 %768
    %770 = vset.pattern.permute.xlu0 0
    %771 = vperm.xlu0 %770, %v121
    %v772 = vpop.permute.xlu0 %771
    %773 = vset.pattern.permute.xlu0 0
    %774 = vperm.xlu0 %773, %v122
    %v775 = vpop.permute.xlu0 %774
    %776 = vset.pattern.permute.xlu0 0
    %777 = vperm.xlu0 %776, %v123
    %v778 = vpop.permute.xlu0 %777
    %779 = vset.pattern.permute.xlu0 0
    %780 = vperm.xlu0 %779, %v124
    %v781 = vpop.permute.xlu0 %780
    %782 = vset.pattern.permute.xlu0 0
    %783 = vperm.xlu0 %782, %v125
    %v784 = vpop.permute.xlu0 %783
    %785 = vset.pattern.permute.xlu0 0
    %786 = vperm.xlu0 %785, %v126
    %v787 = vpop.permute.xlu0 %786
    %788 = vset.pattern.permute.xlu0 0
    %789 = vperm.xlu0 %788, %v127
    %v790 = vpop.permute.xlu0 %789
    %791 = vset.pattern.permute.xlu0 0
    %792 = vperm.xlu0 %791, %v128
    %v793 = vpop.permute.xlu0 %792
    %794 = vset.pattern.permute.xlu0 0
    %795 = vperm.xlu0 %794, %v129
    %v796 = vpop.permute.xlu0 %795
    %797 = vset.pattern.permute.xlu0 0
    %798 = vperm.xlu0 %797, %v130
    %v799 = vpop.permute.xlu0 %798
    %800 = vset.pattern.permute.xlu0 0
    %801 = vperm.xlu0 %800, %v131
    %v802 = vpop.permute.xlu0 %801
    %803 = vset.pattern.permute.xlu0 0
    %804 = vperm.xlu0 %803, %v132
    %v805 = vpop.permute.xlu0 %804
    %806 = vset.pattern.permute.xlu0 0
    %807 = vperm.xlu0 %806, %v133
    %v808 = vpop.permute.xlu0 %807
    %809 = vset.pattern.permute.xlu0 0
    %810 = vperm.xlu0 %809, %v134
    %v811 = vpop.permute.xlu0 %810
    %812 = vset.pattern.permute.xlu0 0
    %813 = vperm.xlu0 %812, %v135
    %v814 = vpop.permute.xlu0 %813
    %815 = vset.pattern.permute.xlu0 0
    %816 = vperm.xlu0 %815, %v136
    %v817 = vpop.permute.xlu0 %816
    %818 = vset.pattern.permute.xlu0 0
    %819 = vperm.xlu0 %818, %v137
    %v820 = vpop.permute.xlu0 %819
    %821 = vset.pattern.permute.xlu0 0
    %822 = vperm.xlu0 %821, %v138
    %v823 = vpop.permute.xlu0 %822
    %824 = vset.pattern.permute.xlu0 0
    %825 = vperm.xlu0 %824, %v139
    %v826 = vpop.permute.xlu0 %825
    %827 = vset.pattern.permute.xlu0 0
    %828 = vperm.xlu0 %827, %v140
    %v829 = vpop.permute.xlu0 %828
    %830 = vset.pattern.permute.xlu0 0
    %831 = vperm.xlu0 %830, %v141
    %v832 = vpop.permute.xlu0 %831
    %833 = vset.pattern.permute.xlu0 0
    %834 = vperm.xlu0 %833, %v142
    %v835 = vpop.permute.xlu0 %834
    %836 = vset.pattern.permute.xlu0 0
    %837 = vperm.xlu0 %836, %v143
    %v838 = vpop.permute.xlu0 %837
    %839 = vset.pattern.permute.xlu0 0
    %840 = vperm.xlu0 %839, %v144
    %v841 = vpop.permute.xlu0 %840
    %842 = vset.pattern.permute.xlu0 0
    %843 = vperm.xlu0 %842, %v145
    %v844 = vpop.permute.xlu0 %843
    %845 = vset.pattern.permute.xlu0 0
    %846 = vperm.xlu0 %845, %v146
    %v847 = vpop.permute.xlu0 %846
    %848 = vset.pattern.permute.xlu0 0
    %849 = vperm.xlu0 %848, %v147
    %v850 = vpop.permute.xlu0 %849
    %851 = vset.pattern.permute.xlu0 0
    %852 = vperm.xlu0 %851, %v148
    %v853 = vpop.permute.xlu0 %852
    %854 = vset.pattern.permute.xlu0 0
    %855 = vperm.xlu0 %854, %v149
    %v856 = vpop.permute.xlu0 %855
    %857 = vset.pattern.permute.xlu0 0
    %858 = vperm.xlu0 %857, %v150
    %v859 = vpop.permute.xlu0 %858
    %860 = vset.pattern.permute.xlu0 0
    %861 = vperm.xlu0 %860, %v151
    %v862 = vpop.permute.xlu0 %861
    %863 = vset.pattern.permute.xlu0 0
    %864 = vperm.xlu0 %863, %v152
    %v865 = vpop.permute.xlu0 %864
    %866 = vset.pattern.permute.xlu0 0
    %867 = vperm.xlu0 %866, %v153
    %v868 = vpop.permute.xlu0 %867
    %869 = vset.pattern.permute.xlu0 0
    %870 = vperm.xlu0 %869, %v154
    %v871 = vpop.permute.xlu0 %870
    %872 = vset.pattern.permute.xlu0 0
    %873 = vperm.xlu0 %872, %v155
    %v874 = vpop.permute.xlu0 %873
    %875 = vset.pattern.permute.xlu0 0
    %876 = vperm.xlu0 %875, %v156
    %v877 = vpop.permute.xlu0 %876
    %878 = vset.pattern.permute.xlu0 0
    %879 = vperm.xlu0 %878, %v157
    %v880 = vpop.permute.xlu0 %879
    %881 = vset.pattern.permute.xlu0 0
    %882 = vperm.xlu0 %881, %v158
    %v883 = vpop.permute.xlu0 %882
    %884 = vset.pattern.permute.xlu0 0
    %885 = vperm.xlu0 %884, %v159
    %v886 = vpop.permute.xlu0 %885
    %887 = vset.pattern.permute.xlu0 0
    %888 = vperm.xlu0 %887, %v160
    %v889 = vpop.permute.xlu0 %888
    %890 = vset.pattern.permute.xlu0 0
    %891 = vperm.xlu0 %890, %v161
    %v892 = vpop.permute.xlu0 %891
    %893 = vset.pattern.permute.xlu0 0
    %894 = vperm.xlu0 %893, %v162
    %v895 = vpop.permute.xlu0 %894
    %896 = vset.pattern.permute.xlu0 0
    %897 = vperm.xlu0 %896, %v163
    %v898 = vpop.permute.xlu0 %897
    %899 = vset.pattern.permute.xlu0 0
    %900 = vperm.xlu0 %899, %v164
    %v901 = vpop.permute.xlu0 %900
    %902 = vset.pattern.permute.xlu0 0
    %903 = vperm.xlu0 %902, %v165
    %v904 = vpop.permute.xlu0 %903
    %905 = vset.pattern.permute.xlu0 0
    %906 = vperm.xlu0 %905, %v166
    %v907 = vpop.permute.xlu0 %906
    %908 = vset.pattern.permute.xlu0 0
    %909 = vperm.xlu0 %908, %v167
    %v910 = vpop.permute.xlu0 %909
    %911 = vset.pattern.permute.xlu0 0
    %912 = vperm.xlu0 %911, %v168
    %v913 = vpop.permute.xlu0 %912
    %914 = vset.pattern.permute.xlu0 0
    %915 = vperm.xlu0 %914, %v169
    %v916 = vpop.permute.xlu0 %915
    %917 = vset.pattern.permute.xlu0 0
    %918 = vperm.xlu0 %917, %v170
    %v919 = vpop.permute.xlu0 %918
    %920 = vset.pattern.permute.xlu0 0
    %921 = vperm.xlu0 %920, %v171
    %v922 = vpop.permute.xlu0 %921
    %923 = vset.pattern.permute.xlu0 0
    %924 = vperm.xlu0 %923, %v172
    %v925 = vpop.permute.xlu0 %924
    %926 = vset.pattern.permute.xlu0 0
    %927 = vperm.xlu0 %926, %v173
    %v928 = vpop.permute.xlu0 %927
    %929 = vset.pattern.permute.xlu0 0
    %930 = vperm.xlu0 %929, %v174
    %v931 = vpop.permute.xlu0 %930
    %932 = vset.pattern.permute.xlu0 0
    %933 = vperm.xlu0 %932, %v175
    %v934 = vpop.permute.xlu0 %933
    %935 = vset.pattern.permute.xlu0 0
    %936 = vperm.xlu0 %935, %v176
    %v937 = vpop.permute.xlu0 %936
    %938 = vset.pattern.permute.xlu0 0
    %939 = vperm.xlu0 %938, %v177
    %v940 = vpop.permute.xlu0 %939
    %941 = vset.pattern.permute.xlu0 0
    %942 = vperm.xlu0 %941, %v178
    %v943 = vpop.permute.xlu0 %942
    %944 = vset.pattern.permute.xlu0 0
    %945 = vperm.xlu0 %944, %v179
    %v946 = vpop.permute.xlu0 %945
    %947 = vset.pattern.permute.xlu0 0
    %948 = vperm.xlu0 %947, %v180
    %v949 = vpop.permute.xlu0 %948
    %950 = vset.pattern.permute.xlu0 0
    %951 = vperm.xlu0 %950, %v181
    %v952 = vpop.permute.xlu0 %951
    %953 = vset.pattern.permute.xlu0 0
    %954 = vperm.xlu0 %953, %v182
    %v955 = vpop.permute.xlu0 %954
    %956 = vset.pattern.permute.xlu0 0
    %957 = vperm.xlu0 %956, %v183
    %v958 = vpop.permute.xlu0 %957
    %959 = vset.pattern.permute.xlu0 0
    %960 = vperm.xlu0 %959, %v184
    %v961 = vpop.permute.xlu0 %960
    %962 = vset.pattern.permute.xlu0 0
    %963 = vperm.xlu0 %962, %v185
    %v964 = vpop.permute.xlu0 %963
    %965 = vset.pattern.permute.xlu0 0
    %966 = vperm.xlu0 %965, %v186
    %v967 = vpop.permute.xlu0 %966
    %968 = vset.pattern.permute.xlu0 0
    %969 = vperm.xlu0 %968, %v187
    %v970 = vpop.permute.xlu0 %969
    %971 = vset.pattern.permute.xlu0 0
    %972 = vperm.xlu0 %971, %v188
    %v973 = vpop.permute.xlu0 %972
    %974 = vset.pattern.permute.xlu0 0
    %975 = vperm.xlu0 %974, %v189
    %v976 = vpop.permute.xlu0 %975
    %977 = vset.pattern.permute.xlu0 0
    %978 = vperm.xlu0 %977, %v190
    %v979 = vpop.permute.xlu0 %978
    %980 = vset.pattern.permute.xlu0 0
    %981 = vperm.xlu0 %980, %v191
    %v982 = vpop.permute.xlu0 %981
    %983 = vset.pattern.permute.xlu0 0
    %984 = vperm.xlu0 %983, %v192
    %v985 = vpop.permute.xlu0 %984
    %986 = vset.pattern.permute.xlu0 0
    %987 = vperm.xlu0 %986, %v193
    %v988 = vpop.permute.xlu0 %987
    %989 = vset.pattern.permute.xlu0 0
    %990 = vperm.xlu0 %989, %v194
    %v991 = vpop.permute.xlu0 %990
    %992 = vset.pattern.permute.xlu0 0
    %993 = vperm.xlu0 %992, %v195
    %v994 = vpop.permute.xlu0 %993
    %995 = vset.pattern.permute.xlu0 0
    %996 = vperm.xlu0 %995, %v196
    %v997 = vpop.permute.xlu0 %996
    %998 = vset.pattern.permute.xlu0 0
    %999 = vperm.xlu0 %998, %v197
    %v1000 = vpop.permute.xlu0 %999
    %1001 = vset.pattern.permute.xlu0 0
    %1002 = vperm.xlu0 %1001, %v198
    %v1003 = vpop.permute.xlu0 %1002
    %1004 = vset.pattern.permute.xlu0 0
    %1005 = vperm.xlu0 %1004, %v199
    %v1006 = vpop.permute.xlu0 %1005
    %1007 = vset.pattern.permute.xlu0 0
    %1008 = vperm.xlu0 %1007, %v200
    %v1009 = vpop.permute.xlu0 %1008
    %1010 = vset.pattern.permute.xlu0 0
    %1011 = vperm.xlu0 %1010, %v201
    %v1012 = vpop.permute.xlu0 %1011
    %1013 = vset.pattern.permute.xlu0 0
    %1014 = vperm.xlu0 %1013, %v202
    %v1015 = vpop.permute.xlu0 %1014
    %1016 = vset.pattern.permute.xlu0 0
    %1017 = vperm.xlu0 %1016, %v203
    %v1018 = vpop.permute.xlu0 %1017
    %1019 = vset.pattern.permute.xlu0 0
    %1020 = vperm.xlu0 %1019, %v204
    %v1021 = vpop.permute.xlu0 %1020
    %1022 = vset.pattern.permute.xlu0 0
    %1023 = vperm.xlu0 %1022, %v205
    %v1024 = vpop.permute.xlu0 %1023
    %1025 = vset.pattern.permute.xlu0 0
    %1026 = vperm.xlu0 %1025, %v206
    %v1027 = vpop.permute.xlu0 %1026
    %1028 = vset.pattern.permute.xlu0 0
    %1029 = vperm.xlu0 %1028, %v207
    %v1030 = vpop.permute.xlu0 %1029
    %1031 = vset.pattern.permute.xlu0 0
    %1032 = vperm.xlu0 %1031, %v208
    %v1033 = vpop.permute.xlu0 %1032
    %1034 = vset.pattern.permute.xlu0 0
    %1035 = vperm.xlu0 %1034, %v209
    %v1036 = vpop.permute.xlu0 %1035
    %1037 = vset.pattern.permute.xlu0 0
    %1038 = vperm.xlu0 %1037, %v210
    %v1039 = vpop.permute.xlu0 %1038
    %1040 = vset.pattern.permute.xlu0 0
    %1041 = vperm.xlu0 %1040, %v211
    %v1042 = vpop.permute.xlu0 %1041
    %1043 = vset.pattern.permute.xlu0 0
    %1044 = vperm.xlu0 %1043, %v212
    %v1045 = vpop.permute.xlu0 %1044
    %1046 = vset.pattern.permute.xlu0 0
    %1047 = vperm.xlu0 %1046, %v213
    %v1048 = vpop.permute.xlu0 %1047
    %1049 = vset.pattern.permute.xlu0 0
    %1050 = vperm.xlu0 %1049, %v214
    %v1051 = vpop.permute.xlu0 %1050
    %1052 = vset.pattern.permute.xlu0 0
    %1053 = vperm.xlu0 %1052, %v215
    %v1054 = vpop.permute.xlu0 %1053
    %1055 = vset.pattern.permute.xlu0 0
    %1056 = vperm.xlu0 %1055, %v216
    %v1057 = vpop.permute.xlu0 %1056
    %1058 = vset.pattern.permute.xlu0 0
    %1059 = vperm.xlu0 %1058, %v217
    %v1060 = vpop.permute.xlu0 %1059
    %1061 = vset.pattern.permute.xlu0 0
    %1062 = vperm.xlu0 %1061, %v218
    %v1063 = vpop.permute.xlu0 %1062
    %1064 = vset.pattern.permute.xlu0 0
    %1065 = vperm.xlu0 %1064, %v219
    %v1066 = vpop.permute.xlu0 %1065
    %1067 = vset.pattern.permute.xlu0 0
    %1068 = vperm.xlu0 %1067, %v220
    %v1069 = vpop.permute.xlu0 %1068
    %1070 = vset.pattern.permute.xlu0 0
    %1071 = vperm.xlu0 %1070, %v221
    %v1072 = vpop.permute.xlu0 %1071
    %1073 = vset.pattern.permute.xlu0 0
    %1074 = vperm.xlu0 %1073, %v222
    %v1075 = vpop.permute.xlu0 %1074
    %1076 = vset.pattern.permute.xlu0 0
    %1077 = vperm.xlu0 %1076, %v223
    %v1078 = vpop.permute.xlu0 %1077
    %1079 = vset.pattern.permute.xlu0 0
    %1080 = vperm.xlu0 %1079, %v224
    %v1081 = vpop.permute.xlu0 %1080
    %1082 = vset.pattern.permute.xlu0 0
    %1083 = vperm.xlu0 %1082, %v225
    %v1084 = vpop.permute.xlu0 %1083
    %1085 = vset.pattern.permute.xlu0 0
    %1086 = vperm.xlu0 %1085, %v226
    %v1087 = vpop.permute.xlu0 %1086
    %1088 = vset.pattern.permute.xlu0 0
    %1089 = vperm.xlu0 %1088, %v227
    %v1090 = vpop.permute.xlu0 %1089
    %1091 = vset.pattern.permute.xlu0 0
    %1092 = vperm.xlu0 %1091, %v228
    %v1093 = vpop.permute.xlu0 %1092
    %1094 = vset.pattern.permute.xlu0 0
    %1095 = vperm.xlu0 %1094, %v229
    %v1096 = vpop.permute.xlu0 %1095
    %1097 = vset.pattern.permute.xlu0 0
    %1098 = vperm.xlu0 %1097, %v230
    %v1099 = vpop.permute.xlu0 %1098
    %1100 = vset.pattern.permute.xlu0 0
    %1101 = vperm.xlu0 %1100, %v231
    %v1102 = vpop.permute.xlu0 %1101
    %1103 = vset.pattern.permute.xlu0 0
    %1104 = vperm.xlu0 %1103, %v232
    %v1105 = vpop.permute.xlu0 %1104
    %1106 = vset.pattern.permute.xlu0 0
    %1107 = vperm.xlu0 %1106, %v233
    %v1108 = vpop.permute.xlu0 %1107
    %1109 = vset.pattern.permute.xlu0 0
    %1110 = vperm.xlu0 %1109, %v234
    %v1111 = vpop.permute.xlu0 %1110
    %1112 = vset.pattern.permute.xlu0 0
    %1113 = vperm.xlu0 %1112, %v235
    %v1114 = vpop.permute.xlu0 %1113
    %1115 = vset.pattern.permute.xlu0 0
    %1116 = vperm.xlu0 %1115, %v236
    %v1117 = vpop.permute.xlu0 %1116
    %1118 = vset.pattern.permute.xlu0 0
    %1119 = vperm.xlu0 %1118, %v237
    %v1120 = vpop.permute.xlu0 %1119
    %1121 = vset.pattern.permute.xlu0 0
    %1122 = vperm.xlu0 %1121, %v238
    %v1123 = vpop.permute.xlu0 %1122
    %1124 = vset.pattern.permute.xlu0 0
    %1125 = vperm.xlu0 %1124, %v239
    %v1126 = vpop.permute.xlu0 %1125
    %1127 = vset.pattern.permute.xlu0 0
    %1128 = vperm.xlu0 %1127, %v240
    %v1129 = vpop.permute.xlu0 %1128
    %1130 = vset.pattern.permute.xlu0 0
    %1131 = vperm.xlu0 %1130, %v241
    %v1132 = vpop.permute.xlu0 %1131
    %1133 = vset.pattern.permute.xlu0 0
    %1134 = vperm.xlu0 %1133, %v242
    %v1135 = vpop.permute.xlu0 %1134
    %1136 = vset.pattern.permute.xlu0 0
    %1137 = vperm.xlu0 %1136, %v243
    %v1138 = vpop.permute.xlu0 %1137
    %1139 = vset.pattern.permute.xlu0 0
    %1140 = vperm.xlu0 %1139, %v244
    %v1141 = vpop.permute.xlu0 %1140
    %1142 = vset.pattern.permute.xlu0 0
    %1143 = vperm.xlu0 %1142, %v245
    %v1144 = vpop.permute.xlu0 %1143
    %1145 = vset.pattern.permute.xlu0 0
    %1146 = vperm.xlu0 %1145, %v246
    %v1147 = vpop.permute.xlu0 %1146
    %1148 = vset.pattern.permute.xlu0 0
    %1149 = vperm.xlu0 %1148, %v247
    %v1150 = vpop.permute.xlu0 %1149
    %1151 = vset.pattern.permute.xlu0 0
    %1152 = vperm.xlu0 %1151, %v248
    %v1153 = vpop.permute.xlu0 %1152
    %1154 = vset.pattern.permute.xlu0 0
    %1155 = vperm.xlu0 %1154, %v249
    %v1156 = vpop.permute.xlu0 %1155
    %1157 = vset.pattern.permute.xlu0 0
    %1158 = vperm.xlu0 %1157, %v250
    %v1159 = vpop.permute.xlu0 %1158
    %1160 = vset.pattern.permute.xlu0 0
    %1161 = vperm.xlu0 %1160, %v251
    %v1162 = vpop.permute.xlu0 %1161
    %1163 = vset.pattern.permute.xlu0 0
    %1164 = vperm.xlu0 %1163, %v252
    %v1165 = vpop.permute.xlu0 %1164
    %1166 = vset.pattern.permute.xlu0 0
    %1167 = vperm.xlu0 %1166, %v253
    %v1168 = vpop.permute.xlu0 %1167
    %1169 = vset.pattern.permute.xlu0 0
    %1170 = vperm.xlu0 %1169, %v254
    %v1171 = vpop.permute.xlu0 %1170
    %1172 = vset.pattern.permute.xlu0 0
    %1173 = vperm.xlu0 %1172, %v255
    %v1174 = vpop.permute.xlu0 %1173
    %1175 = vset.pattern.permute.xlu0 0
    %1176 = vperm.xlu0 %1175, %v256
    %v1177 = vpop.permute.xlu0 %1176
    %1178 = vset.pattern.permute.xlu0 0
    %1179 = vperm.xlu0 %1178, %v257
    %v1180 = vpop.permute.xlu0 %1179
    %1181 = vset.pattern.permute.xlu0 0
    %1182 = vperm.xlu0 %1181, %v258
    %v1183 = vpop.permute.xlu0 %1182
    %1184 = vset.pattern.permute.xlu0 0
    %1185 = vperm.xlu0 %1184, %v259
    %v1186 = vpop.permute.xlu0 %1185
    %1187 = vset.pattern.permute.xlu0 0
    %1188 = vperm.xlu0 %1187, %v260
    %v1189 = vpop.permute.xlu0 %1188
    %1190 = vset.pattern.permute.xlu0 0
    %1191 = vperm.xlu0 %1190, %v261
    %v1192 = vpop.permute.xlu0 %1191
    %1193 = vset.pattern.permute.xlu0 0
    %1194 = vperm.xlu0 %1193, %v262
    %v1195 = vpop.permute.xlu0 %1194
    %1196 = vset.pattern.permute.xlu0 0
    %1197 = vperm.xlu0 %1196, %v263
    %v1198 = vpop.permute.xlu0 %1197
    %1199 = vset.pattern.permute.xlu0 0
    %1200 = vperm.xlu0 %1199, %v264
    %v1201 = vpop.permute.xlu0 %1200
    %1202 = vset.pattern.permute.xlu0 0
    %1203 = vperm.xlu0 %1202, %v265
    %v1204 = vpop.permute.xlu0 %1203
    %1205 = vset.pattern.permute.xlu0 0
    %1206 = vperm.xlu0 %1205, %v266
    %v1207 = vpop.permute.xlu0 %1206
    %1208 = vset.pattern.permute.xlu0 0
    %1209 = vperm.xlu0 %1208, %v267
    %v1210 = vpop.permute.xlu0 %1209
    %1211 = vset.pattern.permute.xlu0 0
    %1212 = vperm.xlu0 %1211, %v268
    %v1213 = vpop.permute.xlu0 %1212
    %1214 = vset.pattern.permute.xlu0 0
    %1215 = vperm.xlu0 %1214, %v269
    %v1216 = vpop.permute.xlu0 %1215
    %1217 = vset.pattern.permute.xlu0 0
    %1218 = vperm.xlu0 %1217, %v270
    %v1219 = vpop.permute.xlu0 %1218
    %1220 = vset.pattern.permute.xlu0 0
    %1221 = vperm.xlu0 %1220, %v271
    %v1222 = vpop.permute.xlu0 %1221
    %1223 = vset.pattern.permute.xlu0 0
    %1224 = vperm.xlu0 %1223, %v272
    %v1225 = vpop.permute.xlu0 %1224
    %1226 = vset.pattern.permute.xlu0 0
    %1227 = vperm.xlu0 %1226, %v273
    %v1228 = vpop.permute.xlu0 %1227
    %1229 = vset.pattern.permute.xlu0 0
    %1230 = vperm.xlu0 %1229, %v274
    %v1231 = vpop.permute.xlu0 %1230
    %1232 = vset.pattern.permute.xlu0 0
    %1233 = vperm.xlu0 %1232, %v275
    %v1234 = vpop.permute.xlu0 %1233
    %vm1235 = vcmp.eq.s32.totalorder %v277, %v469
    %vm1236 = vcmp.eq.s32.totalorder %v277, %v472
    %vm1237 = vcmp.eq.s32.totalorder %v277, %v475
    %vm1238 = vcmp.eq.s32.totalorder %v277, %v478
    %vm1239 = vcmp.eq.s32.totalorder %v277, %v481
    %vm1240 = vcmp.eq.s32.totalorder %v277, %v484
    %vm1241 = vcmp.eq.s32.totalorder %v277, %v487
    %vm1242 = vcmp.eq.s32.totalorder %v277, %v490
    %vm1243 = vcmp.eq.s32.totalorder %v277, %v493
    %vm1244 = vcmp.eq.s32.totalorder %v277, %v496
    %vm1245 = vcmp.eq.s32.totalorder %v277, %v499
    %vm1246 = vcmp.eq.s32.totalorder %v277, %v502
    %vm1247 = vcmp.eq.s32.totalorder %v277, %v505
    %vm1248 = vcmp.eq.s32.totalorder %v277, %v508
    %vm1249 = vcmp.eq.s32.totalorder %v277, %v511
    %vm1250 = vcmp.eq.s32.totalorder %v277, %v514
    %vm1251 = vcmp.eq.s32.totalorder %v277, %v517
    %vm1252 = vcmp.eq.s32.totalorder %v277, %v520
    %vm1253 = vcmp.eq.s32.totalorder %v277, %v523
    %vm1254 = vcmp.eq.s32.totalorder %v277, %v526
    %vm1255 = vcmp.eq.s32.totalorder %v277, %v529
    %vm1256 = vcmp.eq.s32.totalorder %v277, %v532
    %vm1257 = vcmp.eq.s32.totalorder %v277, %v535
    %vm1258 = vcmp.eq.s32.totalorder %v277, %v538
    %vm1259 = vcmp.eq.s32.totalorder %v277, %v541
    %vm1260 = vcmp.eq.s32.totalorder %v277, %v544
    %vm1261 = vcmp.eq.s32.totalorder %v277, %v547
    %vm1262 = vcmp.eq.s32.totalorder %v277, %v550
    %vm1263 = vcmp.eq.s32.totalorder %v277, %v553
    %vm1264 = vcmp.eq.s32.totalorder %v277, %v556
    %vm1265 = vcmp.eq.s32.totalorder %v277, %v559
    %vm1266 = vcmp.eq.s32.totalorder %v277, %v562
    %vm1267 = vcmp.eq.s32.totalorder %v277, %v565
    %vm1268 = vcmp.eq.s32.totalorder %v277, %v568
    %vm1269 = vcmp.eq.s32.totalorder %v277, %v571
    %vm1270 = vcmp.eq.s32.totalorder %v277, %v574
    %vm1271 = vcmp.eq.s32.totalorder %v277, %v577
    %vm1272 = vcmp.eq.s32.totalorder %v277, %v580
    %vm1273 = vcmp.eq.s32.totalorder %v277, %v583
    %vm1274 = vcmp.eq.s32.totalorder %v277, %v586
    %vm1275 = vcmp.eq.s32.totalorder %v277, %v589
    %vm1276 = vcmp.eq.s32.totalorder %v277, %v592
    %vm1277 = vcmp.eq.s32.totalorder %v277, %v595
    %vm1278 = vcmp.eq.s32.totalorder %v277, %v598
    %vm1279 = vcmp.eq.s32.totalorder %v277, %v601
    %vm1280 = vcmp.eq.s32.totalorder %v277, %v604
    %vm1281 = vcmp.eq.s32.totalorder %v277, %v607
    %vm1282 = vcmp.eq.s32.totalorder %v277, %v610
    %vm1283 = vcmp.eq.s32.totalorder %v277, %v613
    %vm1284 = vcmp.eq.s32.totalorder %v277, %v616
    %vm1285 = vcmp.eq.s32.totalorder %v277, %v619
    %vm1286 = vcmp.eq.s32.totalorder %v277, %v622
    %vm1287 = vcmp.eq.s32.totalorder %v277, %v625
    %vm1288 = vcmp.eq.s32.totalorder %v277, %v628
    %vm1289 = vcmp.eq.s32.totalorder %v277, %v631
    %vm1290 = vcmp.eq.s32.totalorder %v277, %v634
    %vm1291 = vcmp.eq.s32.totalorder %v277, %v637
    %vm1292 = vcmp.eq.s32.totalorder %v277, %v640
    %vm1293 = vcmp.eq.s32.totalorder %v277, %v643
    %vm1294 = vcmp.eq.s32.totalorder %v277, %v646
    %vm1295 = vcmp.eq.s32.totalorder %v277, %v649
    %vm1296 = vcmp.eq.s32.totalorder %v277, %v652
    %vm1297 = vcmp.eq.s32.totalorder %v277, %v655
    %vm1298 = vcmp.eq.s32.totalorder %v277, %v658
    %vm1299 = vcmp.eq.s32.totalorder %v277, %v661
    %vm1300 = vcmp.eq.s32.totalorder %v277, %v664
    %vm1301 = vcmp.eq.s32.totalorder %v277, %v667
    %vm1302 = vcmp.eq.s32.totalorder %v277, %v670
    %vm1303 = vcmp.eq.s32.totalorder %v277, %v673
    %vm1304 = vcmp.eq.s32.totalorder %v277, %v676
    %vm1305 = vcmp.eq.s32.totalorder %v277, %v679
    %vm1306 = vcmp.eq.s32.totalorder %v277, %v682
    %vm1307 = vcmp.eq.s32.totalorder %v277, %v685
    %vm1308 = vcmp.eq.s32.totalorder %v277, %v688
    %vm1309 = vcmp.eq.s32.totalorder %v277, %v691
    %vm1310 = vcmp.eq.s32.totalorder %v277, %v694
    %vm1311 = vcmp.eq.s32.totalorder %v277, %v697
    %vm1312 = vcmp.eq.s32.totalorder %v277, %v700
    %vm1313 = vcmp.eq.s32.totalorder %v277, %v703
    %vm1314 = vcmp.eq.s32.totalorder %v277, %v706
    %vm1315 = vcmp.eq.s32.totalorder %v277, %v709
    %vm1316 = vcmp.eq.s32.totalorder %v277, %v712
    %vm1317 = vcmp.eq.s32.totalorder %v277, %v715
    %vm1318 = vcmp.eq.s32.totalorder %v277, %v718
    %vm1319 = vcmp.eq.s32.totalorder %v277, %v721
    %vm1320 = vcmp.eq.s32.totalorder %v277, %v724
    %vm1321 = vcmp.eq.s32.totalorder %v277, %v727
    %vm1322 = vcmp.eq.s32.totalorder %v277, %v730
    %vm1323 = vcmp.eq.s32.totalorder %v277, %v733
    %vm1324 = vcmp.eq.s32.totalorder %v277, %v736
    %vm1325 = vcmp.eq.s32.totalorder %v277, %v739
    %vm1326 = vcmp.eq.s32.totalorder %v277, %v742
    %vm1327 = vcmp.eq.s32.totalorder %v277, %v745
    %vm1328 = vcmp.eq.s32.totalorder %v277, %v748
    %vm1329 = vcmp.eq.s32.totalorder %v277, %v751
    %vm1330 = vcmp.eq.s32.totalorder %v277, %v754
    %vm1331 = vcmp.eq.s32.totalorder %v277, %v757
    %vm1332 = vcmp.eq.s32.totalorder %v277, %v760
    %vm1333 = vcmp.eq.s32.totalorder %v277, %v763
    %vm1334 = vcmp.eq.s32.totalorder %v277, %v766
    %vm1335 = vcmp.eq.s32.totalorder %v277, %v769
    %vm1336 = vcmp.eq.s32.totalorder %v277, %v772
    %vm1337 = vcmp.eq.s32.totalorder %v277, %v775
    %vm1338 = vcmp.eq.s32.totalorder %v277, %v778
    %vm1339 = vcmp.eq.s32.totalorder %v277, %v781
    %vm1340 = vcmp.eq.s32.totalorder %v277, %v784
    %vm1341 = vcmp.eq.s32.totalorder %v277, %v787
    %vm1342 = vcmp.eq.s32.totalorder %v277, %v790
    %vm1343 = vcmp.eq.s32.totalorder %v277, %v793
    %vm1344 = vcmp.eq.s32.totalorder %v277, %v796
    %vm1345 = vcmp.eq.s32.totalorder %v277, %v799
    %vm1346 = vcmp.eq.s32.totalorder %v277, %v802
    %vm1347 = vcmp.eq.s32.totalorder %v277, %v805
    %vm1348 = vcmp.eq.s32.totalorder %v277, %v808
    %vm1349 = vcmp.eq.s32.totalorder %v277, %v811
    %vm1350 = vcmp.eq.s32.totalorder %v277, %v814
    %vm1351 = vcmp.eq.s32.totalorder %v277, %v817
    %vm1352 = vcmp.eq.s32.totalorder %v277, %v820
    %vm1353 = vcmp.eq.s32.totalorder %v277, %v823
    %vm1354 = vcmp.eq.s32.totalorder %v277, %v826
    %vm1355 = vcmp.eq.s32.totalorder %v277, %v829
    %vm1356 = vcmp.eq.s32.totalorder %v277, %v832
    %vm1357 = vcmp.eq.s32.totalorder %v277, %v835
    %vm1358 = vcmp.eq.s32.totalorder %v277, %v838
    %vm1359 = vcmp.eq.s32.totalorder %v277, %v841
    %vm1360 = vcmp.eq.s32.totalorder %v277, %v844
    %vm1361 = vcmp.eq.s32.totalorder %v277, %v847
    %vm1362 = vcmp.eq.s32.totalorder %v277, %v850
    %vm1363 = vcmp.eq.s32.totalorder %v277, %v853
    %vm1364 = vcmp.eq.s32.totalorder %v277, %v856
    %vm1365 = vcmp.eq.s32.totalorder %v277, %v859
    %vm1366 = vcmp.eq.s32.totalorder %v277, %v862
    %vm1367 = vcmp.eq.s32.totalorder %v277, %v865
    %vm1368 = vcmp.eq.s32.totalorder %v277, %v868
    %vm1369 = vcmp.eq.s32.totalorder %v277, %v871
    %vm1370 = vcmp.eq.s32.totalorder %v277, %v874
    %vm1371 = vcmp.eq.s32.totalorder %v277, %v877
    %vm1372 = vcmp.eq.s32.totalorder %v277, %v880
    %vm1373 = vcmp.eq.s32.totalorder %v277, %v883
    %vm1374 = vcmp.eq.s32.totalorder %v277, %v886
    %vm1375 = vcmp.eq.s32.totalorder %v277, %v889
    %vm1376 = vcmp.eq.s32.totalorder %v277, %v892
    %vm1377 = vcmp.eq.s32.totalorder %v277, %v895
    %vm1378 = vcmp.eq.s32.totalorder %v277, %v898
    %vm1379 = vcmp.eq.s32.totalorder %v277, %v901
    %vm1380 = vcmp.eq.s32.totalorder %v277, %v904
    %vm1381 = vcmp.eq.s32.totalorder %v277, %v907
    %vm1382 = vcmp.eq.s32.totalorder %v277, %v910
    %vm1383 = vcmp.eq.s32.totalorder %v277, %v913
    %vm1384 = vcmp.eq.s32.totalorder %v277, %v916
    %vm1385 = vcmp.eq.s32.totalorder %v277, %v919
    %vm1386 = vcmp.eq.s32.totalorder %v277, %v922
    %vm1387 = vcmp.eq.s32.totalorder %v277, %v925
    %vm1388 = vcmp.eq.s32.totalorder %v277, %v928
    %vm1389 = vcmp.eq.s32.totalorder %v277, %v931
    %vm1390 = vcmp.eq.s32.totalorder %v277, %v934
    %vm1391 = vcmp.eq.s32.totalorder %v277, %v937
    %vm1392 = vcmp.eq.s32.totalorder %v277, %v940
    %vm1393 = vcmp.eq.s32.totalorder %v277, %v943
    %vm1394 = vcmp.eq.s32.totalorder %v277, %v946
    %vm1395 = vcmp.eq.s32.totalorder %v277, %v949
    %vm1396 = vcmp.eq.s32.totalorder %v277, %v952
    %vm1397 = vcmp.eq.s32.totalorder %v277, %v955
    %vm1398 = vcmp.eq.s32.totalorder %v277, %v958
    %vm1399 = vcmp.eq.s32.totalorder %v277, %v961
    %vm1400 = vcmp.eq.s32.totalorder %v277, %v964
    %vm1401 = vcmp.eq.s32.totalorder %v277, %v967
    %vm1402 = vcmp.eq.s32.totalorder %v277, %v970
    %vm1403 = vcmp.eq.s32.totalorder %v277, %v973
    %vm1404 = vcmp.eq.s32.totalorder %v277, %v976
    %vm1405 = vcmp.eq.s32.totalorder %v277, %v979
    %vm1406 = vcmp.eq.s32.totalorder %v277, %v982
    %vm1407 = vcmp.eq.s32.totalorder %v277, %v985
    %vm1408 = vcmp.eq.s32.totalorder %v277, %v988
    %vm1409 = vcmp.eq.s32.totalorder %v277, %v991
    %vm1410 = vcmp.eq.s32.totalorder %v277, %v994
    %vm1411 = vcmp.eq.s32.totalorder %v277, %v997
    %vm1412 = vcmp.eq.s32.totalorder %v277, %v1000
    %vm1413 = vcmp.eq.s32.totalorder %v277, %v1003
    %vm1414 = vcmp.eq.s32.totalorder %v277, %v1006
    %vm1415 = vcmp.eq.s32.totalorder %v277, %v1009
    %vm1416 = vcmp.eq.s32.totalorder %v277, %v1012
    %vm1417 = vcmp.eq.s32.totalorder %v277, %v1015
    %vm1418 = vcmp.eq.s32.totalorder %v277, %v1018
    %vm1419 = vcmp.eq.s32.totalorder %v277, %v1021
    %vm1420 = vcmp.eq.s32.totalorder %v277, %v1024
    %vm1421 = vcmp.eq.s32.totalorder %v277, %v1027
    %vm1422 = vcmp.eq.s32.totalorder %v277, %v1030
    %vm1423 = vcmp.eq.s32.totalorder %v277, %v1033
    %vm1424 = vcmp.eq.s32.totalorder %v277, %v1036
    %vm1425 = vcmp.eq.s32.totalorder %v277, %v1039
    %vm1426 = vcmp.eq.s32.totalorder %v277, %v1042
    %vm1427 = vcmp.eq.s32.totalorder %v277, %v1045
    %vm1428 = vcmp.eq.s32.totalorder %v277, %v1048
    %vm1429 = vcmp.eq.s32.totalorder %v277, %v1051
    %vm1430 = vcmp.eq.s32.totalorder %v277, %v1054
    %vm1431 = vcmp.eq.s32.totalorder %v277, %v1057
    %vm1432 = vcmp.eq.s32.totalorder %v277, %v1060
    %vm1433 = vcmp.eq.s32.totalorder %v277, %v1063
    %vm1434 = vcmp.eq.s32.totalorder %v277, %v1066
    %vm1435 = vcmp.eq.s32.totalorder %v277, %v1069
    %vm1436 = vcmp.eq.s32.totalorder %v277, %v1072
    %vm1437 = vcmp.eq.s32.totalorder %v277, %v1075
    %vm1438 = vcmp.eq.s32.totalorder %v277, %v1078
    %vm1439 = vcmp.eq.s32.totalorder %v277, %v1081
    %vm1440 = vcmp.eq.s32.totalorder %v277, %v1084
    %vm1441 = vcmp.eq.s32.totalorder %v277, %v1087
    %vm1442 = vcmp.eq.s32.totalorder %v277, %v1090
    %vm1443 = vcmp.eq.s32.totalorder %v277, %v1093
    %vm1444 = vcmp.eq.s32.totalorder %v277, %v1096
    %vm1445 = vcmp.eq.s32.totalorder %v277, %v1099
    %vm1446 = vcmp.eq.s32.totalorder %v277, %v1102
    %vm1447 = vcmp.eq.s32.totalorder %v277, %v1105
    %vm1448 = vcmp.eq.s32.totalorder %v277, %v1108
    %vm1449 = vcmp.eq.s32.totalorder %v277, %v1111
    %vm1450 = vcmp.eq.s32.totalorder %v277, %v1114
    %vm1451 = vcmp.eq.s32.totalorder %v277, %v1117
    %vm1452 = vcmp.eq.s32.totalorder %v277, %v1120
    %vm1453 = vcmp.eq.s32.totalorder %v277, %v1123
    %vm1454 = vcmp.eq.s32.totalorder %v277, %v1126
    %vm1455 = vcmp.eq.s32.totalorder %v277, %v1129
    %vm1456 = vcmp.eq.s32.totalorder %v277, %v1132
    %vm1457 = vcmp.eq.s32.totalorder %v277, %v1135
    %vm1458 = vcmp.eq.s32.totalorder %v277, %v1138
    %vm1459 = vcmp.eq.s32.totalorder %v277, %v1141
    %vm1460 = vcmp.eq.s32.totalorder %v277, %v1144
    %vm1461 = vcmp.eq.s32.totalorder %v277, %v1147
    %vm1462 = vcmp.eq.s32.totalorder %v277, %v1150
    %vm1463 = vcmp.eq.s32.totalorder %v277, %v1153
    %vm1464 = vcmp.eq.s32.totalorder %v277, %v1156
    %vm1465 = vcmp.eq.s32.totalorder %v277, %v1159
    %vm1466 = vcmp.eq.s32.totalorder %v277, %v1162
    %vm1467 = vcmp.eq.s32.totalorder %v277, %v1165
    %vm1468 = vcmp.eq.s32.totalorder %v277, %v1168
    %vm1469 = vcmp.eq.s32.totalorder %v277, %v1171
    %vm1470 = vcmp.eq.s32.totalorder %v277, %v1174
    %vm1471 = vcmp.eq.s32.totalorder %v277, %v1177
    %vm1472 = vcmp.eq.s32.totalorder %v277, %v1180
    %vm1473 = vcmp.eq.s32.totalorder %v277, %v1183
    %vm1474 = vcmp.eq.s32.totalorder %v277, %v1186
    %vm1475 = vcmp.eq.s32.totalorder %v277, %v1189
    %vm1476 = vcmp.eq.s32.totalorder %v277, %v1192
    %vm1477 = vcmp.eq.s32.totalorder %v277, %v1195
    %vm1478 = vcmp.eq.s32.totalorder %v277, %v1198
    %vm1479 = vcmp.eq.s32.totalorder %v277, %v1201
    %vm1480 = vcmp.eq.s32.totalorder %v277, %v1204
    %vm1481 = vcmp.eq.s32.totalorder %v277, %v1207
    %vm1482 = vcmp.eq.s32.totalorder %v277, %v1210
    %vm1483 = vcmp.eq.s32.totalorder %v277, %v1213
    %vm1484 = vcmp.eq.s32.totalorder %v277, %v1216
    %vm1485 = vcmp.eq.s32.totalorder %v277, %v1219
    %vm1486 = vcmp.eq.s32.totalorder %v277, %v1222
    %vm1487 = vcmp.eq.s32.totalorder %v277, %v1225
    %vm1488 = vcmp.eq.s32.totalorder %v277, %v1228
    %vm1489 = vcmp.eq.s32.totalorder %v277, %v1231
    %vm1490 = vcmp.eq.s32.totalorder %v277, %v1234
    %v1491 = vsel %vm1235, 1, 0
    %v1492 = vsel %vm1236, 1, 0
    %v1493 = vsel %vm1237, 1, 0
    %v1494 = vsel %vm1238, 1, 0
    %v1495 = vsel %vm1239, 1, 0
    %v1496 = vsel %vm1240, 1, 0
    %v1497 = vsel %vm1241, 1, 0
    %v1498 = vsel %vm1242, 1, 0
    %v1499 = vsel %vm1243, 1, 0
    %v1500 = vsel %vm1244, 1, 0
    %v1501 = vsel %vm1245, 1, 0
    %v1502 = vsel %vm1246, 1, 0
    %v1503 = vsel %vm1247, 1, 0
    %v1504 = vsel %vm1248, 1, 0
    %v1505 = vsel %vm1249, 1, 0
    %v1506 = vsel %vm1250, 1, 0
    %v1507 = vsel %vm1251, 1, 0
    %v1508 = vsel %vm1252, 1, 0
    %v1509 = vsel %vm1253, 1, 0
    %v1510 = vsel %vm1254, 1, 0
    %v1511 = vsel %vm1255, 1, 0
    %v1512 = vsel %vm1256, 1, 0
    %v1513 = vsel %vm1257, 1, 0
    %v1514 = vsel %vm1258, 1, 0
    %v1515 = vsel %vm1259, 1, 0
    %v1516 = vsel %vm1260, 1, 0
    %v1517 = vsel %vm1261, 1, 0
    %v1518 = vsel %vm1262, 1, 0
    %v1519 = vsel %vm1263, 1, 0
    %v1520 = vsel %vm1264, 1, 0
    %v1521 = vsel %vm1265, 1, 0
    %v1522 = vsel %vm1266, 1, 0
    %v1523 = vsel %vm1267, 1, 0
    %v1524 = vsel %vm1268, 1, 0
    %v1525 = vsel %vm1269, 1, 0
    %v1526 = vsel %vm1270, 1, 0
    %v1527 = vsel %vm1271, 1, 0
    %v1528 = vsel %vm1272, 1, 0
    %v1529 = vsel %vm1273, 1, 0
    %v1530 = vsel %vm1274, 1, 0
    %v1531 = vsel %vm1275, 1, 0
    %v1532 = vsel %vm1276, 1, 0
    %v1533 = vsel %vm1277, 1, 0
    %v1534 = vsel %vm1278, 1, 0
    %v1535 = vsel %vm1279, 1, 0
    %v1536 = vsel %vm1280, 1, 0
    %v1537 = vsel %vm1281, 1, 0
    %v1538 = vsel %vm1282, 1, 0
    %v1539 = vsel %vm1283, 1, 0
    %v1540 = vsel %vm1284, 1, 0
    %v1541 = vsel %vm1285, 1, 0
    %v1542 = vsel %vm1286, 1, 0
    %v1543 = vsel %vm1287, 1, 0
    %v1544 = vsel %vm1288, 1, 0
    %v1545 = vsel %vm1289, 1, 0
    %v1546 = vsel %vm1290, 1, 0
    %v1547 = vsel %vm1291, 1, 0
    %v1548 = vsel %vm1292, 1, 0
    %v1549 = vsel %vm1293, 1, 0
    %v1550 = vsel %vm1294, 1, 0
    %v1551 = vsel %vm1295, 1, 0
    %v1552 = vsel %vm1296, 1, 0
    %v1553 = vsel %vm1297, 1, 0
    %v1554 = vsel %vm1298, 1, 0
    %v1555 = vsel %vm1299, 1, 0
    %v1556 = vsel %vm1300, 1, 0
    %v1557 = vsel %vm1301, 1, 0
    %v1558 = vsel %vm1302, 1, 0
    %v1559 = vsel %vm1303, 1, 0
    %v1560 = vsel %vm1304, 1, 0
    %v1561 = vsel %vm1305, 1, 0
    %v1562 = vsel %vm1306, 1, 0
    %v1563 = vsel %vm1307, 1, 0
    %v1564 = vsel %vm1308, 1, 0
    %v1565 = vsel %vm1309, 1, 0
    %v1566 = vsel %vm1310, 1, 0
    %v1567 = vsel %vm1311, 1, 0
    %v1568 = vsel %vm1312, 1, 0
    %v1569 = vsel %vm1313, 1, 0
    %v1570 = vsel %vm1314, 1, 0
    %v1571 = vsel %vm1315, 1, 0
    %v1572 = vsel %vm1316, 1, 0
    %v1573 = vsel %vm1317, 1, 0
    %v1574 = vsel %vm1318, 1, 0
    %v1575 = vsel %vm1319, 1, 0
    %v1576 = vsel %vm1320, 1, 0
    %v1577 = vsel %vm1321, 1, 0
    %v1578 = vsel %vm1322, 1, 0
    %v1579 = vsel %vm1323, 1, 0
    %v1580 = vsel %vm1324, 1, 0
    %v1581 = vsel %vm1325, 1, 0
    %v1582 = vsel %vm1326, 1, 0
    %v1583 = vsel %vm1327, 1, 0
    %v1584 = vsel %vm1328, 1, 0
    %v1585 = vsel %vm1329, 1, 0
    %v1586 = vsel %vm1330, 1, 0
    %v1587 = vsel %vm1331, 1, 0
    %v1588 = vsel %vm1332, 1, 0
    %v1589 = vsel %vm1333, 1, 0
    %v1590 = vsel %vm1334, 1, 0
    %v1591 = vsel %vm1335, 1, 0
    %v1592 = vsel %vm1336, 1, 0
    %v1593 = vsel %vm1337, 1, 0
    %v1594 = vsel %vm1338, 1, 0
    %v1595 = vsel %vm1339, 1, 0
    %v1596 = vsel %vm1340, 1, 0
    %v1597 = vsel %vm1341, 1, 0
    %v1598 = vsel %vm1342, 1, 0
    %v1599 = vsel %vm1343, 1, 0
    %v1600 = vsel %vm1344, 1, 0
    %v1601 = vsel %vm1345, 1, 0
    %v1602 = vsel %vm1346, 1, 0
    %v1603 = vsel %vm1347, 1, 0
    %v1604 = vsel %vm1348, 1, 0
    %v1605 = vsel %vm1349, 1, 0
    %v1606 = vsel %vm1350, 1, 0
    %v1607 = vsel %vm1351, 1, 0
    %v1608 = vsel %vm1352, 1, 0
    %v1609 = vsel %vm1353, 1, 0
    %v1610 = vsel %vm1354, 1, 0
    %v1611 = vsel %vm1355, 1, 0
    %v1612 = vsel %vm1356, 1, 0
    %v1613 = vsel %vm1357, 1, 0
    %v1614 = vsel %vm1358, 1, 0
    %v1615 = vsel %vm1359, 1, 0
    %v1616 = vsel %vm1360, 1, 0
    %v1617 = vsel %vm1361, 1, 0
    %v1618 = vsel %vm1362, 1, 0
    %v1619 = vsel %vm1363, 1, 0
    %v1620 = vsel %vm1364, 1, 0
    %v1621 = vsel %vm1365, 1, 0
    %v1622 = vsel %vm1366, 1, 0
    %v1623 = vsel %vm1367, 1, 0
    %v1624 = vsel %vm1368, 1, 0
    %v1625 = vsel %vm1369, 1, 0
    %v1626 = vsel %vm1370, 1, 0
    %v1627 = vsel %vm1371, 1, 0
    %v1628 = vsel %vm1372, 1, 0
    %v1629 = vsel %vm1373, 1, 0
    %v1630 = vsel %vm1374, 1, 0
    %v1631 = vsel %vm1375, 1, 0
    %v1632 = vsel %vm1376, 1, 0
    %v1633 = vsel %vm1377, 1, 0
    %v1634 = vsel %vm1378, 1, 0
    %v1635 = vsel %vm1379, 1, 0
    %v1636 = vsel %vm1380, 1, 0
    %v1637 = vsel %vm1381, 1, 0
    %v1638 = vsel %vm1382, 1, 0
    %v1639 = vsel %vm1383, 1, 0
    %v1640 = vsel %vm1384, 1, 0
    %v1641 = vsel %vm1385, 1, 0
    %v1642 = vsel %vm1386, 1, 0
    %v1643 = vsel %vm1387, 1, 0
    %v1644 = vsel %vm1388, 1, 0
    %v1645 = vsel %vm1389, 1, 0
    %v1646 = vsel %vm1390, 1, 0
    %v1647 = vsel %vm1391, 1, 0
    %v1648 = vsel %vm1392, 1, 0
    %v1649 = vsel %vm1393, 1, 0
    %v1650 = vsel %vm1394, 1, 0
    %v1651 = vsel %vm1395, 1, 0
    %v1652 = vsel %vm1396, 1, 0
    %v1653 = vsel %vm1397, 1, 0
    %v1654 = vsel %vm1398, 1, 0
    %v1655 = vsel %vm1399, 1, 0
    %v1656 = vsel %vm1400, 1, 0
    %v1657 = vsel %vm1401, 1, 0
    %v1658 = vsel %vm1402, 1, 0
    %v1659 = vsel %vm1403, 1, 0
    %v1660 = vsel %vm1404, 1, 0
    %v1661 = vsel %vm1405, 1, 0
    %v1662 = vsel %vm1406, 1, 0
    %v1663 = vsel %vm1407, 1, 0
    %v1664 = vsel %vm1408, 1, 0
    %v1665 = vsel %vm1409, 1, 0
    %v1666 = vsel %vm1410, 1, 0
    %v1667 = vsel %vm1411, 1, 0
    %v1668 = vsel %vm1412, 1, 0
    %v1669 = vsel %vm1413, 1, 0
    %v1670 = vsel %vm1414, 1, 0
    %v1671 = vsel %vm1415, 1, 0
    %v1672 = vsel %vm1416, 1, 0
    %v1673 = vsel %vm1417, 1, 0
    %v1674 = vsel %vm1418, 1, 0
    %v1675 = vsel %vm1419, 1, 0
    %v1676 = vsel %vm1420, 1, 0
    %v1677 = vsel %vm1421, 1, 0
    %v1678 = vsel %vm1422, 1, 0
    %v1679 = vsel %vm1423, 1, 0
    %v1680 = vsel %vm1424, 1, 0
    %v1681 = vsel %vm1425, 1, 0
    %v1682 = vsel %vm1426, 1, 0
    %v1683 = vsel %vm1427, 1, 0
    %v1684 = vsel %vm1428, 1, 0
    %v1685 = vsel %vm1429, 1, 0
    %v1686 = vsel %vm1430, 1, 0
    %v1687 = vsel %vm1431, 1, 0
    %v1688 = vsel %vm1432, 1, 0
    %v1689 = vsel %vm1433, 1, 0
    %v1690 = vsel %vm1434, 1, 0
    %v1691 = vsel %vm1435, 1, 0
    %v1692 = vsel %vm1436, 1, 0
    %v1693 = vsel %vm1437, 1, 0
    %v1694 = vsel %vm1438, 1, 0
    %v1695 = vsel %vm1439, 1, 0
    %v1696 = vsel %vm1440, 1, 0
    %v1697 = vsel %vm1441, 1, 0
    %v1698 = vsel %vm1442, 1, 0
    %v1699 = vsel %vm1443, 1, 0
    %v1700 = vsel %vm1444, 1, 0
    %v1701 = vsel %vm1445, 1, 0
    %v1702 = vsel %vm1446, 1, 0
    %v1703 = vsel %vm1447, 1, 0
    %v1704 = vsel %vm1448, 1, 0
    %v1705 = vsel %vm1449, 1, 0
    %v1706 = vsel %vm1450, 1, 0
    %v1707 = vsel %vm1451, 1, 0
    %v1708 = vsel %vm1452, 1, 0
    %v1709 = vsel %vm1453, 1, 0
    %v1710 = vsel %vm1454, 1, 0
    %v1711 = vsel %vm1455, 1, 0
    %v1712 = vsel %vm1456, 1, 0
    %v1713 = vsel %vm1457, 1, 0
    %v1714 = vsel %vm1458, 1, 0
    %v1715 = vsel %vm1459, 1, 0
    %v1716 = vsel %vm1460, 1, 0
    %v1717 = vsel %vm1461, 1, 0
    %v1718 = vsel %vm1462, 1, 0
    %v1719 = vsel %vm1463, 1, 0
    %v1720 = vsel %vm1464, 1, 0
    %v1721 = vsel %vm1465, 1, 0
    %v1722 = vsel %vm1466, 1, 0
    %v1723 = vsel %vm1467, 1, 0
    %v1724 = vsel %vm1468, 1, 0
    %v1725 = vsel %vm1469, 1, 0
    %v1726 = vsel %vm1470, 1, 0
    %v1727 = vsel %vm1471, 1, 0
    %v1728 = vsel %vm1472, 1, 0
    %v1729 = vsel %vm1473, 1, 0
    %v1730 = vsel %vm1474, 1, 0
    %v1731 = vsel %vm1475, 1, 0
    %v1732 = vsel %vm1476, 1, 0
    %v1733 = vsel %vm1477, 1, 0
    %v1734 = vsel %vm1478, 1, 0
    %v1735 = vsel %vm1479, 1, 0
    %v1736 = vsel %vm1480, 1, 0
    %v1737 = vsel %vm1481, 1, 0
    %v1738 = vsel %vm1482, 1, 0
    %v1739 = vsel %vm1483, 1, 0
    %v1740 = vsel %vm1484, 1, 0
    %v1741 = vsel %vm1485, 1, 0
    %v1742 = vsel %vm1486, 1, 0
    %v1743 = vsel %vm1487, 1, 0
    %v1744 = vsel %vm1488, 1, 0
    %v1745 = vsel %vm1489, 1, 0
    %v1746 = vsel %vm1490, 1, 0
    %v1747 = vcvt.s32.f32 %v1491
    %v1748 = vcvt.s32.f32 %v1492
    %v1749 = vcvt.s32.f32 %v1493
    %v1750 = vcvt.s32.f32 %v1494
    %v1751 = vcvt.s32.f32 %v1495
    %v1752 = vcvt.s32.f32 %v1496
    %v1753 = vcvt.s32.f32 %v1497
    %v1754 = vcvt.s32.f32 %v1498
    %v1755 = vcvt.s32.f32 %v1499
    %v1756 = vcvt.s32.f32 %v1500
    %v1757 = vcvt.s32.f32 %v1501
    %v1758 = vcvt.s32.f32 %v1502
    %v1759 = vcvt.s32.f32 %v1503
    %v1760 = vcvt.s32.f32 %v1504
    %v1761 = vcvt.s32.f32 %v1505
    %v1762 = vcvt.s32.f32 %v1506
    %v1763 = vcvt.s32.f32 %v1507
    %v1764 = vcvt.s32.f32 %v1508
    %v1765 = vcvt.s32.f32 %v1509
    %v1766 = vcvt.s32.f32 %v1510
    %v1767 = vcvt.s32.f32 %v1511
    %v1768 = vcvt.s32.f32 %v1512
    %v1769 = vcvt.s32.f32 %v1513
    %v1770 = vcvt.s32.f32 %v1514
    %v1771 = vcvt.s32.f32 %v1515
    %v1772 = vcvt.s32.f32 %v1516
    %v1773 = vcvt.s32.f32 %v1517
    %v1774 = vcvt.s32.f32 %v1518
    %v1775 = vcvt.s32.f32 %v1519
    %v1776 = vcvt.s32.f32 %v1520
    %v1777 = vcvt.s32.f32 %v1521
    %v1778 = vcvt.s32.f32 %v1522
    %v1779 = vcvt.s32.f32 %v1523
    %v1780 = vcvt.s32.f32 %v1524
    %v1781 = vcvt.s32.f32 %v1525
    %v1782 = vcvt.s32.f32 %v1526
    %v1783 = vcvt.s32.f32 %v1527
    %v1784 = vcvt.s32.f32 %v1528
    %v1785 = vcvt.s32.f32 %v1529
    %v1786 = vcvt.s32.f32 %v1530
    %v1787 = vcvt.s32.f32 %v1531
    %v1788 = vcvt.s32.f32 %v1532
    %v1789 = vcvt.s32.f32 %v1533
    %v1790 = vcvt.s32.f32 %v1534
    %v1791 = vcvt.s32.f32 %v1535
    %v1792 = vcvt.s32.f32 %v1536
    %v1793 = vcvt.s32.f32 %v1537
    %v1794 = vcvt.s32.f32 %v1538
    %v1795 = vcvt.s32.f32 %v1539
    %v1796 = vcvt.s32.f32 %v1540
    %v1797 = vcvt.s32.f32 %v1541
    %v1798 = vcvt.s32.f32 %v1542
    %v1799 = vcvt.s32.f32 %v1543
    %v1800 = vcvt.s32.f32 %v1544
    %v1801 = vcvt.s32.f32 %v1545
    %v1802 = vcvt.s32.f32 %v1546
    %v1803 = vcvt.s32.f32 %v1547
    %v1804 = vcvt.s32.f32 %v1548
    %v1805 = vcvt.s32.f32 %v1549
    %v1806 = vcvt.s32.f32 %v1550
    %v1807 = vcvt.s32.f32 %v1551
    %v1808 = vcvt.s32.f32 %v1552
    %v1809 = vcvt.s32.f32 %v1553
    %v1810 = vcvt.s32.f32 %v1554
    %v1811 = vcvt.s32.f32 %v1555
    %v1812 = vcvt.s32.f32 %v1556
    %v1813 = vcvt.s32.f32 %v1557
    %v1814 = vcvt.s32.f32 %v1558
    %v1815 = vcvt.s32.f32 %v1559
    %v1816 = vcvt.s32.f32 %v1560
    %v1817 = vcvt.s32.f32 %v1561
    %v1818 = vcvt.s32.f32 %v1562
    %v1819 = vcvt.s32.f32 %v1563
    %v1820 = vcvt.s32.f32 %v1564
    %v1821 = vcvt.s32.f32 %v1565
    %v1822 = vcvt.s32.f32 %v1566
    %v1823 = vcvt.s32.f32 %v1567
    %v1824 = vcvt.s32.f32 %v1568
    %v1825 = vcvt.s32.f32 %v1569
    %v1826 = vcvt.s32.f32 %v1570
    %v1827 = vcvt.s32.f32 %v1571
    %v1828 = vcvt.s32.f32 %v1572
    %v1829 = vcvt.s32.f32 %v1573
    %v1830 = vcvt.s32.f32 %v1574
    %v1831 = vcvt.s32.f32 %v1575
    %v1832 = vcvt.s32.f32 %v1576
    %v1833 = vcvt.s32.f32 %v1577
    %v1834 = vcvt.s32.f32 %v1578
    %v1835 = vcvt.s32.f32 %v1579
    %v1836 = vcvt.s32.f32 %v1580
    %v1837 = vcvt.s32.f32 %v1581
    %v1838 = vcvt.s32.f32 %v1582
    %v1839 = vcvt.s32.f32 %v1583
    %v1840 = vcvt.s32.f32 %v1584
    %v1841 = vcvt.s32.f32 %v1585
    %v1842 = vcvt.s32.f32 %v1586
    %v1843 = vcvt.s32.f32 %v1587
    %v1844 = vcvt.s32.f32 %v1588
    %v1845 = vcvt.s32.f32 %v1589
    %v1846 = vcvt.s32.f32 %v1590
    %v1847 = vcvt.s32.f32 %v1591
    %v1848 = vcvt.s32.f32 %v1592
    %v1849 = vcvt.s32.f32 %v1593
    %v1850 = vcvt.s32.f32 %v1594
    %v1851 = vcvt.s32.f32 %v1595
    %v1852 = vcvt.s32.f32 %v1596
    %v1853 = vcvt.s32.f32 %v1597
    %v1854 = vcvt.s32.f32 %v1598
    %v1855 = vcvt.s32.f32 %v1599
    %v1856 = vcvt.s32.f32 %v1600
    %v1857 = vcvt.s32.f32 %v1601
    %v1858 = vcvt.s32.f32 %v1602
    %v1859 = vcvt.s32.f32 %v1603
    %v1860 = vcvt.s32.f32 %v1604
    %v1861 = vcvt.s32.f32 %v1605
    %v1862 = vcvt.s32.f32 %v1606
    %v1863 = vcvt.s32.f32 %v1607
    %v1864 = vcvt.s32.f32 %v1608
    %v1865 = vcvt.s32.f32 %v1609
    %v1866 = vcvt.s32.f32 %v1610
    %v1867 = vcvt.s32.f32 %v1611
    %v1868 = vcvt.s32.f32 %v1612
    %v1869 = vcvt.s32.f32 %v1613
    %v1870 = vcvt.s32.f32 %v1614
    %v1871 = vcvt.s32.f32 %v1615
    %v1872 = vcvt.s32.f32 %v1616
    %v1873 = vcvt.s32.f32 %v1617
    %v1874 = vcvt.s32.f32 %v1618
    %v1875 = vcvt.s32.f32 %v1619
    %v1876 = vcvt.s32.f32 %v1620
    %v1877 = vcvt.s32.f32 %v1621
    %v1878 = vcvt.s32.f32 %v1622
    %v1879 = vcvt.s32.f32 %v1623
    %v1880 = vcvt.s32.f32 %v1624
    %v1881 = vcvt.s32.f32 %v1625
    %v1882 = vcvt.s32.f32 %v1626
    %v1883 = vcvt.s32.f32 %v1627
    %v1884 = vcvt.s32.f32 %v1628
    %v1885 = vcvt.s32.f32 %v1629
    %v1886 = vcvt.s32.f32 %v1630
    %v1887 = vcvt.s32.f32 %v1631
    %v1888 = vcvt.s32.f32 %v1632
    %v1889 = vcvt.s32.f32 %v1633
    %v1890 = vcvt.s32.f32 %v1634
    %v1891 = vcvt.s32.f32 %v1635
    %v1892 = vcvt.s32.f32 %v1636
    %v1893 = vcvt.s32.f32 %v1637
    %v1894 = vcvt.s32.f32 %v1638
    %v1895 = vcvt.s32.f32 %v1639
    %v1896 = vcvt.s32.f32 %v1640
    %v1897 = vcvt.s32.f32 %v1641
    %v1898 = vcvt.s32.f32 %v1642
    %v1899 = vcvt.s32.f32 %v1643
    %v1900 = vcvt.s32.f32 %v1644
    %v1901 = vcvt.s32.f32 %v1645
    %v1902 = vcvt.s32.f32 %v1646
    %v1903 = vcvt.s32.f32 %v1647
    %v1904 = vcvt.s32.f32 %v1648
    %v1905 = vcvt.s32.f32 %v1649
    %v1906 = vcvt.s32.f32 %v1650
    %v1907 = vcvt.s32.f32 %v1651
    %v1908 = vcvt.s32.f32 %v1652
    %v1909 = vcvt.s32.f32 %v1653
    %v1910 = vcvt.s32.f32 %v1654
    %v1911 = vcvt.s32.f32 %v1655
    %v1912 = vcvt.s32.f32 %v1656
    %v1913 = vcvt.s32.f32 %v1657
    %v1914 = vcvt.s32.f32 %v1658
    %v1915 = vcvt.s32.f32 %v1659
    %v1916 = vcvt.s32.f32 %v1660
    %v1917 = vcvt.s32.f32 %v1661
    %v1918 = vcvt.s32.f32 %v1662
    %v1919 = vcvt.s32.f32 %v1663
    %v1920 = vcvt.s32.f32 %v1664
    %v1921 = vcvt.s32.f32 %v1665
    %v1922 = vcvt.s32.f32 %v1666
    %v1923 = vcvt.s32.f32 %v1667
    %v1924 = vcvt.s32.f32 %v1668
    %v1925 = vcvt.s32.f32 %v1669
    %v1926 = vcvt.s32.f32 %v1670
    %v1927 = vcvt.s32.f32 %v1671
    %v1928 = vcvt.s32.f32 %v1672
    %v1929 = vcvt.s32.f32 %v1673
    %v1930 = vcvt.s32.f32 %v1674
    %v1931 = vcvt.s32.f32 %v1675
    %v1932 = vcvt.s32.f32 %v1676
    %v1933 = vcvt.s32.f32 %v1677
    %v1934 = vcvt.s32.f32 %v1678
    %v1935 = vcvt.s32.f32 %v1679
    %v1936 = vcvt.s32.f32 %v1680
    %v1937 = vcvt.s32.f32 %v1681
    %v1938 = vcvt.s32.f32 %v1682
    %v1939 = vcvt.s32.f32 %v1683
    %v1940 = vcvt.s32.f32 %v1684
    %v1941 = vcvt.s32.f32 %v1685
    %v1942 = vcvt.s32.f32 %v1686
    %v1943 = vcvt.s32.f32 %v1687
    %v1944 = vcvt.s32.f32 %v1688
    %v1945 = vcvt.s32.f32 %v1689
    %v1946 = vcvt.s32.f32 %v1690
    %v1947 = vcvt.s32.f32 %v1691
    %v1948 = vcvt.s32.f32 %v1692
    %v1949 = vcvt.s32.f32 %v1693
    %v1950 = vcvt.s32.f32 %v1694
    %v1951 = vcvt.s32.f32 %v1695
    %v1952 = vcvt.s32.f32 %v1696
    %v1953 = vcvt.s32.f32 %v1697
    %v1954 = vcvt.s32.f32 %v1698
    %v1955 = vcvt.s32.f32 %v1699
    %v1956 = vcvt.s32.f32 %v1700
    %v1957 = vcvt.s32.f32 %v1701
    %v1958 = vcvt.s32.f32 %v1702
    %v1959 = vcvt.s32.f32 %v1703
    %v1960 = vcvt.s32.f32 %v1704
    %v1961 = vcvt.s32.f32 %v1705
    %v1962 = vcvt.s32.f32 %v1706
    %v1963 = vcvt.s32.f32 %v1707
    %v1964 = vcvt.s32.f32 %v1708
    %v1965 = vcvt.s32.f32 %v1709
    %v1966 = vcvt.s32.f32 %v1710
    %v1967 = vcvt.s32.f32 %v1711
    %v1968 = vcvt.s32.f32 %v1712
    %v1969 = vcvt.s32.f32 %v1713
    %v1970 = vcvt.s32.f32 %v1714
    %v1971 = vcvt.s32.f32 %v1715
    %v1972 = vcvt.s32.f32 %v1716
    %v1973 = vcvt.s32.f32 %v1717
    %v1974 = vcvt.s32.f32 %v1718
    %v1975 = vcvt.s32.f32 %v1719
    %v1976 = vcvt.s32.f32 %v1720
    %v1977 = vcvt.s32.f32 %v1721
    %v1978 = vcvt.s32.f32 %v1722
    %v1979 = vcvt.s32.f32 %v1723
    %v1980 = vcvt.s32.f32 %v1724
    %v1981 = vcvt.s32.f32 %v1725
    %v1982 = vcvt.s32.f32 %v1726
    %v1983 = vcvt.s32.f32 %v1727
    %v1984 = vcvt.s32.f32 %v1728
    %v1985 = vcvt.s32.f32 %v1729
    %v1986 = vcvt.s32.f32 %v1730
    %v1987 = vcvt.s32.f32 %v1731
    %v1988 = vcvt.s32.f32 %v1732
    %v1989 = vcvt.s32.f32 %v1733
    %v1990 = vcvt.s32.f32 %v1734
    %v1991 = vcvt.s32.f32 %v1735
    %v1992 = vcvt.s32.f32 %v1736
    %v1993 = vcvt.s32.f32 %v1737
    %v1994 = vcvt.s32.f32 %v1738
    %v1995 = vcvt.s32.f32 %v1739
    %v1996 = vcvt.s32.f32 %v1740
    %v1997 = vcvt.s32.f32 %v1741
    %v1998 = vcvt.s32.f32 %v1742
    %v1999 = vcvt.s32.f32 %v1743
    %v2000 = vcvt.s32.f32 %v1744
    %v2001 = vcvt.s32.f32 %v1745
    %v2002 = vcvt.s32.f32 %v1746
    %v2005 = vcombine.high %v459, %v459
    %v2007 = vunpack.c.l.s4 1966171168
    %v2008 = vunpack.c.0.s8 %v2007
    %v2009 = vlaneseq
    %v2010 = vshrl.u32 %v2009, 7
    %v2011 = vsub.s32 %v2008, %v2010
    %v2012 = vrot.slane %v459, %v2011
    %v2014 = vunpack.c.l.s4 1966171168
    %v2015 = vunpack.c.0.s8 %v2014
    %v2016 = vlaneseq
    %v2017 = vshrl.u32 %v2016, 7
    %v2018 = vsub.s32 %v2015, %v2017
    %v2019 = vrot.slane %v2005, %v2018
    %v2020 = vcombine.high %v2012, %v2012
    %v2021 = vcombine.high %v2019, %v2019
    %v2023 = vunpack.c.l.s4 1966171168
    %v2024 = vunpack.c.0.s8 %v2023
    %v2025 = vlaneseq
    %v2026 = vshrl.u32 %v2025, 7
    %v2027 = vsub.s32 %v2024, %v2026
    %v2028 = vrot.slane %v2012, %v2027
    %v2030 = vunpack.c.l.s4 1966171168
    %v2031 = vunpack.c.0.s8 %v2030
    %v2032 = vlaneseq
    %v2033 = vshrl.u32 %v2032, 7
    %v2034 = vsub.s32 %v2031, %v2033
    %v2035 = vrot.slane %v2019, %v2034
    %v2037 = vunpack.c.l.s4 1966171168
    %v2038 = vunpack.c.0.s8 %v2037
    %v2039 = vlaneseq
    %v2040 = vshrl.u32 %v2039, 7
    %v2041 = vsub.s32 %v2038, %v2040
    %v2042 = vrot.slane %v2020, %v2041
    %v2044 = vunpack.c.l.s4 1966171168
    %v2045 = vunpack.c.0.s8 %v2044
    %v2046 = vlaneseq
    %v2047 = vshrl.u32 %v2046, 7
    %v2048 = vsub.s32 %v2045, %v2047
    %v2049 = vrot.slane %v2021, %v2048
    %v2050 = vcombine.high %v2028, %v2028
    %v2051 = vcombine.high %v2035, %v2035
    %v2052 = vcombine.high %v2042, %v2042
    %v2053 = vcombine.high %v2049, %v2049
    %v2054 = vcombine.high %v464, %v464
    %v2056 = vunpack.c.l.s4 1966171168
    %v2057 = vunpack.c.0.s8 %v2056
    %v2058 = vlaneseq
    %v2059 = vshrl.u32 %v2058, 7
    %v2060 = vsub.s32 %v2057, %v2059
    %v2061 = vrot.slane %v464, %v2060
    %v2063 = vunpack.c.l.s4 1966171168
    %v2064 = vunpack.c.0.s8 %v2063
    %v2065 = vlaneseq
    %v2066 = vshrl.u32 %v2065, 7
    %v2067 = vsub.s32 %v2064, %v2066
    %v2068 = vrot.slane %v2054, %v2067
    %v2069 = vcombine.high %v2061, %v2061
    %v2070 = vcombine.high %v2068, %v2068
    %v2072 = vunpack.c.l.s4 1966171168
    %v2073 = vunpack.c.0.s8 %v2072
    %v2074 = vlaneseq
    %v2075 = vshrl.u32 %v2074, 7
    %v2076 = vsub.s32 %v2073, %v2075
    %v2077 = vrot.slane %v2061, %v2076
    %v2079 = vunpack.c.l.s4 1966171168
    %v2080 = vunpack.c.0.s8 %v2079
    %v2081 = vlaneseq
    %v2082 = vshrl.u32 %v2081, 7
    %v2083 = vsub.s32 %v2080, %v2082
    %v2084 = vrot.slane %v2068, %v2083
    %v2086 = vunpack.c.l.s4 1966171168
    %v2087 = vunpack.c.0.s8 %v2086
    %v2088 = vlaneseq
    %v2089 = vshrl.u32 %v2088, 7
    %v2090 = vsub.s32 %v2087, %v2089
    %v2091 = vrot.slane %v2069, %v2090
    %v2093 = vunpack.c.l.s4 1966171168
    %v2094 = vunpack.c.0.s8 %v2093
    %v2095 = vlaneseq
    %v2096 = vshrl.u32 %v2095, 7
    %v2097 = vsub.s32 %v2094, %v2096
    %v2098 = vrot.slane %v2070, %v2097
    %v2099 = vcombine.high %v2077, %v2077
    %v2100 = vcombine.high %v2084, %v2084
    %v2101 = vcombine.high %v2091, %v2091
    %v2102 = vcombine.high %v2098, %v2098
    %v2103 = vlaneseq
    %v2104 = vshrl.u32 %v2103, 7
    %v2105 = vsub.s32 0, %v2104
    %v2106 = vrot.slane %v2028, %v2105
    %v2107 = vlaneseq
    %v2108 = vshrl.u32 %v2107, 7
    %v2109 = vsub.s32 0, %v2108
    %v2110 = vrot.slane %v2042, %v2109
    %v2111 = vlaneseq
    %v2112 = vshrl.u32 %v2111, 7
    %v2113 = vsub.s32 0, %v2112
    %v2114 = vrot.slane %v2050, %v2113
    %v2115 = vlaneseq
    %v2116 = vshrl.u32 %v2115, 7
    %v2117 = vsub.s32 0, %v2116
    %v2118 = vrot.slane %v2052, %v2117
    %v2119 = vlaneseq
    %v2120 = vshrl.u32 %v2119, 7
    %v2121 = vsub.s32 0, %v2120
    %v2122 = vrot.slane %v2035, %v2121
    %v2123 = vlaneseq
    %v2124 = vshrl.u32 %v2123, 7
    %v2125 = vsub.s32 0, %v2124
    %v2126 = vrot.slane %v2049, %v2125
    %v2127 = vlaneseq
    %v2128 = vshrl.u32 %v2127, 7
    %v2129 = vsub.s32 0, %v2128
    %v2130 = vrot.slane %v2051, %v2129
    %v2131 = vlaneseq
    %v2132 = vshrl.u32 %v2131, 7
    %v2133 = vsub.s32 0, %v2132
    %v2134 = vrot.slane %v2053, %v2133
    %v2135 = vlaneseq
    %v2136 = vshrl.u32 %v2135, 7
    %v2137 = vsub.s32 0, %v2136
    %v2138 = vrot.slane %v2077, %v2137
    %v2139 = vlaneseq
    %v2140 = vshrl.u32 %v2139, 7
    %v2141 = vsub.s32 0, %v2140
    %v2142 = vrot.slane %v2091, %v2141
    %v2143 = vlaneseq
    %v2144 = vshrl.u32 %v2143, 7
    %v2145 = vsub.s32 0, %v2144
    %v2146 = vrot.slane %v2099, %v2145
    %v2147 = vlaneseq
    %v2148 = vshrl.u32 %v2147, 7
    %v2149 = vsub.s32 0, %v2148
    %v2150 = vrot.slane %v2101, %v2149
    %v2151 = vlaneseq
    %v2152 = vshrl.u32 %v2151, 7
    %v2153 = vsub.s32 0, %v2152
    %v2154 = vrot.slane %v2084, %v2153
    %v2155 = vlaneseq
    %v2156 = vshrl.u32 %v2155, 7
    %v2157 = vsub.s32 0, %v2156
    %v2158 = vrot.slane %v2098, %v2157
    %v2159 = vlaneseq
    %v2160 = vshrl.u32 %v2159, 7
    %v2161 = vsub.s32 0, %v2160
    %v2162 = vrot.slane %v2100, %v2161
    %v2163 = vlaneseq
    %v2164 = vshrl.u32 %v2163, 7
    %v2165 = vsub.s32 0, %v2164
    %v2166 = vrot.slane %v2102, %v2165
    %v2183 = vmul.f32 %v1747, %v2106
    %v2184 = vmul.f32 %v1748, %v2106
    %v2185 = vmul.f32 %v1749, %v2106
    %v2186 = vmul.f32 %v1750, %v2106
    %v2187 = vmul.f32 %v1751, %v2106
    %v2188 = vmul.f32 %v1752, %v2106
    %v2189 = vmul.f32 %v1753, %v2106
    %v2190 = vmul.f32 %v1754, %v2106
    %v2191 = vmul.f32 %v1755, %v2106
    %v2192 = vmul.f32 %v1756, %v2106
    %v2193 = vmul.f32 %v1757, %v2106
    %v2194 = vmul.f32 %v1758, %v2106
    %v2195 = vmul.f32 %v1759, %v2106
    %v2196 = vmul.f32 %v1760, %v2106
    %v2197 = vmul.f32 %v1761, %v2106
    %v2198 = vmul.f32 %v1762, %v2106
    %v2199 = vmul.f32 %v1763, %v2110
    %v2200 = vmul.f32 %v1764, %v2110
    %v2201 = vmul.f32 %v1765, %v2110
    %v2202 = vmul.f32 %v1766, %v2110
    %v2203 = vmul.f32 %v1767, %v2110
    %v2204 = vmul.f32 %v1768, %v2110
    %v2205 = vmul.f32 %v1769, %v2110
    %v2206 = vmul.f32 %v1770, %v2110
    %v2207 = vmul.f32 %v1771, %v2110
    %v2208 = vmul.f32 %v1772, %v2110
    %v2209 = vmul.f32 %v1773, %v2110
    %v2210 = vmul.f32 %v1774, %v2110
    %v2211 = vmul.f32 %v1775, %v2110
    %v2212 = vmul.f32 %v1776, %v2110
    %v2213 = vmul.f32 %v1777, %v2110
    %v2214 = vmul.f32 %v1778, %v2110
    %v2215 = vmul.f32 %v1779, %v2114
    %v2216 = vmul.f32 %v1780, %v2114
    %v2217 = vmul.f32 %v1781, %v2114
    %v2218 = vmul.f32 %v1782, %v2114
    %v2219 = vmul.f32 %v1783, %v2114
    %v2220 = vmul.f32 %v1784, %v2114
    %v2221 = vmul.f32 %v1785, %v2114
    %v2222 = vmul.f32 %v1786, %v2114
    %v2223 = vmul.f32 %v1787, %v2114
    %v2224 = vmul.f32 %v1788, %v2114
    %v2225 = vmul.f32 %v1789, %v2114
    %v2226 = vmul.f32 %v1790, %v2114
    %v2227 = vmul.f32 %v1791, %v2114
    %v2228 = vmul.f32 %v1792, %v2114
    %v2229 = vmul.f32 %v1793, %v2114
    %v2230 = vmul.f32 %v1794, %v2114
    %v2231 = vmul.f32 %v1795, %v2118
    %v2232 = vmul.f32 %v1796, %v2118
    %v2233 = vmul.f32 %v1797, %v2118
    %v2234 = vmul.f32 %v1798, %v2118
    %v2235 = vmul.f32 %v1799, %v2118
    %v2236 = vmul.f32 %v1800, %v2118
    %v2237 = vmul.f32 %v1801, %v2118
    %v2238 = vmul.f32 %v1802, %v2118
    %v2239 = vmul.f32 %v1803, %v2118
    %v2240 = vmul.f32 %v1804, %v2118
    %v2241 = vmul.f32 %v1805, %v2118
    %v2242 = vmul.f32 %v1806, %v2118
    %v2243 = vmul.f32 %v1807, %v2118
    %v2244 = vmul.f32 %v1808, %v2118
    %v2245 = vmul.f32 %v1809, %v2118
    %v2246 = vmul.f32 %v1810, %v2118
    %v2247 = vmul.f32 %v1811, %v2122
    %v2248 = vmul.f32 %v1812, %v2122
    %v2249 = vmul.f32 %v1813, %v2122
    %v2250 = vmul.f32 %v1814, %v2122
    %v2251 = vmul.f32 %v1815, %v2122
    %v2252 = vmul.f32 %v1816, %v2122
    %v2253 = vmul.f32 %v1817, %v2122
    %v2254 = vmul.f32 %v1818, %v2122
    %v2255 = vmul.f32 %v1819, %v2122
    %v2256 = vmul.f32 %v1820, %v2122
    %v2257 = vmul.f32 %v1821, %v2122
    %v2258 = vmul.f32 %v1822, %v2122
    %v2259 = vmul.f32 %v1823, %v2122
    %v2260 = vmul.f32 %v1824, %v2122
    %v2261 = vmul.f32 %v1825, %v2122
    %v2262 = vmul.f32 %v1826, %v2122
    %v2263 = vmul.f32 %v1827, %v2126
    %v2264 = vmul.f32 %v1828, %v2126
    %v2265 = vmul.f32 %v1829, %v2126
    %v2266 = vmul.f32 %v1830, %v2126
    %v2267 = vmul.f32 %v1831, %v2126
    %v2268 = vmul.f32 %v1832, %v2126
    %v2269 = vmul.f32 %v1833, %v2126
    %v2270 = vmul.f32 %v1834, %v2126
    %v2271 = vmul.f32 %v1835, %v2126
    %v2272 = vmul.f32 %v1836, %v2126
    %v2273 = vmul.f32 %v1837, %v2126
    %v2274 = vmul.f32 %v1838, %v2126
    %v2275 = vmul.f32 %v1839, %v2126
    %v2276 = vmul.f32 %v1840, %v2126
    %v2277 = vmul.f32 %v1841, %v2126
    %v2278 = vmul.f32 %v1842, %v2126
    %v2279 = vmul.f32 %v1843, %v2130
    %v2280 = vmul.f32 %v1844, %v2130
    %v2281 = vmul.f32 %v1845, %v2130
    %v2282 = vmul.f32 %v1846, %v2130
    %v2283 = vmul.f32 %v1847, %v2130
    %v2284 = vmul.f32 %v1848, %v2130
    %v2285 = vmul.f32 %v1849, %v2130
    %v2286 = vmul.f32 %v1850, %v2130
    %v2287 = vmul.f32 %v1851, %v2130
    %v2288 = vmul.f32 %v1852, %v2130
    %v2289 = vmul.f32 %v1853, %v2130
    %v2290 = vmul.f32 %v1854, %v2130
    %v2291 = vmul.f32 %v1855, %v2130
    %v2292 = vmul.f32 %v1856, %v2130
    %v2293 = vmul.f32 %v1857, %v2130
    %v2294 = vmul.f32 %v1858, %v2130
    %v2295 = vmul.f32 %v1859, %v2134
    %v2296 = vmul.f32 %v1860, %v2134
    %v2297 = vmul.f32 %v1861, %v2134
    %v2298 = vmul.f32 %v1862, %v2134
    %v2299 = vmul.f32 %v1863, %v2134
    %v2300 = vmul.f32 %v1864, %v2134
    %v2301 = vmul.f32 %v1865, %v2134
    %v2302 = vmul.f32 %v1866, %v2134
    %v2303 = vmul.f32 %v1867, %v2134
    %v2304 = vmul.f32 %v1868, %v2134
    %v2305 = vmul.f32 %v1869, %v2134
    %v2306 = vmul.f32 %v1870, %v2134
    %v2307 = vmul.f32 %v1871, %v2134
    %v2308 = vmul.f32 %v1872, %v2134
    %v2309 = vmul.f32 %v1873, %v2134
    %v2310 = vmul.f32 %v1874, %v2134
    %v2311 = vmul.f32 %v1875, %v2138
    %v2312 = vmul.f32 %v1876, %v2138
    %v2313 = vmul.f32 %v1877, %v2138
    %v2314 = vmul.f32 %v1878, %v2138
    %v2315 = vmul.f32 %v1879, %v2138
    %v2316 = vmul.f32 %v1880, %v2138
    %v2317 = vmul.f32 %v1881, %v2138
    %v2318 = vmul.f32 %v1882, %v2138
    %v2319 = vmul.f32 %v1883, %v2138
    %v2320 = vmul.f32 %v1884, %v2138
    %v2321 = vmul.f32 %v1885, %v2138
    %v2322 = vmul.f32 %v1886, %v2138
    %v2323 = vmul.f32 %v1887, %v2138
    %v2324 = vmul.f32 %v1888, %v2138
    %v2325 = vmul.f32 %v1889, %v2138
    %v2326 = vmul.f32 %v1890, %v2138
    %v2327 = vmul.f32 %v1891, %v2142
    %v2328 = vmul.f32 %v1892, %v2142
    %v2329 = vmul.f32 %v1893, %v2142
    %v2330 = vmul.f32 %v1894, %v2142
    %v2331 = vmul.f32 %v1895, %v2142
    %v2332 = vmul.f32 %v1896, %v2142
    %v2333 = vmul.f32 %v1897, %v2142
    %v2334 = vmul.f32 %v1898, %v2142
    %v2335 = vmul.f32 %v1899, %v2142
    %v2336 = vmul.f32 %v1900, %v2142
    %v2337 = vmul.f32 %v1901, %v2142
    %v2338 = vmul.f32 %v1902, %v2142
    %v2339 = vmul.f32 %v1903, %v2142
    %v2340 = vmul.f32 %v1904, %v2142
    %v2341 = vmul.f32 %v1905, %v2142
    %v2342 = vmul.f32 %v1906, %v2142
    %v2343 = vmul.f32 %v1907, %v2146
    %v2344 = vmul.f32 %v1908, %v2146
    %v2345 = vmul.f32 %v1909, %v2146
    %v2346 = vmul.f32 %v1910, %v2146
    %v2347 = vmul.f32 %v1911, %v2146
    %v2348 = vmul.f32 %v1912, %v2146
    %v2349 = vmul.f32 %v1913, %v2146
    %v2350 = vmul.f32 %v1914, %v2146
    %v2351 = vmul.f32 %v1915, %v2146
    %v2352 = vmul.f32 %v1916, %v2146
    %v2353 = vmul.f32 %v1917, %v2146
    %v2354 = vmul.f32 %v1918, %v2146
    %v2355 = vmul.f32 %v1919, %v2146
    %v2356 = vmul.f32 %v1920, %v2146
    %v2357 = vmul.f32 %v1921, %v2146
    %v2358 = vmul.f32 %v1922, %v2146
    %v2359 = vmul.f32 %v1923, %v2150
    %v2360 = vmul.f32 %v1924, %v2150
    %v2361 = vmul.f32 %v1925, %v2150
    %v2362 = vmul.f32 %v1926, %v2150
    %v2363 = vmul.f32 %v1927, %v2150
    %v2364 = vmul.f32 %v1928, %v2150
    %v2365 = vmul.f32 %v1929, %v2150
    %v2366 = vmul.f32 %v1930, %v2150
    %v2367 = vmul.f32 %v1931, %v2150
    %v2368 = vmul.f32 %v1932, %v2150
    %v2369 = vmul.f32 %v1933, %v2150
    %v2370 = vmul.f32 %v1934, %v2150
    %v2371 = vmul.f32 %v1935, %v2150
    %v2372 = vmul.f32 %v1936, %v2150
    %v2373 = vmul.f32 %v1937, %v2150
    %v2374 = vmul.f32 %v1938, %v2150
    %v2375 = vmul.f32 %v1939, %v2154
    %v2376 = vmul.f32 %v1940, %v2154
    %v2377 = vmul.f32 %v1941, %v2154
    %v2378 = vmul.f32 %v1942, %v2154
    %v2379 = vmul.f32 %v1943, %v2154
    %v2380 = vmul.f32 %v1944, %v2154
    %v2381 = vmul.f32 %v1945, %v2154
    %v2382 = vmul.f32 %v1946, %v2154
    %v2383 = vmul.f32 %v1947, %v2154
    %v2384 = vmul.f32 %v1948, %v2154
    %v2385 = vmul.f32 %v1949, %v2154
    %v2386 = vmul.f32 %v1950, %v2154
    %v2387 = vmul.f32 %v1951, %v2154
    %v2388 = vmul.f32 %v1952, %v2154
    %v2389 = vmul.f32 %v1953, %v2154
    %v2390 = vmul.f32 %v1954, %v2154
    %v2391 = vmul.f32 %v1955, %v2158
    %v2392 = vmul.f32 %v1956, %v2158
    %v2393 = vmul.f32 %v1957, %v2158
    %v2394 = vmul.f32 %v1958, %v2158
    %v2395 = vmul.f32 %v1959, %v2158
    %v2396 = vmul.f32 %v1960, %v2158
    %v2397 = vmul.f32 %v1961, %v2158
    %v2398 = vmul.f32 %v1962, %v2158
    %v2399 = vmul.f32 %v1963, %v2158
    %v2400 = vmul.f32 %v1964, %v2158
    %v2401 = vmul.f32 %v1965, %v2158
    %v2402 = vmul.f32 %v1966, %v2158
    %v2403 = vmul.f32 %v1967, %v2158
    %v2404 = vmul.f32 %v1968, %v2158
    %v2405 = vmul.f32 %v1969, %v2158
    %v2406 = vmul.f32 %v1970, %v2158
    %v2407 = vmul.f32 %v1971, %v2162
    %v2408 = vmul.f32 %v1972, %v2162
    %v2409 = vmul.f32 %v1973, %v2162
    %v2410 = vmul.f32 %v1974, %v2162
    %v2411 = vmul.f32 %v1975, %v2162
    %v2412 = vmul.f32 %v1976, %v2162
    %v2413 = vmul.f32 %v1977, %v2162
    %v2414 = vmul.f32 %v1978, %v2162
    %v2415 = vmul.f32 %v1979, %v2162
    %v2416 = vmul.f32 %v1980, %v2162
    %v2417 = vmul.f32 %v1981, %v2162
    %v2418 = vmul.f32 %v1982, %v2162
    %v2419 = vmul.f32 %v1983, %v2162
    %v2420 = vmul.f32 %v1984, %v2162
    %v2421 = vmul.f32 %v1985, %v2162
    %v2422 = vmul.f32 %v1986, %v2162
    %v2423 = vmul.f32 %v1987, %v2166
    %v2424 = vmul.f32 %v1988, %v2166
    %v2425 = vmul.f32 %v1989, %v2166
    %v2426 = vmul.f32 %v1990, %v2166
    %v2427 = vmul.f32 %v1991, %v2166
    %v2428 = vmul.f32 %v1992, %v2166
    %v2429 = vmul.f32 %v1993, %v2166
    %v2430 = vmul.f32 %v1994, %v2166
    %v2431 = vmul.f32 %v1995, %v2166
    %v2432 = vmul.f32 %v1996, %v2166
    %v2433 = vmul.f32 %v1997, %v2166
    %v2434 = vmul.f32 %v1998, %v2166
    %v2435 = vmul.f32 %v1999, %v2166
    %v2436 = vmul.f32 %v2000, %v2166
    %v2437 = vmul.f32 %v2001, %v2166
    %v2438 = vmul.f32 %v2002, %v2166
    %2439 = vadd.xlane.f32.xlu0 %v2183
    %v2440 = vpop.xlane.xlu0 %2439
    %2441 = vadd.xlane.f32.xlu0 %v2184
    %v2442 = vpop.xlane.xlu0 %2441
    %2443 = vadd.xlane.f32.xlu0 %v2185
    %v2444 = vpop.xlane.xlu0 %2443
    %2445 = vadd.xlane.f32.xlu0 %v2186
    %v2446 = vpop.xlane.xlu0 %2445
    %2447 = vadd.xlane.f32.xlu0 %v2187
    %v2448 = vpop.xlane.xlu0 %2447
    %2449 = vadd.xlane.f32.xlu0 %v2188
    %v2450 = vpop.xlane.xlu0 %2449
    %2451 = vadd.xlane.f32.xlu0 %v2189
    %v2452 = vpop.xlane.xlu0 %2451
    %2453 = vadd.xlane.f32.xlu0 %v2190
    %v2454 = vpop.xlane.xlu0 %2453
    %2455 = vadd.xlane.f32.xlu0 %v2191
    %v2456 = vpop.xlane.xlu0 %2455
    %2457 = vadd.xlane.f32.xlu0 %v2192
    %v2458 = vpop.xlane.xlu0 %2457
    %2459 = vadd.xlane.f32.xlu0 %v2193
    %v2460 = vpop.xlane.xlu0 %2459
    %2461 = vadd.xlane.f32.xlu0 %v2194
    %v2462 = vpop.xlane.xlu0 %2461
    %2463 = vadd.xlane.f32.xlu0 %v2195
    %v2464 = vpop.xlane.xlu0 %2463
    %2465 = vadd.xlane.f32.xlu0 %v2196
    %v2466 = vpop.xlane.xlu0 %2465
    %2467 = vadd.xlane.f32.xlu0 %v2197
    %v2468 = vpop.xlane.xlu0 %2467
    %2469 = vadd.xlane.f32.xlu0 %v2198
    %v2470 = vpop.xlane.xlu0 %2469
    %2471 = vadd.xlane.f32.xlu0 %v2199
    %v2472 = vpop.xlane.xlu0 %2471
    %2473 = vadd.xlane.f32.xlu0 %v2200
    %v2474 = vpop.xlane.xlu0 %2473
    %2475 = vadd.xlane.f32.xlu0 %v2201
    %v2476 = vpop.xlane.xlu0 %2475
    %2477 = vadd.xlane.f32.xlu0 %v2202
    %v2478 = vpop.xlane.xlu0 %2477
    %2479 = vadd.xlane.f32.xlu0 %v2203
    %v2480 = vpop.xlane.xlu0 %2479
    %2481 = vadd.xlane.f32.xlu0 %v2204
    %v2482 = vpop.xlane.xlu0 %2481
    %2483 = vadd.xlane.f32.xlu0 %v2205
    %v2484 = vpop.xlane.xlu0 %2483
    %2485 = vadd.xlane.f32.xlu0 %v2206
    %v2486 = vpop.xlane.xlu0 %2485
    %2487 = vadd.xlane.f32.xlu0 %v2207
    %v2488 = vpop.xlane.xlu0 %2487
    %2489 = vadd.xlane.f32.xlu0 %v2208
    %v2490 = vpop.xlane.xlu0 %2489
    %2491 = vadd.xlane.f32.xlu0 %v2209
    %v2492 = vpop.xlane.xlu0 %2491
    %2493 = vadd.xlane.f32.xlu0 %v2210
    %v2494 = vpop.xlane.xlu0 %2493
    %2495 = vadd.xlane.f32.xlu0 %v2211
    %v2496 = vpop.xlane.xlu0 %2495
    %2497 = vadd.xlane.f32.xlu0 %v2212
    %v2498 = vpop.xlane.xlu0 %2497
    %2499 = vadd.xlane.f32.xlu0 %v2213
    %v2500 = vpop.xlane.xlu0 %2499
    %2501 = vadd.xlane.f32.xlu0 %v2214
    %v2502 = vpop.xlane.xlu0 %2501
    %2503 = vadd.xlane.f32.xlu0 %v2215
    %v2504 = vpop.xlane.xlu0 %2503
    %2505 = vadd.xlane.f32.xlu0 %v2216
    %v2506 = vpop.xlane.xlu0 %2505
    %2507 = vadd.xlane.f32.xlu0 %v2217
    %v2508 = vpop.xlane.xlu0 %2507
    %2509 = vadd.xlane.f32.xlu0 %v2218
    %v2510 = vpop.xlane.xlu0 %2509
    %2511 = vadd.xlane.f32.xlu0 %v2219
    %v2512 = vpop.xlane.xlu0 %2511
    %2513 = vadd.xlane.f32.xlu0 %v2220
    %v2514 = vpop.xlane.xlu0 %2513
    %2515 = vadd.xlane.f32.xlu0 %v2221
    %v2516 = vpop.xlane.xlu0 %2515
    %2517 = vadd.xlane.f32.xlu0 %v2222
    %v2518 = vpop.xlane.xlu0 %2517
    %2519 = vadd.xlane.f32.xlu0 %v2223
    %v2520 = vpop.xlane.xlu0 %2519
    %2521 = vadd.xlane.f32.xlu0 %v2224
    %v2522 = vpop.xlane.xlu0 %2521
    %2523 = vadd.xlane.f32.xlu0 %v2225
    %v2524 = vpop.xlane.xlu0 %2523
    %2525 = vadd.xlane.f32.xlu0 %v2226
    %v2526 = vpop.xlane.xlu0 %2525
    %2527 = vadd.xlane.f32.xlu0 %v2227
    %v2528 = vpop.xlane.xlu0 %2527
    %2529 = vadd.xlane.f32.xlu0 %v2228
    %v2530 = vpop.xlane.xlu0 %2529
    %2531 = vadd.xlane.f32.xlu0 %v2229
    %v2532 = vpop.xlane.xlu0 %2531
    %2533 = vadd.xlane.f32.xlu0 %v2230
    %v2534 = vpop.xlane.xlu0 %2533
    %2535 = vadd.xlane.f32.xlu0 %v2231
    %v2536 = vpop.xlane.xlu0 %2535
    %2537 = vadd.xlane.f32.xlu0 %v2232
    %v2538 = vpop.xlane.xlu0 %2537
    %2539 = vadd.xlane.f32.xlu0 %v2233
    %v2540 = vpop.xlane.xlu0 %2539
    %2541 = vadd.xlane.f32.xlu0 %v2234
    %v2542 = vpop.xlane.xlu0 %2541
    %2543 = vadd.xlane.f32.xlu0 %v2235
    %v2544 = vpop.xlane.xlu0 %2543
    %2545 = vadd.xlane.f32.xlu0 %v2236
    %v2546 = vpop.xlane.xlu0 %2545
    %2547 = vadd.xlane.f32.xlu0 %v2237
    %v2548 = vpop.xlane.xlu0 %2547
    %2549 = vadd.xlane.f32.xlu0 %v2238
    %v2550 = vpop.xlane.xlu0 %2549
    %2551 = vadd.xlane.f32.xlu0 %v2239
    %v2552 = vpop.xlane.xlu0 %2551
    %2553 = vadd.xlane.f32.xlu0 %v2240
    %v2554 = vpop.xlane.xlu0 %2553
    %2555 = vadd.xlane.f32.xlu0 %v2241
    %v2556 = vpop.xlane.xlu0 %2555
    %2557 = vadd.xlane.f32.xlu0 %v2242
    %v2558 = vpop.xlane.xlu0 %2557
    %2559 = vadd.xlane.f32.xlu0 %v2243
    %v2560 = vpop.xlane.xlu0 %2559
    %2561 = vadd.xlane.f32.xlu0 %v2244
    %v2562 = vpop.xlane.xlu0 %2561
    %2563 = vadd.xlane.f32.xlu0 %v2245
    %v2564 = vpop.xlane.xlu0 %2563
    %2565 = vadd.xlane.f32.xlu0 %v2246
    %v2566 = vpop.xlane.xlu0 %2565
    %2567 = vadd.xlane.f32.xlu0 %v2247
    %v2568 = vpop.xlane.xlu0 %2567
    %2569 = vadd.xlane.f32.xlu0 %v2248
    %v2570 = vpop.xlane.xlu0 %2569
    %2571 = vadd.xlane.f32.xlu0 %v2249
    %v2572 = vpop.xlane.xlu0 %2571
    %2573 = vadd.xlane.f32.xlu0 %v2250
    %v2574 = vpop.xlane.xlu0 %2573
    %2575 = vadd.xlane.f32.xlu0 %v2251
    %v2576 = vpop.xlane.xlu0 %2575
    %2577 = vadd.xlane.f32.xlu0 %v2252
    %v2578 = vpop.xlane.xlu0 %2577
    %2579 = vadd.xlane.f32.xlu0 %v2253
    %v2580 = vpop.xlane.xlu0 %2579
    %2581 = vadd.xlane.f32.xlu0 %v2254
    %v2582 = vpop.xlane.xlu0 %2581
    %2583 = vadd.xlane.f32.xlu0 %v2255
    %v2584 = vpop.xlane.xlu0 %2583
    %2585 = vadd.xlane.f32.xlu0 %v2256
    %v2586 = vpop.xlane.xlu0 %2585
    %2587 = vadd.xlane.f32.xlu0 %v2257
    %v2588 = vpop.xlane.xlu0 %2587
    %2589 = vadd.xlane.f32.xlu0 %v2258
    %v2590 = vpop.xlane.xlu0 %2589
    %2591 = vadd.xlane.f32.xlu0 %v2259
    %v2592 = vpop.xlane.xlu0 %2591
    %2593 = vadd.xlane.f32.xlu0 %v2260
    %v2594 = vpop.xlane.xlu0 %2593
    %2595 = vadd.xlane.f32.xlu0 %v2261
    %v2596 = vpop.xlane.xlu0 %2595
    %2597 = vadd.xlane.f32.xlu0 %v2262
    %v2598 = vpop.xlane.xlu0 %2597
    %2599 = vadd.xlane.f32.xlu0 %v2263
    %v2600 = vpop.xlane.xlu0 %2599
    %2601 = vadd.xlane.f32.xlu0 %v2264
    %v2602 = vpop.xlane.xlu0 %2601
    %2603 = vadd.xlane.f32.xlu0 %v2265
    %v2604 = vpop.xlane.xlu0 %2603
    %2605 = vadd.xlane.f32.xlu0 %v2266
    %v2606 = vpop.xlane.xlu0 %2605
    %2607 = vadd.xlane.f32.xlu0 %v2267
    %v2608 = vpop.xlane.xlu0 %2607
    %2609 = vadd.xlane.f32.xlu0 %v2268
    %v2610 = vpop.xlane.xlu0 %2609
    %2611 = vadd.xlane.f32.xlu0 %v2269
    %v2612 = vpop.xlane.xlu0 %2611
    %2613 = vadd.xlane.f32.xlu0 %v2270
    %v2614 = vpop.xlane.xlu0 %2613
    %2615 = vadd.xlane.f32.xlu0 %v2271
    %v2616 = vpop.xlane.xlu0 %2615
    %2617 = vadd.xlane.f32.xlu0 %v2272
    %v2618 = vpop.xlane.xlu0 %2617
    %2619 = vadd.xlane.f32.xlu0 %v2273
    %v2620 = vpop.xlane.xlu0 %2619
    %2621 = vadd.xlane.f32.xlu0 %v2274
    %v2622 = vpop.xlane.xlu0 %2621
    %2623 = vadd.xlane.f32.xlu0 %v2275
    %v2624 = vpop.xlane.xlu0 %2623
    %2625 = vadd.xlane.f32.xlu0 %v2276
    %v2626 = vpop.xlane.xlu0 %2625
    %2627 = vadd.xlane.f32.xlu0 %v2277
    %v2628 = vpop.xlane.xlu0 %2627
    %2629 = vadd.xlane.f32.xlu0 %v2278
    %v2630 = vpop.xlane.xlu0 %2629
    %2631 = vadd.xlane.f32.xlu0 %v2279
    %v2632 = vpop.xlane.xlu0 %2631
    %2633 = vadd.xlane.f32.xlu0 %v2280
    %v2634 = vpop.xlane.xlu0 %2633
    %2635 = vadd.xlane.f32.xlu0 %v2281
    %v2636 = vpop.xlane.xlu0 %2635
    %2637 = vadd.xlane.f32.xlu0 %v2282
    %v2638 = vpop.xlane.xlu0 %2637
    %2639 = vadd.xlane.f32.xlu0 %v2283
    %v2640 = vpop.xlane.xlu0 %2639
    %2641 = vadd.xlane.f32.xlu0 %v2284
    %v2642 = vpop.xlane.xlu0 %2641
    %2643 = vadd.xlane.f32.xlu0 %v2285
    %v2644 = vpop.xlane.xlu0 %2643
    %2645 = vadd.xlane.f32.xlu0 %v2286
    %v2646 = vpop.xlane.xlu0 %2645
    %2647 = vadd.xlane.f32.xlu0 %v2287
    %v2648 = vpop.xlane.xlu0 %2647
    %2649 = vadd.xlane.f32.xlu0 %v2288
    %v2650 = vpop.xlane.xlu0 %2649
    %2651 = vadd.xlane.f32.xlu0 %v2289
    %v2652 = vpop.xlane.xlu0 %2651
    %2653 = vadd.xlane.f32.xlu0 %v2290
    %v2654 = vpop.xlane.xlu0 %2653
    %2655 = vadd.xlane.f32.xlu0 %v2291
    %v2656 = vpop.xlane.xlu0 %2655
    %2657 = vadd.xlane.f32.xlu0 %v2292
    %v2658 = vpop.xlane.xlu0 %2657
    %2659 = vadd.xlane.f32.xlu0 %v2293
    %v2660 = vpop.xlane.xlu0 %2659
    %2661 = vadd.xlane.f32.xlu0 %v2294
    %v2662 = vpop.xlane.xlu0 %2661
    %2663 = vadd.xlane.f32.xlu0 %v2295
    %v2664 = vpop.xlane.xlu0 %2663
    %2665 = vadd.xlane.f32.xlu0 %v2296
    %v2666 = vpop.xlane.xlu0 %2665
    %2667 = vadd.xlane.f32.xlu0 %v2297
    %v2668 = vpop.xlane.xlu0 %2667
    %2669 = vadd.xlane.f32.xlu0 %v2298
    %v2670 = vpop.xlane.xlu0 %2669
    %2671 = vadd.xlane.f32.xlu0 %v2299
    %v2672 = vpop.xlane.xlu0 %2671
    %2673 = vadd.xlane.f32.xlu0 %v2300
    %v2674 = vpop.xlane.xlu0 %2673
    %2675 = vadd.xlane.f32.xlu0 %v2301
    %v2676 = vpop.xlane.xlu0 %2675
    %2677 = vadd.xlane.f32.xlu0 %v2302
    %v2678 = vpop.xlane.xlu0 %2677
    %2679 = vadd.xlane.f32.xlu0 %v2303
    %v2680 = vpop.xlane.xlu0 %2679
    %2681 = vadd.xlane.f32.xlu0 %v2304
    %v2682 = vpop.xlane.xlu0 %2681
    %2683 = vadd.xlane.f32.xlu0 %v2305
    %v2684 = vpop.xlane.xlu0 %2683
    %2685 = vadd.xlane.f32.xlu0 %v2306
    %v2686 = vpop.xlane.xlu0 %2685
    %2687 = vadd.xlane.f32.xlu0 %v2307
    %v2688 = vpop.xlane.xlu0 %2687
    %2689 = vadd.xlane.f32.xlu0 %v2308
    %v2690 = vpop.xlane.xlu0 %2689
    %2691 = vadd.xlane.f32.xlu0 %v2309
    %v2692 = vpop.xlane.xlu0 %2691
    %2693 = vadd.xlane.f32.xlu0 %v2310
    %v2694 = vpop.xlane.xlu0 %2693
    %2695 = vadd.xlane.f32.xlu0 %v2311
    %v2696 = vpop.xlane.xlu0 %2695
    %2697 = vadd.xlane.f32.xlu0 %v2312
    %v2698 = vpop.xlane.xlu0 %2697
    %2699 = vadd.xlane.f32.xlu0 %v2313
    %v2700 = vpop.xlane.xlu0 %2699
    %2701 = vadd.xlane.f32.xlu0 %v2314
    %v2702 = vpop.xlane.xlu0 %2701
    %2703 = vadd.xlane.f32.xlu0 %v2315
    %v2704 = vpop.xlane.xlu0 %2703
    %2705 = vadd.xlane.f32.xlu0 %v2316
    %v2706 = vpop.xlane.xlu0 %2705
    %2707 = vadd.xlane.f32.xlu0 %v2317
    %v2708 = vpop.xlane.xlu0 %2707
    %2709 = vadd.xlane.f32.xlu0 %v2318
    %v2710 = vpop.xlane.xlu0 %2709
    %2711 = vadd.xlane.f32.xlu0 %v2319
    %v2712 = vpop.xlane.xlu0 %2711
    %2713 = vadd.xlane.f32.xlu0 %v2320
    %v2714 = vpop.xlane.xlu0 %2713
    %2715 = vadd.xlane.f32.xlu0 %v2321
    %v2716 = vpop.xlane.xlu0 %2715
    %2717 = vadd.xlane.f32.xlu0 %v2322
    %v2718 = vpop.xlane.xlu0 %2717
    %2719 = vadd.xlane.f32.xlu0 %v2323
    %v2720 = vpop.xlane.xlu0 %2719
    %2721 = vadd.xlane.f32.xlu0 %v2324
    %v2722 = vpop.xlane.xlu0 %2721
    %2723 = vadd.xlane.f32.xlu0 %v2325
    %v2724 = vpop.xlane.xlu0 %2723
    %2725 = vadd.xlane.f32.xlu0 %v2326
    %v2726 = vpop.xlane.xlu0 %2725
    %2727 = vadd.xlane.f32.xlu0 %v2327
    %v2728 = vpop.xlane.xlu0 %2727
    %2729 = vadd.xlane.f32.xlu0 %v2328
    %v2730 = vpop.xlane.xlu0 %2729
    %2731 = vadd.xlane.f32.xlu0 %v2329
    %v2732 = vpop.xlane.xlu0 %2731
    %2733 = vadd.xlane.f32.xlu0 %v2330
    %v2734 = vpop.xlane.xlu0 %2733
    %2735 = vadd.xlane.f32.xlu0 %v2331
    %v2736 = vpop.xlane.xlu0 %2735
    %2737 = vadd.xlane.f32.xlu0 %v2332
    %v2738 = vpop.xlane.xlu0 %2737
    %2739 = vadd.xlane.f32.xlu0 %v2333
    %v2740 = vpop.xlane.xlu0 %2739
    %2741 = vadd.xlane.f32.xlu0 %v2334
    %v2742 = vpop.xlane.xlu0 %2741
    %2743 = vadd.xlane.f32.xlu0 %v2335
    %v2744 = vpop.xlane.xlu0 %2743
    %2745 = vadd.xlane.f32.xlu0 %v2336
    %v2746 = vpop.xlane.xlu0 %2745
    %2747 = vadd.xlane.f32.xlu0 %v2337
    %v2748 = vpop.xlane.xlu0 %2747
    %2749 = vadd.xlane.f32.xlu0 %v2338
    %v2750 = vpop.xlane.xlu0 %2749
    %2751 = vadd.xlane.f32.xlu0 %v2339
    %v2752 = vpop.xlane.xlu0 %2751
    %2753 = vadd.xlane.f32.xlu0 %v2340
    %v2754 = vpop.xlane.xlu0 %2753
    %2755 = vadd.xlane.f32.xlu0 %v2341
    %v2756 = vpop.xlane.xlu0 %2755
    %2757 = vadd.xlane.f32.xlu0 %v2342
    %v2758 = vpop.xlane.xlu0 %2757
    %2759 = vadd.xlane.f32.xlu0 %v2343
    %v2760 = vpop.xlane.xlu0 %2759
    %2761 = vadd.xlane.f32.xlu0 %v2344
    %v2762 = vpop.xlane.xlu0 %2761
    %2763 = vadd.xlane.f32.xlu0 %v2345
    %v2764 = vpop.xlane.xlu0 %2763
    %2765 = vadd.xlane.f32.xlu0 %v2346
    %v2766 = vpop.xlane.xlu0 %2765
    %2767 = vadd.xlane.f32.xlu0 %v2347
    %v2768 = vpop.xlane.xlu0 %2767
    %2769 = vadd.xlane.f32.xlu0 %v2348
    %v2770 = vpop.xlane.xlu0 %2769
    %2771 = vadd.xlane.f32.xlu0 %v2349
    %v2772 = vpop.xlane.xlu0 %2771
    %2773 = vadd.xlane.f32.xlu0 %v2350
    %v2774 = vpop.xlane.xlu0 %2773
    %2775 = vadd.xlane.f32.xlu0 %v2351
    %v2776 = vpop.xlane.xlu0 %2775
    %2777 = vadd.xlane.f32.xlu0 %v2352
    %v2778 = vpop.xlane.xlu0 %2777
    %2779 = vadd.xlane.f32.xlu0 %v2353
    %v2780 = vpop.xlane.xlu0 %2779
    %2781 = vadd.xlane.f32.xlu0 %v2354
    %v2782 = vpop.xlane.xlu0 %2781
    %2783 = vadd.xlane.f32.xlu0 %v2355
    %v2784 = vpop.xlane.xlu0 %2783
    %2785 = vadd.xlane.f32.xlu0 %v2356
    %v2786 = vpop.xlane.xlu0 %2785
    %2787 = vadd.xlane.f32.xlu0 %v2357
    %v2788 = vpop.xlane.xlu0 %2787
    %2789 = vadd.xlane.f32.xlu0 %v2358
    %v2790 = vpop.xlane.xlu0 %2789
    %2791 = vadd.xlane.f32.xlu0 %v2359
    %v2792 = vpop.xlane.xlu0 %2791
    %2793 = vadd.xlane.f32.xlu0 %v2360
    %v2794 = vpop.xlane.xlu0 %2793
    %2795 = vadd.xlane.f32.xlu0 %v2361
    %v2796 = vpop.xlane.xlu0 %2795
    %2797 = vadd.xlane.f32.xlu0 %v2362
    %v2798 = vpop.xlane.xlu0 %2797
    %2799 = vadd.xlane.f32.xlu0 %v2363
    %v2800 = vpop.xlane.xlu0 %2799
    %2801 = vadd.xlane.f32.xlu0 %v2364
    %v2802 = vpop.xlane.xlu0 %2801
    %2803 = vadd.xlane.f32.xlu0 %v2365
    %v2804 = vpop.xlane.xlu0 %2803
    %2805 = vadd.xlane.f32.xlu0 %v2366
    %v2806 = vpop.xlane.xlu0 %2805
    %2807 = vadd.xlane.f32.xlu0 %v2367
    %v2808 = vpop.xlane.xlu0 %2807
    %2809 = vadd.xlane.f32.xlu0 %v2368
    %v2810 = vpop.xlane.xlu0 %2809
    %2811 = vadd.xlane.f32.xlu0 %v2369
    %v2812 = vpop.xlane.xlu0 %2811
    %2813 = vadd.xlane.f32.xlu0 %v2370
    %v2814 = vpop.xlane.xlu0 %2813
    %2815 = vadd.xlane.f32.xlu0 %v2371
    %v2816 = vpop.xlane.xlu0 %2815
    %2817 = vadd.xlane.f32.xlu0 %v2372
    %v2818 = vpop.xlane.xlu0 %2817
    %2819 = vadd.xlane.f32.xlu0 %v2373
    %v2820 = vpop.xlane.xlu0 %2819
    %2821 = vadd.xlane.f32.xlu0 %v2374
    %v2822 = vpop.xlane.xlu0 %2821
    %2823 = vadd.xlane.f32.xlu0 %v2375
    %v2824 = vpop.xlane.xlu0 %2823
    %2825 = vadd.xlane.f32.xlu0 %v2376
    %v2826 = vpop.xlane.xlu0 %2825
    %2827 = vadd.xlane.f32.xlu0 %v2377
    %v2828 = vpop.xlane.xlu0 %2827
    %2829 = vadd.xlane.f32.xlu0 %v2378
    %v2830 = vpop.xlane.xlu0 %2829
    %2831 = vadd.xlane.f32.xlu0 %v2379
    %v2832 = vpop.xlane.xlu0 %2831
    %2833 = vadd.xlane.f32.xlu0 %v2380
    %v2834 = vpop.xlane.xlu0 %2833
    %2835 = vadd.xlane.f32.xlu0 %v2381
    %v2836 = vpop.xlane.xlu0 %2835
    %2837 = vadd.xlane.f32.xlu0 %v2382
    %v2838 = vpop.xlane.xlu0 %2837
    %2839 = vadd.xlane.f32.xlu0 %v2383
    %v2840 = vpop.xlane.xlu0 %2839
    %2841 = vadd.xlane.f32.xlu0 %v2384
    %v2842 = vpop.xlane.xlu0 %2841
    %2843 = vadd.xlane.f32.xlu0 %v2385
    %v2844 = vpop.xlane.xlu0 %2843
    %2845 = vadd.xlane.f32.xlu0 %v2386
    %v2846 = vpop.xlane.xlu0 %2845
    %2847 = vadd.xlane.f32.xlu0 %v2387
    %v2848 = vpop.xlane.xlu0 %2847
    %2849 = vadd.xlane.f32.xlu0 %v2388
    %v2850 = vpop.xlane.xlu0 %2849
    %2851 = vadd.xlane.f32.xlu0 %v2389
    %v2852 = vpop.xlane.xlu0 %2851
    %2853 = vadd.xlane.f32.xlu0 %v2390
    %v2854 = vpop.xlane.xlu0 %2853
    %2855 = vadd.xlane.f32.xlu0 %v2391
    %v2856 = vpop.xlane.xlu0 %2855
    %2857 = vadd.xlane.f32.xlu0 %v2392
    %v2858 = vpop.xlane.xlu0 %2857
    %2859 = vadd.xlane.f32.xlu0 %v2393
    %v2860 = vpop.xlane.xlu0 %2859
    %2861 = vadd.xlane.f32.xlu0 %v2394
    %v2862 = vpop.xlane.xlu0 %2861
    %2863 = vadd.xlane.f32.xlu0 %v2395
    %v2864 = vpop.xlane.xlu0 %2863
    %2865 = vadd.xlane.f32.xlu0 %v2396
    %v2866 = vpop.xlane.xlu0 %2865
    %2867 = vadd.xlane.f32.xlu0 %v2397
    %v2868 = vpop.xlane.xlu0 %2867
    %2869 = vadd.xlane.f32.xlu0 %v2398
    %v2870 = vpop.xlane.xlu0 %2869
    %2871 = vadd.xlane.f32.xlu0 %v2399
    %v2872 = vpop.xlane.xlu0 %2871
    %2873 = vadd.xlane.f32.xlu0 %v2400
    %v2874 = vpop.xlane.xlu0 %2873
    %2875 = vadd.xlane.f32.xlu0 %v2401
    %v2876 = vpop.xlane.xlu0 %2875
    %2877 = vadd.xlane.f32.xlu0 %v2402
    %v2878 = vpop.xlane.xlu0 %2877
    %2879 = vadd.xlane.f32.xlu0 %v2403
    %v2880 = vpop.xlane.xlu0 %2879
    %2881 = vadd.xlane.f32.xlu0 %v2404
    %v2882 = vpop.xlane.xlu0 %2881
    %2883 = vadd.xlane.f32.xlu0 %v2405
    %v2884 = vpop.xlane.xlu0 %2883
    %2885 = vadd.xlane.f32.xlu0 %v2406
    %v2886 = vpop.xlane.xlu0 %2885
    %2887 = vadd.xlane.f32.xlu0 %v2407
    %v2888 = vpop.xlane.xlu0 %2887
    %2889 = vadd.xlane.f32.xlu0 %v2408
    %v2890 = vpop.xlane.xlu0 %2889
    %2891 = vadd.xlane.f32.xlu0 %v2409
    %v2892 = vpop.xlane.xlu0 %2891
    %2893 = vadd.xlane.f32.xlu0 %v2410
    %v2894 = vpop.xlane.xlu0 %2893
    %2895 = vadd.xlane.f32.xlu0 %v2411
    %v2896 = vpop.xlane.xlu0 %2895
    %2897 = vadd.xlane.f32.xlu0 %v2412
    %v2898 = vpop.xlane.xlu0 %2897
    %2899 = vadd.xlane.f32.xlu0 %v2413
    %v2900 = vpop.xlane.xlu0 %2899
    %2901 = vadd.xlane.f32.xlu0 %v2414
    %v2902 = vpop.xlane.xlu0 %2901
    %2903 = vadd.xlane.f32.xlu0 %v2415
    %v2904 = vpop.xlane.xlu0 %2903
    %2905 = vadd.xlane.f32.xlu0 %v2416
    %v2906 = vpop.xlane.xlu0 %2905
    %2907 = vadd.xlane.f32.xlu0 %v2417
    %v2908 = vpop.xlane.xlu0 %2907
    %2909 = vadd.xlane.f32.xlu0 %v2418
    %v2910 = vpop.xlane.xlu0 %2909
    %2911 = vadd.xlane.f32.xlu0 %v2419
    %v2912 = vpop.xlane.xlu0 %2911
    %2913 = vadd.xlane.f32.xlu0 %v2420
    %v2914 = vpop.xlane.xlu0 %2913
    %2915 = vadd.xlane.f32.xlu0 %v2421
    %v2916 = vpop.xlane.xlu0 %2915
    %2917 = vadd.xlane.f32.xlu0 %v2422
    %v2918 = vpop.xlane.xlu0 %2917
    %2919 = vadd.xlane.f32.xlu0 %v2423
    %v2920 = vpop.xlane.xlu0 %2919
    %2921 = vadd.xlane.f32.xlu0 %v2424
    %v2922 = vpop.xlane.xlu0 %2921
    %2923 = vadd.xlane.f32.xlu0 %v2425
    %v2924 = vpop.xlane.xlu0 %2923
    %2925 = vadd.xlane.f32.xlu0 %v2426
    %v2926 = vpop.xlane.xlu0 %2925
    %2927 = vadd.xlane.f32.xlu0 %v2427
    %v2928 = vpop.xlane.xlu0 %2927
    %2929 = vadd.xlane.f32.xlu0 %v2428
    %v2930 = vpop.xlane.xlu0 %2929
    %2931 = vadd.xlane.f32.xlu0 %v2429
    %v2932 = vpop.xlane.xlu0 %2931
    %2933 = vadd.xlane.f32.xlu0 %v2430
    %v2934 = vpop.xlane.xlu0 %2933
    %2935 = vadd.xlane.f32.xlu0 %v2431
    %v2936 = vpop.xlane.xlu0 %2935
    %2937 = vadd.xlane.f32.xlu0 %v2432
    %v2938 = vpop.xlane.xlu0 %2937
    %2939 = vadd.xlane.f32.xlu0 %v2433
    %v2940 = vpop.xlane.xlu0 %2939
    %2941 = vadd.xlane.f32.xlu0 %v2434
    %v2942 = vpop.xlane.xlu0 %2941
    %2943 = vadd.xlane.f32.xlu0 %v2435
    %v2944 = vpop.xlane.xlu0 %2943
    %2945 = vadd.xlane.f32.xlu0 %v2436
    %v2946 = vpop.xlane.xlu0 %2945
    %2947 = vadd.xlane.f32.xlu0 %v2437
    %v2948 = vpop.xlane.xlu0 %2947
    %2949 = vadd.xlane.f32.xlu0 %v2438
    %v2950 = vpop.xlane.xlu0 %2949
    %v3207 = vlaneseq
    %v3208 = vshrl.u32 %v3207, 7
    %v3209 = vsub.s32 %v277, %v3208
    %v3210 = vrot.slane %v2440, %v3209
    %v3211 = vadd.s32 %v277, 4294967288
    %v3212 = vlaneseq
    %v3213 = vshrl.u32 %v3212, 7
    %v3214 = vsub.s32 %v3211, %v3213
    %v3215 = vrot.slane %v2442, %v3214
    %vm3216 = vcmask 130112
    %v3217 = vsel %vm3216, %v3215, %v3210
    %v3218 = vadd.s32 %v277, 4294967280
    %v3219 = vlaneseq
    %v3220 = vshrl.u32 %v3219, 7
    %v3221 = vsub.s32 %v3218, %v3220
    %v3222 = vrot.slane %v2444, %v3221
    %vm3223 = vcmask 195712
    %v3224 = vsel %vm3223, %v3222, %v3217
    %v3225 = vadd.s32 %v277, 4294967272
    %v3226 = vlaneseq
    %v3227 = vshrl.u32 %v3226, 7
    %v3228 = vsub.s32 %v3225, %v3227
    %v3229 = vrot.slane %v2446, %v3228
    %vm3230 = vcmask 261312
    %v3231 = vsel %vm3230, %v3229, %v3224
    %v3232 = vadd.s32 %v277, 4294967264
    %v3233 = vlaneseq
    %v3234 = vshrl.u32 %v3233, 7
    %v3235 = vsub.s32 %v3232, %v3234
    %v3236 = vrot.slane %v2448, %v3235
    %vm3237 = vcmask 326912
    %v3238 = vsel %vm3237, %v3236, %v3231
    %v3239 = vadd.s32 %v277, 4294967256
    %v3240 = vlaneseq
    %v3241 = vshrl.u32 %v3240, 7
    %v3242 = vsub.s32 %v3239, %v3241
    %v3243 = vrot.slane %v2450, %v3242
    %vm3244 = vcmask 392512
    %v3245 = vsel %vm3244, %v3243, %v3238
    %v3246 = vadd.s32 %v277, 4294967248
    %v3247 = vlaneseq
    %v3248 = vshrl.u32 %v3247, 7
    %v3249 = vsub.s32 %v3246, %v3248
    %v3250 = vrot.slane %v2452, %v3249
    %vm3251 = vcmask 458112
    %v3252 = vsel %vm3251, %v3250, %v3245
    %v3253 = vadd.s32 %v277, 4294967240
    %v3254 = vlaneseq
    %v3255 = vshrl.u32 %v3254, 7
    %v3256 = vsub.s32 %v3253, %v3255
    %v3257 = vrot.slane %v2454, %v3256
    %vm3258 = vcmask 523712
    %v3259 = vsel %vm3258, %v3257, %v3252
    %v3260 = vadd.s32 %v277, 4294967232
    %v3261 = vlaneseq
    %v3262 = vshrl.u32 %v3261, 7
    %v3263 = vsub.s32 %v3260, %v3262
    %v3264 = vrot.slane %v2456, %v3263
    %vm3265 = vcmask 589312
    %v3266 = vsel %vm3265, %v3264, %v3259
    %v3267 = vadd.s32 %v277, 4294967224
    %v3268 = vlaneseq
    %v3269 = vshrl.u32 %v3268, 7
    %v3270 = vsub.s32 %v3267, %v3269
    %v3271 = vrot.slane %v2458, %v3270
    %vm3272 = vcmask 654912
    %v3273 = vsel %vm3272, %v3271, %v3266
    %v3274 = vadd.s32 %v277, 4294967216
    %v3275 = vlaneseq
    %v3276 = vshrl.u32 %v3275, 7
    %v3277 = vsub.s32 %v3274, %v3276
    %v3278 = vrot.slane %v2460, %v3277
    %vm3279 = vcmask 720512
    %v3280 = vsel %vm3279, %v3278, %v3273
    %v3281 = vadd.s32 %v277, 4294967208
    %v3282 = vlaneseq
    %v3283 = vshrl.u32 %v3282, 7
    %v3284 = vsub.s32 %v3281, %v3283
    %v3285 = vrot.slane %v2462, %v3284
    %vm3286 = vcmask 786112
    %v3287 = vsel %vm3286, %v3285, %v3280
    %v3288 = vadd.s32 %v277, 4294967200
    %v3289 = vlaneseq
    %v3290 = vshrl.u32 %v3289, 7
    %v3291 = vsub.s32 %v3288, %v3290
    %v3292 = vrot.slane %v2464, %v3291
    %vm3293 = vcmask 851712
    %v3294 = vsel %vm3293, %v3292, %v3287
    %v3295 = vadd.s32 %v277, 4294967192
    %v3296 = vlaneseq
    %v3297 = vshrl.u32 %v3296, 7
    %v3298 = vsub.s32 %v3295, %v3297
    %v3299 = vrot.slane %v2466, %v3298
    %vm3300 = vcmask 917312
    %v3301 = vsel %vm3300, %v3299, %v3294
    %v3302 = vadd.s32 %v277, 4294967184
    %v3303 = vlaneseq
    %v3304 = vshrl.u32 %v3303, 7
    %v3305 = vsub.s32 %v3302, %v3304
    %v3306 = vrot.slane %v2468, %v3305
    %vm3307 = vcmask 982912
    %v3308 = vsel %vm3307, %v3306, %v3301
    %v3309 = vadd.s32 %v277, 4294967176
    %v3310 = vlaneseq
    %v3311 = vshrl.u32 %v3310, 7
    %v3312 = vsub.s32 %v3309, %v3311
    %v3313 = vrot.slane %v2470, %v3312
    %vm3314 = vcmask 1048512
    %v3315 = vsel %vm3314, %v3313, %v3308
    %v3316 = vlaneseq
    %v3317 = vshrl.u32 %v3316, 7
    %v3318 = vsub.s32 %v277, %v3317
    %v3319 = vrot.slane %v2472, %v3318
    %v3320 = vlaneseq
    %v3321 = vshrl.u32 %v3320, 7
    %v3322 = vsub.s32 %v3211, %v3321
    %v3323 = vrot.slane %v2474, %v3322
    %v3324 = vsel %vm3216, %v3323, %v3319
    %v3325 = vlaneseq
    %v3326 = vshrl.u32 %v3325, 7
    %v3327 = vsub.s32 %v3218, %v3326
    %v3328 = vrot.slane %v2476, %v3327
    %v3329 = vsel %vm3223, %v3328, %v3324
    %v3330 = vlaneseq
    %v3331 = vshrl.u32 %v3330, 7
    %v3332 = vsub.s32 %v3225, %v3331
    %v3333 = vrot.slane %v2478, %v3332
    %v3334 = vsel %vm3230, %v3333, %v3329
    %v3335 = vlaneseq
    %v3336 = vshrl.u32 %v3335, 7
    %v3337 = vsub.s32 %v3232, %v3336
    %v3338 = vrot.slane %v2480, %v3337
    %v3339 = vsel %vm3237, %v3338, %v3334
    %v3340 = vlaneseq
    %v3341 = vshrl.u32 %v3340, 7
    %v3342 = vsub.s32 %v3239, %v3341
    %v3343 = vrot.slane %v2482, %v3342
    %v3344 = vsel %vm3244, %v3343, %v3339
    %v3345 = vlaneseq
    %v3346 = vshrl.u32 %v3345, 7
    %v3347 = vsub.s32 %v3246, %v3346
    %v3348 = vrot.slane %v2484, %v3347
    %v3349 = vsel %vm3251, %v3348, %v3344
    %v3350 = vlaneseq
    %v3351 = vshrl.u32 %v3350, 7
    %v3352 = vsub.s32 %v3253, %v3351
    %v3353 = vrot.slane %v2486, %v3352
    %v3354 = vsel %vm3258, %v3353, %v3349
    %v3355 = vlaneseq
    %v3356 = vshrl.u32 %v3355, 7
    %v3357 = vsub.s32 %v3260, %v3356
    %v3358 = vrot.slane %v2488, %v3357
    %v3359 = vsel %vm3265, %v3358, %v3354
    %v3360 = vlaneseq
    %v3361 = vshrl.u32 %v3360, 7
    %v3362 = vsub.s32 %v3267, %v3361
    %v3363 = vrot.slane %v2490, %v3362
    %v3364 = vsel %vm3272, %v3363, %v3359
    %v3365 = vlaneseq
    %v3366 = vshrl.u32 %v3365, 7
    %v3367 = vsub.s32 %v3274, %v3366
    %v3368 = vrot.slane %v2492, %v3367
    %v3369 = vsel %vm3279, %v3368, %v3364
    %v3370 = vlaneseq
    %v3371 = vshrl.u32 %v3370, 7
    %v3372 = vsub.s32 %v3281, %v3371
    %v3373 = vrot.slane %v2494, %v3372
    %v3374 = vsel %vm3286, %v3373, %v3369
    %v3375 = vlaneseq
    %v3376 = vshrl.u32 %v3375, 7
    %v3377 = vsub.s32 %v3288, %v3376
    %v3378 = vrot.slane %v2496, %v3377
    %v3379 = vsel %vm3293, %v3378, %v3374
    %v3380 = vlaneseq
    %v3381 = vshrl.u32 %v3380, 7
    %v3382 = vsub.s32 %v3295, %v3381
    %v3383 = vrot.slane %v2498, %v3382
    %v3384 = vsel %vm3300, %v3383, %v3379
    %v3385 = vlaneseq
    %v3386 = vshrl.u32 %v3385, 7
    %v3387 = vsub.s32 %v3302, %v3386
    %v3388 = vrot.slane %v2500, %v3387
    %v3389 = vsel %vm3307, %v3388, %v3384
    %v3390 = vlaneseq
    %v3391 = vshrl.u32 %v3390, 7
    %v3392 = vsub.s32 %v3309, %v3391
    %v3393 = vrot.slane %v2502, %v3392
    %v3394 = vsel %vm3314, %v3393, %v3389
    %v3395 = vlaneseq
    %v3396 = vshrl.u32 %v3395, 7
    %v3397 = vsub.s32 %v277, %v3396
    %v3398 = vrot.slane %v2504, %v3397
    %v3399 = vlaneseq
    %v3400 = vshrl.u32 %v3399, 7
    %v3401 = vsub.s32 %v3211, %v3400
    %v3402 = vrot.slane %v2506, %v3401
    %v3403 = vsel %vm3216, %v3402, %v3398
    %v3404 = vlaneseq
    %v3405 = vshrl.u32 %v3404, 7
    %v3406 = vsub.s32 %v3218, %v3405
    %v3407 = vrot.slane %v2508, %v3406
    %v3408 = vsel %vm3223, %v3407, %v3403
    %v3409 = vlaneseq
    %v3410 = vshrl.u32 %v3409, 7
    %v3411 = vsub.s32 %v3225, %v3410
    %v3412 = vrot.slane %v2510, %v3411
    %v3413 = vsel %vm3230, %v3412, %v3408
    %v3414 = vlaneseq
    %v3415 = vshrl.u32 %v3414, 7
    %v3416 = vsub.s32 %v3232, %v3415
    %v3417 = vrot.slane %v2512, %v3416
    %v3418 = vsel %vm3237, %v3417, %v3413
    %v3419 = vlaneseq
    %v3420 = vshrl.u32 %v3419, 7
    %v3421 = vsub.s32 %v3239, %v3420
    %v3422 = vrot.slane %v2514, %v3421
    %v3423 = vsel %vm3244, %v3422, %v3418
    %v3424 = vlaneseq
    %v3425 = vshrl.u32 %v3424, 7
    %v3426 = vsub.s32 %v3246, %v3425
    %v3427 = vrot.slane %v2516, %v3426
    %v3428 = vsel %vm3251, %v3427, %v3423
    %v3429 = vlaneseq
    %v3430 = vshrl.u32 %v3429, 7
    %v3431 = vsub.s32 %v3253, %v3430
    %v3432 = vrot.slane %v2518, %v3431
    %v3433 = vsel %vm3258, %v3432, %v3428
    %v3434 = vlaneseq
    %v3435 = vshrl.u32 %v3434, 7
    %v3436 = vsub.s32 %v3260, %v3435
    %v3437 = vrot.slane %v2520, %v3436
    %v3438 = vsel %vm3265, %v3437, %v3433
    %v3439 = vlaneseq
    %v3440 = vshrl.u32 %v3439, 7
    %v3441 = vsub.s32 %v3267, %v3440
    %v3442 = vrot.slane %v2522, %v3441
    %v3443 = vsel %vm3272, %v3442, %v3438
    %v3444 = vlaneseq
    %v3445 = vshrl.u32 %v3444, 7
    %v3446 = vsub.s32 %v3274, %v3445
    %v3447 = vrot.slane %v2524, %v3446
    %v3448 = vsel %vm3279, %v3447, %v3443
    %v3449 = vlaneseq
    %v3450 = vshrl.u32 %v3449, 7
    %v3451 = vsub.s32 %v3281, %v3450
    %v3452 = vrot.slane %v2526, %v3451
    %v3453 = vsel %vm3286, %v3452, %v3448
    %v3454 = vlaneseq
    %v3455 = vshrl.u32 %v3454, 7
    %v3456 = vsub.s32 %v3288, %v3455
    %v3457 = vrot.slane %v2528, %v3456
    %v3458 = vsel %vm3293, %v3457, %v3453
    %v3459 = vlaneseq
    %v3460 = vshrl.u32 %v3459, 7
    %v3461 = vsub.s32 %v3295, %v3460
    %v3462 = vrot.slane %v2530, %v3461
    %v3463 = vsel %vm3300, %v3462, %v3458
    %v3464 = vlaneseq
    %v3465 = vshrl.u32 %v3464, 7
    %v3466 = vsub.s32 %v3302, %v3465
    %v3467 = vrot.slane %v2532, %v3466
    %v3468 = vsel %vm3307, %v3467, %v3463
    %v3469 = vlaneseq
    %v3470 = vshrl.u32 %v3469, 7
    %v3471 = vsub.s32 %v3309, %v3470
    %v3472 = vrot.slane %v2534, %v3471
    %v3473 = vsel %vm3314, %v3472, %v3468
    %v3474 = vlaneseq
    %v3475 = vshrl.u32 %v3474, 7
    %v3476 = vsub.s32 %v277, %v3475
    %v3477 = vrot.slane %v2536, %v3476
    %v3478 = vlaneseq
    %v3479 = vshrl.u32 %v3478, 7
    %v3480 = vsub.s32 %v3211, %v3479
    %v3481 = vrot.slane %v2538, %v3480
    %v3482 = vsel %vm3216, %v3481, %v3477
    %v3483 = vlaneseq
    %v3484 = vshrl.u32 %v3483, 7
    %v3485 = vsub.s32 %v3218, %v3484
    %v3486 = vrot.slane %v2540, %v3485
    %v3487 = vsel %vm3223, %v3486, %v3482
    %v3488 = vlaneseq
    %v3489 = vshrl.u32 %v3488, 7
    %v3490 = vsub.s32 %v3225, %v3489
    %v3491 = vrot.slane %v2542, %v3490
    %v3492 = vsel %vm3230, %v3491, %v3487
    %v3493 = vlaneseq
    %v3494 = vshrl.u32 %v3493, 7
    %v3495 = vsub.s32 %v3232, %v3494
    %v3496 = vrot.slane %v2544, %v3495
    %v3497 = vsel %vm3237, %v3496, %v3492
    %v3498 = vlaneseq
    %v3499 = vshrl.u32 %v3498, 7
    %v3500 = vsub.s32 %v3239, %v3499
    %v3501 = vrot.slane %v2546, %v3500
    %v3502 = vsel %vm3244, %v3501, %v3497
    %v3503 = vlaneseq
    %v3504 = vshrl.u32 %v3503, 7
    %v3505 = vsub.s32 %v3246, %v3504
    %v3506 = vrot.slane %v2548, %v3505
    %v3507 = vsel %vm3251, %v3506, %v3502
    %v3508 = vlaneseq
    %v3509 = vshrl.u32 %v3508, 7
    %v3510 = vsub.s32 %v3253, %v3509
    %v3511 = vrot.slane %v2550, %v3510
    %v3512 = vsel %vm3258, %v3511, %v3507
    %v3513 = vlaneseq
    %v3514 = vshrl.u32 %v3513, 7
    %v3515 = vsub.s32 %v3260, %v3514
    %v3516 = vrot.slane %v2552, %v3515
    %v3517 = vsel %vm3265, %v3516, %v3512
    %v3518 = vlaneseq
    %v3519 = vshrl.u32 %v3518, 7
    %v3520 = vsub.s32 %v3267, %v3519
    %v3521 = vrot.slane %v2554, %v3520
    %v3522 = vsel %vm3272, %v3521, %v3517
    %v3523 = vlaneseq
    %v3524 = vshrl.u32 %v3523, 7
    %v3525 = vsub.s32 %v3274, %v3524
    %v3526 = vrot.slane %v2556, %v3525
    %v3527 = vsel %vm3279, %v3526, %v3522
    %v3528 = vlaneseq
    %v3529 = vshrl.u32 %v3528, 7
    %v3530 = vsub.s32 %v3281, %v3529
    %v3531 = vrot.slane %v2558, %v3530
    %v3532 = vsel %vm3286, %v3531, %v3527
    %v3533 = vlaneseq
    %v3534 = vshrl.u32 %v3533, 7
    %v3535 = vsub.s32 %v3288, %v3534
    %v3536 = vrot.slane %v2560, %v3535
    %v3537 = vsel %vm3293, %v3536, %v3532
    %v3538 = vlaneseq
    %v3539 = vshrl.u32 %v3538, 7
    %v3540 = vsub.s32 %v3295, %v3539
    %v3541 = vrot.slane %v2562, %v3540
    %v3542 = vsel %vm3300, %v3541, %v3537
    %v3543 = vlaneseq
    %v3544 = vshrl.u32 %v3543, 7
    %v3545 = vsub.s32 %v3302, %v3544
    %v3546 = vrot.slane %v2564, %v3545
    %v3547 = vsel %vm3307, %v3546, %v3542
    %v3548 = vlaneseq
    %v3549 = vshrl.u32 %v3548, 7
    %v3550 = vsub.s32 %v3309, %v3549
    %v3551 = vrot.slane %v2566, %v3550
    %v3552 = vsel %vm3314, %v3551, %v3547
    %v3553 = vlaneseq
    %v3554 = vshrl.u32 %v3553, 7
    %v3555 = vsub.s32 %v277, %v3554
    %v3556 = vrot.slane %v2568, %v3555
    %v3557 = vlaneseq
    %v3558 = vshrl.u32 %v3557, 7
    %v3559 = vsub.s32 %v3211, %v3558
    %v3560 = vrot.slane %v2570, %v3559
    %v3561 = vsel %vm3216, %v3560, %v3556
    %v3562 = vlaneseq
    %v3563 = vshrl.u32 %v3562, 7
    %v3564 = vsub.s32 %v3218, %v3563
    %v3565 = vrot.slane %v2572, %v3564
    %v3566 = vsel %vm3223, %v3565, %v3561
    %v3567 = vlaneseq
    %v3568 = vshrl.u32 %v3567, 7
    %v3569 = vsub.s32 %v3225, %v3568
    %v3570 = vrot.slane %v2574, %v3569
    %v3571 = vsel %vm3230, %v3570, %v3566
    %v3572 = vlaneseq
    %v3573 = vshrl.u32 %v3572, 7
    %v3574 = vsub.s32 %v3232, %v3573
    %v3575 = vrot.slane %v2576, %v3574
    %v3576 = vsel %vm3237, %v3575, %v3571
    %v3577 = vlaneseq
    %v3578 = vshrl.u32 %v3577, 7
    %v3579 = vsub.s32 %v3239, %v3578
    %v3580 = vrot.slane %v2578, %v3579
    %v3581 = vsel %vm3244, %v3580, %v3576
    %v3582 = vlaneseq
    %v3583 = vshrl.u32 %v3582, 7
    %v3584 = vsub.s32 %v3246, %v3583
    %v3585 = vrot.slane %v2580, %v3584
    %v3586 = vsel %vm3251, %v3585, %v3581
    %v3587 = vlaneseq
    %v3588 = vshrl.u32 %v3587, 7
    %v3589 = vsub.s32 %v3253, %v3588
    %v3590 = vrot.slane %v2582, %v3589
    %v3591 = vsel %vm3258, %v3590, %v3586
    %v3592 = vlaneseq
    %v3593 = vshrl.u32 %v3592, 7
    %v3594 = vsub.s32 %v3260, %v3593
    %v3595 = vrot.slane %v2584, %v3594
    %v3596 = vsel %vm3265, %v3595, %v3591
    %v3597 = vlaneseq
    %v3598 = vshrl.u32 %v3597, 7
    %v3599 = vsub.s32 %v3267, %v3598
    %v3600 = vrot.slane %v2586, %v3599
    %v3601 = vsel %vm3272, %v3600, %v3596
    %v3602 = vlaneseq
    %v3603 = vshrl.u32 %v3602, 7
    %v3604 = vsub.s32 %v3274, %v3603
    %v3605 = vrot.slane %v2588, %v3604
    %v3606 = vsel %vm3279, %v3605, %v3601
    %v3607 = vlaneseq
    %v3608 = vshrl.u32 %v3607, 7
    %v3609 = vsub.s32 %v3281, %v3608
    %v3610 = vrot.slane %v2590, %v3609
    %v3611 = vsel %vm3286, %v3610, %v3606
    %v3612 = vlaneseq
    %v3613 = vshrl.u32 %v3612, 7
    %v3614 = vsub.s32 %v3288, %v3613
    %v3615 = vrot.slane %v2592, %v3614
    %v3616 = vsel %vm3293, %v3615, %v3611
    %v3617 = vlaneseq
    %v3618 = vshrl.u32 %v3617, 7
    %v3619 = vsub.s32 %v3295, %v3618
    %v3620 = vrot.slane %v2594, %v3619
    %v3621 = vsel %vm3300, %v3620, %v3616
    %v3622 = vlaneseq
    %v3623 = vshrl.u32 %v3622, 7
    %v3624 = vsub.s32 %v3302, %v3623
    %v3625 = vrot.slane %v2596, %v3624
    %v3626 = vsel %vm3307, %v3625, %v3621
    %v3627 = vlaneseq
    %v3628 = vshrl.u32 %v3627, 7
    %v3629 = vsub.s32 %v3309, %v3628
    %v3630 = vrot.slane %v2598, %v3629
    %v3631 = vsel %vm3314, %v3630, %v3626
    %v3632 = vlaneseq
    %v3633 = vshrl.u32 %v3632, 7
    %v3634 = vsub.s32 %v277, %v3633
    %v3635 = vrot.slane %v2600, %v3634
    %v3636 = vlaneseq
    %v3637 = vshrl.u32 %v3636, 7
    %v3638 = vsub.s32 %v3211, %v3637
    %v3639 = vrot.slane %v2602, %v3638
    %v3640 = vsel %vm3216, %v3639, %v3635
    %v3641 = vlaneseq
    %v3642 = vshrl.u32 %v3641, 7
    %v3643 = vsub.s32 %v3218, %v3642
    %v3644 = vrot.slane %v2604, %v3643
    %v3645 = vsel %vm3223, %v3644, %v3640
    %v3646 = vlaneseq
    %v3647 = vshrl.u32 %v3646, 7
    %v3648 = vsub.s32 %v3225, %v3647
    %v3649 = vrot.slane %v2606, %v3648
    %v3650 = vsel %vm3230, %v3649, %v3645
    %v3651 = vlaneseq
    %v3652 = vshrl.u32 %v3651, 7
    %v3653 = vsub.s32 %v3232, %v3652
    %v3654 = vrot.slane %v2608, %v3653
    %v3655 = vsel %vm3237, %v3654, %v3650
    %v3656 = vlaneseq
    %v3657 = vshrl.u32 %v3656, 7
    %v3658 = vsub.s32 %v3239, %v3657
    %v3659 = vrot.slane %v2610, %v3658
    %v3660 = vsel %vm3244, %v3659, %v3655
    %v3661 = vlaneseq
    %v3662 = vshrl.u32 %v3661, 7
    %v3663 = vsub.s32 %v3246, %v3662
    %v3664 = vrot.slane %v2612, %v3663
    %v3665 = vsel %vm3251, %v3664, %v3660
    %v3666 = vlaneseq
    %v3667 = vshrl.u32 %v3666, 7
    %v3668 = vsub.s32 %v3253, %v3667
    %v3669 = vrot.slane %v2614, %v3668
    %v3670 = vsel %vm3258, %v3669, %v3665
    %v3671 = vlaneseq
    %v3672 = vshrl.u32 %v3671, 7
    %v3673 = vsub.s32 %v3260, %v3672
    %v3674 = vrot.slane %v2616, %v3673
    %v3675 = vsel %vm3265, %v3674, %v3670
    %v3676 = vlaneseq
    %v3677 = vshrl.u32 %v3676, 7
    %v3678 = vsub.s32 %v3267, %v3677
    %v3679 = vrot.slane %v2618, %v3678
    %v3680 = vsel %vm3272, %v3679, %v3675
    %v3681 = vlaneseq
    %v3682 = vshrl.u32 %v3681, 7
    %v3683 = vsub.s32 %v3274, %v3682
    %v3684 = vrot.slane %v2620, %v3683
    %v3685 = vsel %vm3279, %v3684, %v3680
    %v3686 = vlaneseq
    %v3687 = vshrl.u32 %v3686, 7
    %v3688 = vsub.s32 %v3281, %v3687
    %v3689 = vrot.slane %v2622, %v3688
    %v3690 = vsel %vm3286, %v3689, %v3685
    %v3691 = vlaneseq
    %v3692 = vshrl.u32 %v3691, 7
    %v3693 = vsub.s32 %v3288, %v3692
    %v3694 = vrot.slane %v2624, %v3693
    %v3695 = vsel %vm3293, %v3694, %v3690
    %v3696 = vlaneseq
    %v3697 = vshrl.u32 %v3696, 7
    %v3698 = vsub.s32 %v3295, %v3697
    %v3699 = vrot.slane %v2626, %v3698
    %v3700 = vsel %vm3300, %v3699, %v3695
    %v3701 = vlaneseq
    %v3702 = vshrl.u32 %v3701, 7
    %v3703 = vsub.s32 %v3302, %v3702
    %v3704 = vrot.slane %v2628, %v3703
    %v3705 = vsel %vm3307, %v3704, %v3700
    %v3706 = vlaneseq
    %v3707 = vshrl.u32 %v3706, 7
    %v3708 = vsub.s32 %v3309, %v3707
    %v3709 = vrot.slane %v2630, %v3708
    %v3710 = vsel %vm3314, %v3709, %v3705
    %v3711 = vlaneseq
    %v3712 = vshrl.u32 %v3711, 7
    %v3713 = vsub.s32 %v277, %v3712
    %v3714 = vrot.slane %v2632, %v3713
    %v3715 = vlaneseq
    %v3716 = vshrl.u32 %v3715, 7
    %v3717 = vsub.s32 %v3211, %v3716
    %v3718 = vrot.slane %v2634, %v3717
    %v3719 = vsel %vm3216, %v3718, %v3714
    %v3720 = vlaneseq
    %v3721 = vshrl.u32 %v3720, 7
    %v3722 = vsub.s32 %v3218, %v3721
    %v3723 = vrot.slane %v2636, %v3722
    %v3724 = vsel %vm3223, %v3723, %v3719
    %v3725 = vlaneseq
    %v3726 = vshrl.u32 %v3725, 7
    %v3727 = vsub.s32 %v3225, %v3726
    %v3728 = vrot.slane %v2638, %v3727
    %v3729 = vsel %vm3230, %v3728, %v3724
    %v3730 = vlaneseq
    %v3731 = vshrl.u32 %v3730, 7
    %v3732 = vsub.s32 %v3232, %v3731
    %v3733 = vrot.slane %v2640, %v3732
    %v3734 = vsel %vm3237, %v3733, %v3729
    %v3735 = vlaneseq
    %v3736 = vshrl.u32 %v3735, 7
    %v3737 = vsub.s32 %v3239, %v3736
    %v3738 = vrot.slane %v2642, %v3737
    %v3739 = vsel %vm3244, %v3738, %v3734
    %v3740 = vlaneseq
    %v3741 = vshrl.u32 %v3740, 7
    %v3742 = vsub.s32 %v3246, %v3741
    %v3743 = vrot.slane %v2644, %v3742
    %v3744 = vsel %vm3251, %v3743, %v3739
    %v3745 = vlaneseq
    %v3746 = vshrl.u32 %v3745, 7
    %v3747 = vsub.s32 %v3253, %v3746
    %v3748 = vrot.slane %v2646, %v3747
    %v3749 = vsel %vm3258, %v3748, %v3744
    %v3750 = vlaneseq
    %v3751 = vshrl.u32 %v3750, 7
    %v3752 = vsub.s32 %v3260, %v3751
    %v3753 = vrot.slane %v2648, %v3752
    %v3754 = vsel %vm3265, %v3753, %v3749
    %v3755 = vlaneseq
    %v3756 = vshrl.u32 %v3755, 7
    %v3757 = vsub.s32 %v3267, %v3756
    %v3758 = vrot.slane %v2650, %v3757
    %v3759 = vsel %vm3272, %v3758, %v3754
    %v3760 = vlaneseq
    %v3761 = vshrl.u32 %v3760, 7
    %v3762 = vsub.s32 %v3274, %v3761
    %v3763 = vrot.slane %v2652, %v3762
    %v3764 = vsel %vm3279, %v3763, %v3759
    %v3765 = vlaneseq
    %v3766 = vshrl.u32 %v3765, 7
    %v3767 = vsub.s32 %v3281, %v3766
    %v3768 = vrot.slane %v2654, %v3767
    %v3769 = vsel %vm3286, %v3768, %v3764
    %v3770 = vlaneseq
    %v3771 = vshrl.u32 %v3770, 7
    %v3772 = vsub.s32 %v3288, %v3771
    %v3773 = vrot.slane %v2656, %v3772
    %v3774 = vsel %vm3293, %v3773, %v3769
    %v3775 = vlaneseq
    %v3776 = vshrl.u32 %v3775, 7
    %v3777 = vsub.s32 %v3295, %v3776
    %v3778 = vrot.slane %v2658, %v3777
    %v3779 = vsel %vm3300, %v3778, %v3774
    %v3780 = vlaneseq
    %v3781 = vshrl.u32 %v3780, 7
    %v3782 = vsub.s32 %v3302, %v3781
    %v3783 = vrot.slane %v2660, %v3782
    %v3784 = vsel %vm3307, %v3783, %v3779
    %v3785 = vlaneseq
    %v3786 = vshrl.u32 %v3785, 7
    %v3787 = vsub.s32 %v3309, %v3786
    %v3788 = vrot.slane %v2662, %v3787
    %v3789 = vsel %vm3314, %v3788, %v3784
    %v3790 = vlaneseq
    %v3791 = vshrl.u32 %v3790, 7
    %v3792 = vsub.s32 %v277, %v3791
    %v3793 = vrot.slane %v2664, %v3792
    %v3794 = vlaneseq
    %v3795 = vshrl.u32 %v3794, 7
    %v3796 = vsub.s32 %v3211, %v3795
    %v3797 = vrot.slane %v2666, %v3796
    %v3798 = vsel %vm3216, %v3797, %v3793
    %v3799 = vlaneseq
    %v3800 = vshrl.u32 %v3799, 7
    %v3801 = vsub.s32 %v3218, %v3800
    %v3802 = vrot.slane %v2668, %v3801
    %v3803 = vsel %vm3223, %v3802, %v3798
    %v3804 = vlaneseq
    %v3805 = vshrl.u32 %v3804, 7
    %v3806 = vsub.s32 %v3225, %v3805
    %v3807 = vrot.slane %v2670, %v3806
    %v3808 = vsel %vm3230, %v3807, %v3803
    %v3809 = vlaneseq
    %v3810 = vshrl.u32 %v3809, 7
    %v3811 = vsub.s32 %v3232, %v3810
    %v3812 = vrot.slane %v2672, %v3811
    %v3813 = vsel %vm3237, %v3812, %v3808
    %v3814 = vlaneseq
    %v3815 = vshrl.u32 %v3814, 7
    %v3816 = vsub.s32 %v3239, %v3815
    %v3817 = vrot.slane %v2674, %v3816
    %v3818 = vsel %vm3244, %v3817, %v3813
    %v3819 = vlaneseq
    %v3820 = vshrl.u32 %v3819, 7
    %v3821 = vsub.s32 %v3246, %v3820
    %v3822 = vrot.slane %v2676, %v3821
    %v3823 = vsel %vm3251, %v3822, %v3818
    %v3824 = vlaneseq
    %v3825 = vshrl.u32 %v3824, 7
    %v3826 = vsub.s32 %v3253, %v3825
    %v3827 = vrot.slane %v2678, %v3826
    %v3828 = vsel %vm3258, %v3827, %v3823
    %v3829 = vlaneseq
    %v3830 = vshrl.u32 %v3829, 7
    %v3831 = vsub.s32 %v3260, %v3830
    %v3832 = vrot.slane %v2680, %v3831
    %v3833 = vsel %vm3265, %v3832, %v3828
    %v3834 = vlaneseq
    %v3835 = vshrl.u32 %v3834, 7
    %v3836 = vsub.s32 %v3267, %v3835
    %v3837 = vrot.slane %v2682, %v3836
    %v3838 = vsel %vm3272, %v3837, %v3833
    %v3839 = vlaneseq
    %v3840 = vshrl.u32 %v3839, 7
    %v3841 = vsub.s32 %v3274, %v3840
    %v3842 = vrot.slane %v2684, %v3841
    %v3843 = vsel %vm3279, %v3842, %v3838
    %v3844 = vlaneseq
    %v3845 = vshrl.u32 %v3844, 7
    %v3846 = vsub.s32 %v3281, %v3845
    %v3847 = vrot.slane %v2686, %v3846
    %v3848 = vsel %vm3286, %v3847, %v3843
    %v3849 = vlaneseq
    %v3850 = vshrl.u32 %v3849, 7
    %v3851 = vsub.s32 %v3288, %v3850
    %v3852 = vrot.slane %v2688, %v3851
    %v3853 = vsel %vm3293, %v3852, %v3848
    %v3854 = vlaneseq
    %v3855 = vshrl.u32 %v3854, 7
    %v3856 = vsub.s32 %v3295, %v3855
    %v3857 = vrot.slane %v2690, %v3856
    %v3858 = vsel %vm3300, %v3857, %v3853
    %v3859 = vlaneseq
    %v3860 = vshrl.u32 %v3859, 7
    %v3861 = vsub.s32 %v3302, %v3860
    %v3862 = vrot.slane %v2692, %v3861
    %v3863 = vsel %vm3307, %v3862, %v3858
    %v3864 = vlaneseq
    %v3865 = vshrl.u32 %v3864, 7
    %v3866 = vsub.s32 %v3309, %v3865
    %v3867 = vrot.slane %v2694, %v3866
    %v3868 = vsel %vm3314, %v3867, %v3863
    %v3869 = vlaneseq
    %v3870 = vshrl.u32 %v3869, 7
    %v3871 = vsub.s32 %v277, %v3870
    %v3872 = vrot.slane %v2696, %v3871
    %v3873 = vlaneseq
    %v3874 = vshrl.u32 %v3873, 7
    %v3875 = vsub.s32 %v3211, %v3874
    %v3876 = vrot.slane %v2698, %v3875
    %v3877 = vsel %vm3216, %v3876, %v3872
    %v3878 = vlaneseq
    %v3879 = vshrl.u32 %v3878, 7
    %v3880 = vsub.s32 %v3218, %v3879
    %v3881 = vrot.slane %v2700, %v3880
    %v3882 = vsel %vm3223, %v3881, %v3877
    %v3883 = vlaneseq
    %v3884 = vshrl.u32 %v3883, 7
    %v3885 = vsub.s32 %v3225, %v3884
    %v3886 = vrot.slane %v2702, %v3885
    %v3887 = vsel %vm3230, %v3886, %v3882
    %v3888 = vlaneseq
    %v3889 = vshrl.u32 %v3888, 7
    %v3890 = vsub.s32 %v3232, %v3889
    %v3891 = vrot.slane %v2704, %v3890
    %v3892 = vsel %vm3237, %v3891, %v3887
    %v3893 = vlaneseq
    %v3894 = vshrl.u32 %v3893, 7
    %v3895 = vsub.s32 %v3239, %v3894
    %v3896 = vrot.slane %v2706, %v3895
    %v3897 = vsel %vm3244, %v3896, %v3892
    %v3898 = vlaneseq
    %v3899 = vshrl.u32 %v3898, 7
    %v3900 = vsub.s32 %v3246, %v3899
    %v3901 = vrot.slane %v2708, %v3900
    %v3902 = vsel %vm3251, %v3901, %v3897
    %v3903 = vlaneseq
    %v3904 = vshrl.u32 %v3903, 7
    %v3905 = vsub.s32 %v3253, %v3904
    %v3906 = vrot.slane %v2710, %v3905
    %v3907 = vsel %vm3258, %v3906, %v3902
    %v3908 = vlaneseq
    %v3909 = vshrl.u32 %v3908, 7
    %v3910 = vsub.s32 %v3260, %v3909
    %v3911 = vrot.slane %v2712, %v3910
    %v3912 = vsel %vm3265, %v3911, %v3907
    %v3913 = vlaneseq
    %v3914 = vshrl.u32 %v3913, 7
    %v3915 = vsub.s32 %v3267, %v3914
    %v3916 = vrot.slane %v2714, %v3915
    %v3917 = vsel %vm3272, %v3916, %v3912
    %v3918 = vlaneseq
    %v3919 = vshrl.u32 %v3918, 7
    %v3920 = vsub.s32 %v3274, %v3919
    %v3921 = vrot.slane %v2716, %v3920
    %v3922 = vsel %vm3279, %v3921, %v3917
    %v3923 = vlaneseq
    %v3924 = vshrl.u32 %v3923, 7
    %v3925 = vsub.s32 %v3281, %v3924
    %v3926 = vrot.slane %v2718, %v3925
    %v3927 = vsel %vm3286, %v3926, %v3922
    %v3928 = vlaneseq
    %v3929 = vshrl.u32 %v3928, 7
    %v3930 = vsub.s32 %v3288, %v3929
    %v3931 = vrot.slane %v2720, %v3930
    %v3932 = vsel %vm3293, %v3931, %v3927
    %v3933 = vlaneseq
    %v3934 = vshrl.u32 %v3933, 7
    %v3935 = vsub.s32 %v3295, %v3934
    %v3936 = vrot.slane %v2722, %v3935
    %v3937 = vsel %vm3300, %v3936, %v3932
    %v3938 = vlaneseq
    %v3939 = vshrl.u32 %v3938, 7
    %v3940 = vsub.s32 %v3302, %v3939
    %v3941 = vrot.slane %v2724, %v3940
    %v3942 = vsel %vm3307, %v3941, %v3937
    %v3943 = vlaneseq
    %v3944 = vshrl.u32 %v3943, 7
    %v3945 = vsub.s32 %v3309, %v3944
    %v3946 = vrot.slane %v2726, %v3945
    %v3947 = vsel %vm3314, %v3946, %v3942
    %v3948 = vlaneseq
    %v3949 = vshrl.u32 %v3948, 7
    %v3950 = vsub.s32 %v277, %v3949
    %v3951 = vrot.slane %v2728, %v3950
    %v3952 = vlaneseq
    %v3953 = vshrl.u32 %v3952, 7
    %v3954 = vsub.s32 %v3211, %v3953
    %v3955 = vrot.slane %v2730, %v3954
    %v3956 = vsel %vm3216, %v3955, %v3951
    %v3957 = vlaneseq
    %v3958 = vshrl.u32 %v3957, 7
    %v3959 = vsub.s32 %v3218, %v3958
    %v3960 = vrot.slane %v2732, %v3959
    %v3961 = vsel %vm3223, %v3960, %v3956
    %v3962 = vlaneseq
    %v3963 = vshrl.u32 %v3962, 7
    %v3964 = vsub.s32 %v3225, %v3963
    %v3965 = vrot.slane %v2734, %v3964
    %v3966 = vsel %vm3230, %v3965, %v3961
    %v3967 = vlaneseq
    %v3968 = vshrl.u32 %v3967, 7
    %v3969 = vsub.s32 %v3232, %v3968
    %v3970 = vrot.slane %v2736, %v3969
    %v3971 = vsel %vm3237, %v3970, %v3966
    %v3972 = vlaneseq
    %v3973 = vshrl.u32 %v3972, 7
    %v3974 = vsub.s32 %v3239, %v3973
    %v3975 = vrot.slane %v2738, %v3974
    %v3976 = vsel %vm3244, %v3975, %v3971
    %v3977 = vlaneseq
    %v3978 = vshrl.u32 %v3977, 7
    %v3979 = vsub.s32 %v3246, %v3978
    %v3980 = vrot.slane %v2740, %v3979
    %v3981 = vsel %vm3251, %v3980, %v3976
    %v3982 = vlaneseq
    %v3983 = vshrl.u32 %v3982, 7
    %v3984 = vsub.s32 %v3253, %v3983
    %v3985 = vrot.slane %v2742, %v3984
    %v3986 = vsel %vm3258, %v3985, %v3981
    %v3987 = vlaneseq
    %v3988 = vshrl.u32 %v3987, 7
    %v3989 = vsub.s32 %v3260, %v3988
    %v3990 = vrot.slane %v2744, %v3989
    %v3991 = vsel %vm3265, %v3990, %v3986
    %v3992 = vlaneseq
    %v3993 = vshrl.u32 %v3992, 7
    %v3994 = vsub.s32 %v3267, %v3993
    %v3995 = vrot.slane %v2746, %v3994
    %v3996 = vsel %vm3272, %v3995, %v3991
    %v3997 = vlaneseq
    %v3998 = vshrl.u32 %v3997, 7
    %v3999 = vsub.s32 %v3274, %v3998
    %v4000 = vrot.slane %v2748, %v3999
    %v4001 = vsel %vm3279, %v4000, %v3996
    %v4002 = vlaneseq
    %v4003 = vshrl.u32 %v4002, 7
    %v4004 = vsub.s32 %v3281, %v4003
    %v4005 = vrot.slane %v2750, %v4004
    %v4006 = vsel %vm3286, %v4005, %v4001
    %v4007 = vlaneseq
    %v4008 = vshrl.u32 %v4007, 7
    %v4009 = vsub.s32 %v3288, %v4008
    %v4010 = vrot.slane %v2752, %v4009
    %v4011 = vsel %vm3293, %v4010, %v4006
    %v4012 = vlaneseq
    %v4013 = vshrl.u32 %v4012, 7
    %v4014 = vsub.s32 %v3295, %v4013
    %v4015 = vrot.slane %v2754, %v4014
    %v4016 = vsel %vm3300, %v4015, %v4011
    %v4017 = vlaneseq
    %v4018 = vshrl.u32 %v4017, 7
    %v4019 = vsub.s32 %v3302, %v4018
    %v4020 = vrot.slane %v2756, %v4019
    %v4021 = vsel %vm3307, %v4020, %v4016
    %v4022 = vlaneseq
    %v4023 = vshrl.u32 %v4022, 7
    %v4024 = vsub.s32 %v3309, %v4023
    %v4025 = vrot.slane %v2758, %v4024
    %v4026 = vsel %vm3314, %v4025, %v4021
    %v4027 = vlaneseq
    %v4028 = vshrl.u32 %v4027, 7
    %v4029 = vsub.s32 %v277, %v4028
    %v4030 = vrot.slane %v2760, %v4029
    %v4031 = vlaneseq
    %v4032 = vshrl.u32 %v4031, 7
    %v4033 = vsub.s32 %v3211, %v4032
    %v4034 = vrot.slane %v2762, %v4033
    %v4035 = vsel %vm3216, %v4034, %v4030
    %v4036 = vlaneseq
    %v4037 = vshrl.u32 %v4036, 7
    %v4038 = vsub.s32 %v3218, %v4037
    %v4039 = vrot.slane %v2764, %v4038
    %v4040 = vsel %vm3223, %v4039, %v4035
    %v4041 = vlaneseq
    %v4042 = vshrl.u32 %v4041, 7
    %v4043 = vsub.s32 %v3225, %v4042
    %v4044 = vrot.slane %v2766, %v4043
    %v4045 = vsel %vm3230, %v4044, %v4040
    %v4046 = vlaneseq
    %v4047 = vshrl.u32 %v4046, 7
    %v4048 = vsub.s32 %v3232, %v4047
    %v4049 = vrot.slane %v2768, %v4048
    %v4050 = vsel %vm3237, %v4049, %v4045
    %v4051 = vlaneseq
    %v4052 = vshrl.u32 %v4051, 7
    %v4053 = vsub.s32 %v3239, %v4052
    %v4054 = vrot.slane %v2770, %v4053
    %v4055 = vsel %vm3244, %v4054, %v4050
    %v4056 = vlaneseq
    %v4057 = vshrl.u32 %v4056, 7
    %v4058 = vsub.s32 %v3246, %v4057
    %v4059 = vrot.slane %v2772, %v4058
    %v4060 = vsel %vm3251, %v4059, %v4055
    %v4061 = vlaneseq
    %v4062 = vshrl.u32 %v4061, 7
    %v4063 = vsub.s32 %v3253, %v4062
    %v4064 = vrot.slane %v2774, %v4063
    %v4065 = vsel %vm3258, %v4064, %v4060
    %v4066 = vlaneseq
    %v4067 = vshrl.u32 %v4066, 7
    %v4068 = vsub.s32 %v3260, %v4067
    %v4069 = vrot.slane %v2776, %v4068
    %v4070 = vsel %vm3265, %v4069, %v4065
    %v4071 = vlaneseq
    %v4072 = vshrl.u32 %v4071, 7
    %v4073 = vsub.s32 %v3267, %v4072
    %v4074 = vrot.slane %v2778, %v4073
    %v4075 = vsel %vm3272, %v4074, %v4070
    %v4076 = vlaneseq
    %v4077 = vshrl.u32 %v4076, 7
    %v4078 = vsub.s32 %v3274, %v4077
    %v4079 = vrot.slane %v2780, %v4078
    %v4080 = vsel %vm3279, %v4079, %v4075
    %v4081 = vlaneseq
    %v4082 = vshrl.u32 %v4081, 7
    %v4083 = vsub.s32 %v3281, %v4082
    %v4084 = vrot.slane %v2782, %v4083
    %v4085 = vsel %vm3286, %v4084, %v4080
    %v4086 = vlaneseq
    %v4087 = vshrl.u32 %v4086, 7
    %v4088 = vsub.s32 %v3288, %v4087
    %v4089 = vrot.slane %v2784, %v4088
    %v4090 = vsel %vm3293, %v4089, %v4085
    %v4091 = vlaneseq
    %v4092 = vshrl.u32 %v4091, 7
    %v4093 = vsub.s32 %v3295, %v4092
    %v4094 = vrot.slane %v2786, %v4093
    %v4095 = vsel %vm3300, %v4094, %v4090
    %v4096 = vlaneseq
    %v4097 = vshrl.u32 %v4096, 7
    %v4098 = vsub.s32 %v3302, %v4097
    %v4099 = vrot.slane %v2788, %v4098
    %v4100 = vsel %vm3307, %v4099, %v4095
    %v4101 = vlaneseq
    %v4102 = vshrl.u32 %v4101, 7
    %v4103 = vsub.s32 %v3309, %v4102
    %v4104 = vrot.slane %v2790, %v4103
    %v4105 = vsel %vm3314, %v4104, %v4100
    %v4106 = vlaneseq
    %v4107 = vshrl.u32 %v4106, 7
    %v4108 = vsub.s32 %v277, %v4107
    %v4109 = vrot.slane %v2792, %v4108
    %v4110 = vlaneseq
    %v4111 = vshrl.u32 %v4110, 7
    %v4112 = vsub.s32 %v3211, %v4111
    %v4113 = vrot.slane %v2794, %v4112
    %v4114 = vsel %vm3216, %v4113, %v4109
    %v4115 = vlaneseq
    %v4116 = vshrl.u32 %v4115, 7
    %v4117 = vsub.s32 %v3218, %v4116
    %v4118 = vrot.slane %v2796, %v4117
    %v4119 = vsel %vm3223, %v4118, %v4114
    %v4120 = vlaneseq
    %v4121 = vshrl.u32 %v4120, 7
    %v4122 = vsub.s32 %v3225, %v4121
    %v4123 = vrot.slane %v2798, %v4122
    %v4124 = vsel %vm3230, %v4123, %v4119
    %v4125 = vlaneseq
    %v4126 = vshrl.u32 %v4125, 7
    %v4127 = vsub.s32 %v3232, %v4126
    %v4128 = vrot.slane %v2800, %v4127
    %v4129 = vsel %vm3237, %v4128, %v4124
    %v4130 = vlaneseq
    %v4131 = vshrl.u32 %v4130, 7
    %v4132 = vsub.s32 %v3239, %v4131
    %v4133 = vrot.slane %v2802, %v4132
    %v4134 = vsel %vm3244, %v4133, %v4129
    %v4135 = vlaneseq
    %v4136 = vshrl.u32 %v4135, 7
    %v4137 = vsub.s32 %v3246, %v4136
    %v4138 = vrot.slane %v2804, %v4137
    %v4139 = vsel %vm3251, %v4138, %v4134
    %v4140 = vlaneseq
    %v4141 = vshrl.u32 %v4140, 7
    %v4142 = vsub.s32 %v3253, %v4141
    %v4143 = vrot.slane %v2806, %v4142
    %v4144 = vsel %vm3258, %v4143, %v4139
    %v4145 = vlaneseq
    %v4146 = vshrl.u32 %v4145, 7
    %v4147 = vsub.s32 %v3260, %v4146
    %v4148 = vrot.slane %v2808, %v4147
    %v4149 = vsel %vm3265, %v4148, %v4144
    %v4150 = vlaneseq
    %v4151 = vshrl.u32 %v4150, 7
    %v4152 = vsub.s32 %v3267, %v4151
    %v4153 = vrot.slane %v2810, %v4152
    %v4154 = vsel %vm3272, %v4153, %v4149
    %v4155 = vlaneseq
    %v4156 = vshrl.u32 %v4155, 7
    %v4157 = vsub.s32 %v3274, %v4156
    %v4158 = vrot.slane %v2812, %v4157
    %v4159 = vsel %vm3279, %v4158, %v4154
    %v4160 = vlaneseq
    %v4161 = vshrl.u32 %v4160, 7
    %v4162 = vsub.s32 %v3281, %v4161
    %v4163 = vrot.slane %v2814, %v4162
    %v4164 = vsel %vm3286, %v4163, %v4159
    %v4165 = vlaneseq
    %v4166 = vshrl.u32 %v4165, 7
    %v4167 = vsub.s32 %v3288, %v4166
    %v4168 = vrot.slane %v2816, %v4167
    %v4169 = vsel %vm3293, %v4168, %v4164
    %v4170 = vlaneseq
    %v4171 = vshrl.u32 %v4170, 7
    %v4172 = vsub.s32 %v3295, %v4171
    %v4173 = vrot.slane %v2818, %v4172
    %v4174 = vsel %vm3300, %v4173, %v4169
    %v4175 = vlaneseq
    %v4176 = vshrl.u32 %v4175, 7
    %v4177 = vsub.s32 %v3302, %v4176
    %v4178 = vrot.slane %v2820, %v4177
    %v4179 = vsel %vm3307, %v4178, %v4174
    %v4180 = vlaneseq
    %v4181 = vshrl.u32 %v4180, 7
    %v4182 = vsub.s32 %v3309, %v4181
    %v4183 = vrot.slane %v2822, %v4182
    %v4184 = vsel %vm3314, %v4183, %v4179
    %v4185 = vlaneseq
    %v4186 = vshrl.u32 %v4185, 7
    %v4187 = vsub.s32 %v277, %v4186
    %v4188 = vrot.slane %v2824, %v4187
    %v4189 = vlaneseq
    %v4190 = vshrl.u32 %v4189, 7
    %v4191 = vsub.s32 %v3211, %v4190
    %v4192 = vrot.slane %v2826, %v4191
    %v4193 = vsel %vm3216, %v4192, %v4188
    %v4194 = vlaneseq
    %v4195 = vshrl.u32 %v4194, 7
    %v4196 = vsub.s32 %v3218, %v4195
    %v4197 = vrot.slane %v2828, %v4196
    %v4198 = vsel %vm3223, %v4197, %v4193
    %v4199 = vlaneseq
    %v4200 = vshrl.u32 %v4199, 7
    %v4201 = vsub.s32 %v3225, %v4200
    %v4202 = vrot.slane %v2830, %v4201
    %v4203 = vsel %vm3230, %v4202, %v4198
    %v4204 = vlaneseq
    %v4205 = vshrl.u32 %v4204, 7
    %v4206 = vsub.s32 %v3232, %v4205
    %v4207 = vrot.slane %v2832, %v4206
    %v4208 = vsel %vm3237, %v4207, %v4203
    %v4209 = vlaneseq
    %v4210 = vshrl.u32 %v4209, 7
    %v4211 = vsub.s32 %v3239, %v4210
    %v4212 = vrot.slane %v2834, %v4211
    %v4213 = vsel %vm3244, %v4212, %v4208
    %v4214 = vlaneseq
    %v4215 = vshrl.u32 %v4214, 7
    %v4216 = vsub.s32 %v3246, %v4215
    %v4217 = vrot.slane %v2836, %v4216
    %v4218 = vsel %vm3251, %v4217, %v4213
    %v4219 = vlaneseq
    %v4220 = vshrl.u32 %v4219, 7
    %v4221 = vsub.s32 %v3253, %v4220
    %v4222 = vrot.slane %v2838, %v4221
    %v4223 = vsel %vm3258, %v4222, %v4218
    %v4224 = vlaneseq
    %v4225 = vshrl.u32 %v4224, 7
    %v4226 = vsub.s32 %v3260, %v4225
    %v4227 = vrot.slane %v2840, %v4226
    %v4228 = vsel %vm3265, %v4227, %v4223
    %v4229 = vlaneseq
    %v4230 = vshrl.u32 %v4229, 7
    %v4231 = vsub.s32 %v3267, %v4230
    %v4232 = vrot.slane %v2842, %v4231
    %v4233 = vsel %vm3272, %v4232, %v4228
    %v4234 = vlaneseq
    %v4235 = vshrl.u32 %v4234, 7
    %v4236 = vsub.s32 %v3274, %v4235
    %v4237 = vrot.slane %v2844, %v4236
    %v4238 = vsel %vm3279, %v4237, %v4233
    %v4239 = vlaneseq
    %v4240 = vshrl.u32 %v4239, 7
    %v4241 = vsub.s32 %v3281, %v4240
    %v4242 = vrot.slane %v2846, %v4241
    %v4243 = vsel %vm3286, %v4242, %v4238
    %v4244 = vlaneseq
    %v4245 = vshrl.u32 %v4244, 7
    %v4246 = vsub.s32 %v3288, %v4245
    %v4247 = vrot.slane %v2848, %v4246
    %v4248 = vsel %vm3293, %v4247, %v4243
    %v4249 = vlaneseq
    %v4250 = vshrl.u32 %v4249, 7
    %v4251 = vsub.s32 %v3295, %v4250
    %v4252 = vrot.slane %v2850, %v4251
    %v4253 = vsel %vm3300, %v4252, %v4248
    %v4254 = vlaneseq
    %v4255 = vshrl.u32 %v4254, 7
    %v4256 = vsub.s32 %v3302, %v4255
    %v4257 = vrot.slane %v2852, %v4256
    %v4258 = vsel %vm3307, %v4257, %v4253
    %v4259 = vlaneseq
    %v4260 = vshrl.u32 %v4259, 7
    %v4261 = vsub.s32 %v3309, %v4260
    %v4262 = vrot.slane %v2854, %v4261
    %v4263 = vsel %vm3314, %v4262, %v4258
    %v4264 = vlaneseq
    %v4265 = vshrl.u32 %v4264, 7
    %v4266 = vsub.s32 %v277, %v4265
    %v4267 = vrot.slane %v2856, %v4266
    %v4268 = vlaneseq
    %v4269 = vshrl.u32 %v4268, 7
    %v4270 = vsub.s32 %v3211, %v4269
    %v4271 = vrot.slane %v2858, %v4270
    %v4272 = vsel %vm3216, %v4271, %v4267
    %v4273 = vlaneseq
    %v4274 = vshrl.u32 %v4273, 7
    %v4275 = vsub.s32 %v3218, %v4274
    %v4276 = vrot.slane %v2860, %v4275
    %v4277 = vsel %vm3223, %v4276, %v4272
    %v4278 = vlaneseq
    %v4279 = vshrl.u32 %v4278, 7
    %v4280 = vsub.s32 %v3225, %v4279
    %v4281 = vrot.slane %v2862, %v4280
    %v4282 = vsel %vm3230, %v4281, %v4277
    %v4283 = vlaneseq
    %v4284 = vshrl.u32 %v4283, 7
    %v4285 = vsub.s32 %v3232, %v4284
    %v4286 = vrot.slane %v2864, %v4285
    %v4287 = vsel %vm3237, %v4286, %v4282
    %v4288 = vlaneseq
    %v4289 = vshrl.u32 %v4288, 7
    %v4290 = vsub.s32 %v3239, %v4289
    %v4291 = vrot.slane %v2866, %v4290
    %v4292 = vsel %vm3244, %v4291, %v4287
    %v4293 = vlaneseq
    %v4294 = vshrl.u32 %v4293, 7
    %v4295 = vsub.s32 %v3246, %v4294
    %v4296 = vrot.slane %v2868, %v4295
    %v4297 = vsel %vm3251, %v4296, %v4292
    %v4298 = vlaneseq
    %v4299 = vshrl.u32 %v4298, 7
    %v4300 = vsub.s32 %v3253, %v4299
    %v4301 = vrot.slane %v2870, %v4300
    %v4302 = vsel %vm3258, %v4301, %v4297
    %v4303 = vlaneseq
    %v4304 = vshrl.u32 %v4303, 7
    %v4305 = vsub.s32 %v3260, %v4304
    %v4306 = vrot.slane %v2872, %v4305
    %v4307 = vsel %vm3265, %v4306, %v4302
    %v4308 = vlaneseq
    %v4309 = vshrl.u32 %v4308, 7
    %v4310 = vsub.s32 %v3267, %v4309
    %v4311 = vrot.slane %v2874, %v4310
    %v4312 = vsel %vm3272, %v4311, %v4307
    %v4313 = vlaneseq
    %v4314 = vshrl.u32 %v4313, 7
    %v4315 = vsub.s32 %v3274, %v4314
    %v4316 = vrot.slane %v2876, %v4315
    %v4317 = vsel %vm3279, %v4316, %v4312
    %v4318 = vlaneseq
    %v4319 = vshrl.u32 %v4318, 7
    %v4320 = vsub.s32 %v3281, %v4319
    %v4321 = vrot.slane %v2878, %v4320
    %v4322 = vsel %vm3286, %v4321, %v4317
    %v4323 = vlaneseq
    %v4324 = vshrl.u32 %v4323, 7
    %v4325 = vsub.s32 %v3288, %v4324
    %v4326 = vrot.slane %v2880, %v4325
    %v4327 = vsel %vm3293, %v4326, %v4322
    %v4328 = vlaneseq
    %v4329 = vshrl.u32 %v4328, 7
    %v4330 = vsub.s32 %v3295, %v4329
    %v4331 = vrot.slane %v2882, %v4330
    %v4332 = vsel %vm3300, %v4331, %v4327
    %v4333 = vlaneseq
    %v4334 = vshrl.u32 %v4333, 7
    %v4335 = vsub.s32 %v3302, %v4334
    %v4336 = vrot.slane %v2884, %v4335
    %v4337 = vsel %vm3307, %v4336, %v4332
    %v4338 = vlaneseq
    %v4339 = vshrl.u32 %v4338, 7
    %v4340 = vsub.s32 %v3309, %v4339
    %v4341 = vrot.slane %v2886, %v4340
    %v4342 = vsel %vm3314, %v4341, %v4337
    %v4343 = vlaneseq
    %v4344 = vshrl.u32 %v4343, 7
    %v4345 = vsub.s32 %v277, %v4344
    %v4346 = vrot.slane %v2888, %v4345
    %v4347 = vlaneseq
    %v4348 = vshrl.u32 %v4347, 7
    %v4349 = vsub.s32 %v3211, %v4348
    %v4350 = vrot.slane %v2890, %v4349
    %v4351 = vsel %vm3216, %v4350, %v4346
    %v4352 = vlaneseq
    %v4353 = vshrl.u32 %v4352, 7
    %v4354 = vsub.s32 %v3218, %v4353
    %v4355 = vrot.slane %v2892, %v4354
    %v4356 = vsel %vm3223, %v4355, %v4351
    %v4357 = vlaneseq
    %v4358 = vshrl.u32 %v4357, 7
    %v4359 = vsub.s32 %v3225, %v4358
    %v4360 = vrot.slane %v2894, %v4359
    %v4361 = vsel %vm3230, %v4360, %v4356
    %v4362 = vlaneseq
    %v4363 = vshrl.u32 %v4362, 7
    %v4364 = vsub.s32 %v3232, %v4363
    %v4365 = vrot.slane %v2896, %v4364
    %v4366 = vsel %vm3237, %v4365, %v4361
    %v4367 = vlaneseq
    %v4368 = vshrl.u32 %v4367, 7
    %v4369 = vsub.s32 %v3239, %v4368
    %v4370 = vrot.slane %v2898, %v4369
    %v4371 = vsel %vm3244, %v4370, %v4366
    %v4372 = vlaneseq
    %v4373 = vshrl.u32 %v4372, 7
    %v4374 = vsub.s32 %v3246, %v4373
    %v4375 = vrot.slane %v2900, %v4374
    %v4376 = vsel %vm3251, %v4375, %v4371
    %v4377 = vlaneseq
    %v4378 = vshrl.u32 %v4377, 7
    %v4379 = vsub.s32 %v3253, %v4378
    %v4380 = vrot.slane %v2902, %v4379
    %v4381 = vsel %vm3258, %v4380, %v4376
    %v4382 = vlaneseq
    %v4383 = vshrl.u32 %v4382, 7
    %v4384 = vsub.s32 %v3260, %v4383
    %v4385 = vrot.slane %v2904, %v4384
    %v4386 = vsel %vm3265, %v4385, %v4381
    %v4387 = vlaneseq
    %v4388 = vshrl.u32 %v4387, 7
    %v4389 = vsub.s32 %v3267, %v4388
    %v4390 = vrot.slane %v2906, %v4389
    %v4391 = vsel %vm3272, %v4390, %v4386
    %v4392 = vlaneseq
    %v4393 = vshrl.u32 %v4392, 7
    %v4394 = vsub.s32 %v3274, %v4393
    %v4395 = vrot.slane %v2908, %v4394
    %v4396 = vsel %vm3279, %v4395, %v4391
    %v4397 = vlaneseq
    %v4398 = vshrl.u32 %v4397, 7
    %v4399 = vsub.s32 %v3281, %v4398
    %v4400 = vrot.slane %v2910, %v4399
    %v4401 = vsel %vm3286, %v4400, %v4396
    %v4402 = vlaneseq
    %v4403 = vshrl.u32 %v4402, 7
    %v4404 = vsub.s32 %v3288, %v4403
    %v4405 = vrot.slane %v2912, %v4404
    %v4406 = vsel %vm3293, %v4405, %v4401
    %v4407 = vlaneseq
    %v4408 = vshrl.u32 %v4407, 7
    %v4409 = vsub.s32 %v3295, %v4408
    %v4410 = vrot.slane %v2914, %v4409
    %v4411 = vsel %vm3300, %v4410, %v4406
    %v4412 = vlaneseq
    %v4413 = vshrl.u32 %v4412, 7
    %v4414 = vsub.s32 %v3302, %v4413
    %v4415 = vrot.slane %v2916, %v4414
    %v4416 = vsel %vm3307, %v4415, %v4411
    %v4417 = vlaneseq
    %v4418 = vshrl.u32 %v4417, 7
    %v4419 = vsub.s32 %v3309, %v4418
    %v4420 = vrot.slane %v2918, %v4419
    %v4421 = vsel %vm3314, %v4420, %v4416
    %v4422 = vlaneseq
    %v4423 = vshrl.u32 %v4422, 7
    %v4424 = vsub.s32 %v277, %v4423
    %v4425 = vrot.slane %v2920, %v4424
    %v4426 = vlaneseq
    %v4427 = vshrl.u32 %v4426, 7
    %v4428 = vsub.s32 %v3211, %v4427
    %v4429 = vrot.slane %v2922, %v4428
    %v4430 = vsel %vm3216, %v4429, %v4425
    %v4431 = vlaneseq
    %v4432 = vshrl.u32 %v4431, 7
    %v4433 = vsub.s32 %v3218, %v4432
    %v4434 = vrot.slane %v2924, %v4433
    %v4435 = vsel %vm3223, %v4434, %v4430
    %v4436 = vlaneseq
    %v4437 = vshrl.u32 %v4436, 7
    %v4438 = vsub.s32 %v3225, %v4437
    %v4439 = vrot.slane %v2926, %v4438
    %v4440 = vsel %vm3230, %v4439, %v4435
    %v4441 = vlaneseq
    %v4442 = vshrl.u32 %v4441, 7
    %v4443 = vsub.s32 %v3232, %v4442
    %v4444 = vrot.slane %v2928, %v4443
    %v4445 = vsel %vm3237, %v4444, %v4440
    %v4446 = vlaneseq
    %v4447 = vshrl.u32 %v4446, 7
    %v4448 = vsub.s32 %v3239, %v4447
    %v4449 = vrot.slane %v2930, %v4448
    %v4450 = vsel %vm3244, %v4449, %v4445
    %v4451 = vlaneseq
    %v4452 = vshrl.u32 %v4451, 7
    %v4453 = vsub.s32 %v3246, %v4452
    %v4454 = vrot.slane %v2932, %v4453
    %v4455 = vsel %vm3251, %v4454, %v4450
    %v4456 = vlaneseq
    %v4457 = vshrl.u32 %v4456, 7
    %v4458 = vsub.s32 %v3253, %v4457
    %v4459 = vrot.slane %v2934, %v4458
    %v4460 = vsel %vm3258, %v4459, %v4455
    %v4461 = vlaneseq
    %v4462 = vshrl.u32 %v4461, 7
    %v4463 = vsub.s32 %v3260, %v4462
    %v4464 = vrot.slane %v2936, %v4463
    %v4465 = vsel %vm3265, %v4464, %v4460
    %v4466 = vlaneseq
    %v4467 = vshrl.u32 %v4466, 7
    %v4468 = vsub.s32 %v3267, %v4467
    %v4469 = vrot.slane %v2938, %v4468
    %v4470 = vsel %vm3272, %v4469, %v4465
    %v4471 = vlaneseq
    %v4472 = vshrl.u32 %v4471, 7
    %v4473 = vsub.s32 %v3274, %v4472
    %v4474 = vrot.slane %v2940, %v4473
    %v4475 = vsel %vm3279, %v4474, %v4470
    %v4476 = vlaneseq
    %v4477 = vshrl.u32 %v4476, 7
    %v4478 = vsub.s32 %v3281, %v4477
    %v4479 = vrot.slane %v2942, %v4478
    %v4480 = vsel %vm3286, %v4479, %v4475
    %v4481 = vlaneseq
    %v4482 = vshrl.u32 %v4481, 7
    %v4483 = vsub.s32 %v3288, %v4482
    %v4484 = vrot.slane %v2944, %v4483
    %v4485 = vsel %vm3293, %v4484, %v4480
    %v4486 = vlaneseq
    %v4487 = vshrl.u32 %v4486, 7
    %v4488 = vsub.s32 %v3295, %v4487
    %v4489 = vrot.slane %v2946, %v4488
    %v4490 = vsel %vm3300, %v4489, %v4485
    %v4491 = vlaneseq
    %v4492 = vshrl.u32 %v4491, 7
    %v4493 = vsub.s32 %v3302, %v4492
    %v4494 = vrot.slane %v2948, %v4493
    %v4495 = vsel %vm3307, %v4494, %v4490
    %v4496 = vlaneseq
    %v4497 = vshrl.u32 %v4496, 7
    %v4498 = vsub.s32 %v3309, %v4497
    %v4499 = vrot.slane %v2950, %v4498
    %v4500 = vsel %vm3314, %v4499, %v4495
    %vm4501 = vcmask 1041409
    %v4502 = vsel %vm4501, %v3394, %v3315
    %vm4503 = vcmask 1042434
    %v4504 = vsel %vm4503, %v3473, %v4502
    %vm4505 = vcmask 1043459
    %v4506 = vsel %vm4505, %v3552, %v4504
    %vm4507 = vcmask 1044484
    %v4508 = vsel %vm4507, %v3631, %v4506
    %vm4509 = vcmask 1045509
    %v4510 = vsel %vm4509, %v3710, %v4508
    %vm4511 = vcmask 1046534
    %v4512 = vsel %vm4511, %v3789, %v4510
    %vm4513 = vcmask 1047559
    %v4514 = vsel %vm4513, %v3868, %v4512
    %v4515 = vsel %vm4501, %v4026, %v3947
    %v4516 = vsel %vm4503, %v4105, %v4515
    %v4517 = vsel %vm4505, %v4184, %v4516
    %v4518 = vsel %vm4507, %v4263, %v4517
    %v4519 = vsel %vm4509, %v4342, %v4518
    %v4520 = vsel %vm4511, %v4421, %v4519
    %v4521 = vsel %vm4513, %v4500, %v4520
    %4524 = vst [vmem:[#allocation2] sm:$0xff] %v4514
    %4525 = vst [vmem:[#allocation2 + $0x8] sm:$0xff] %v4521
    // Predicated region
    $region18: #{tpu_custom_call.1} parent=1 // pred_check
      _
    $region19: #{tpu_custom_call.1} parent=1 // pred_check_branch
      %4527 = sbr.rel (0) target = $region21
    $region20: #{tpu_custom_call.1} parent=1 // pred_region
      %s4529 = ssub.s32 256, 256
      %4530 = vsyncadd [#allocation3], %s4529
      %s4531 = sshll.u32 [#allocation2], 4
      %s4532 = int_to_ptr.vmem [resolvable:$true] %s4531
      %4537 = dma.vmem_to_hbm [thread:$0]  %s4532, 256, %s4, [#allocation3], 128, 128, 8
    $region21: #{tpu_custom_call.1} parent=1 // pred_fallthru
      _
    // Predicated region
    $region22: #{tpu_custom_call.1} parent=1 // pred_check
      _
    $region23: #{tpu_custom_call.1} parent=1 // pred_check_branch
      %4539 = sbr.rel (0) target = $region25
    $region24: #{tpu_custom_call.1} parent=1 // pred_region
      %4540 = dma.done [#allocation3], 256
    $region25: #{tpu_custom_call.1} parent=1 // pred_fallthru
      _
    %4541 = vsyncpa [#allocation3], 1

</llo_original>
